<compile_context>
chip_gen: v7x
topology: tpu7x:2x2x1
jax: 0.10.0
libtpu: 0.0.40
codegen_flags: <defaults>
</compile_context>

<pallas_src>
import functools
import math

import numpy as np
import jax
import jax.numpy as jnp
from jax.experimental import pallas as pl
from jax.experimental.pallas import tpu as pltpu

# ----------------------------- model config ---------------------------------
B = 2            # batch
T = 8            # lab_token_count
H = 32           # hidden_size (small-config stand-in for 768)
NH = 4           # nhead (small-config stand-in for 8; must divide H)
HD = H // NH
DFF = 64         # dim_feedforward
L = 2            # num_layers
LN_EPS = 1e-5
LANES = 128


def _pad8(n):
    return (n + 7) & ~7


def _slab_layout(hidden, dff, num_layers, num_heads, batch, seq_len):
    """Row offsets of every packed parameter inside the (ROWS, 128) slab."""
    bt = batch * seq_len
    per_layer = 3 * hidden + dff + 8
    lay = {
        "per_layer": per_layer,
        "wqkv": 0,                      # (hidden, 3*hidden)
        "wo": hidden,                   # (hidden, hidden)
        "w1": 2 * hidden,               # (hidden, dff)
        "w2": 3 * hidden,               # (dff, hidden)
        "vec": 3 * hidden + dff,        # 8 rows of biases / LN params
    }
    goff = num_layers * per_layer
    lay["posb"] = goff                               # (bt, hidden) pos+tok_b tiled
    lay["tokw"] = lay["posb"] + _pad8(bt)            # (1, hidden)
    lay["mask"] = lay["tokw"] + 8                    # (bt, bt) additive mask
    lay["pool"] = lay["mask"] + _pad8(bt)            # (batch, bt) mean-pool matrix
    lay["hmask"] = lay["pool"] + _pad8(batch)        # (num_heads, hidden) lane masks
    lay["rows"] = lay["hmask"] + _pad8(num_heads)
    return lay


def _layernorm(x, w, b):
    mu = jnp.mean(x, axis=-1, keepdims=True)
    var = jnp.mean((x - mu) ** 2, axis=-1, keepdims=True)
    return (x - mu) * jax.lax.rsqrt(var + LN_EPS) * w + b


# --------------------------------- kernel ------------------------------------
def behrt_lab_kernel(lab_ref,    # (B*T, 1)
                     slab_ref,   # (ROWS, 128) packed parameter slab
                     o_ref,      # (B, H)
                     *, hidden, dff, num_layers, num_heads, batch, seq_len):
    bt = batch * seq_len
    h3 = 3 * hidden
    lay = _slab_layout(hidden, dff, num_layers, num_heads, batch, seq_len)

    # ---- constants / globals (single loads, hoisted out of the layer loop) --
    posb = slab_ref[lay["posb"]:lay["posb"] + bt, 0:hidden]       # (BT, H)
    tok_w = slab_ref[lay["tokw"]:lay["tokw"] + 1, 0:hidden]       # (1, H)
    mask_add = slab_ref[lay["mask"]:lay["mask"] + bt, 0:bt]       # (BT, BT)
    pool = slab_ref[lay["pool"]:lay["pool"] + batch, 0:bt]        # (B, BT)
    hmasks = [slab_ref[lay["hmask"] + hh:lay["hmask"] + hh + 1, 0:hidden]
              for hh in range(num_heads)]                         # (1, H) each

    # ---- token embedding (Linear(1,H) outer product) + positional ----------
    h = lab_ref[...] * tok_w + posb                               # (BT, H)

    for l in range(num_layers):
        base = l * lay["per_layer"]
        wqkv = slab_ref[base + lay["wqkv"]:base + lay["wqkv"] + hidden, 0:h3]
        wo = slab_ref[base + lay["wo"]:base + lay["wo"] + hidden, 0:hidden]
        w1 = slab_ref[base + lay["w1"]:base + lay["w1"] + hidden, 0:dff]
        w2 = slab_ref[base + lay["w2"]:base + lay["w2"] + dff, 0:hidden]
        vb = base + lay["vec"]
        bqkv = slab_ref[vb + 0:vb + 1, 0:h3]
        out_b = slab_ref[vb + 1:vb + 2, 0:hidden]
        ff1_b = slab_ref[vb + 2:vb + 3, 0:dff]
        ff2_b = slab_ref[vb + 3:vb + 4, 0:hidden]
        n1_w = slab_ref[vb + 4:vb + 5, 0:hidden]
        n1_b = slab_ref[vb + 5:vb + 6, 0:hidden]
        n2_w = slab_ref[vb + 6:vb + 7, 0:hidden]
        n2_b = slab_ref[vb + 7:vb + 8, 0:hidden]

        # ---- fused QKV projection: one full-width MXU matmul ----------------
        # (q-rows of wqkv / bqkv are pre-scaled by 1/sqrt(hd) at pack time)
        qkv = jnp.dot(h, wqkv, preferred_element_type=jnp.float32) + bqkv  # (BT, 3H)
        v_full = qkv[:, 2 * hidden:3 * hidden]                             # (BT, H)

        # ---- per-head attention; ctx accumulated full-width via lane masks --
        ctx = jnp.zeros((bt, hidden), jnp.float32)
        for hh in range(num_heads):
            q_h = qkv[:, hh * HD:(hh + 1) * HD]                            # (BT, hd)
            k_h = qkv[:, hidden + hh * HD:hidden + (hh + 1) * HD]          # (BT, hd)
            s = pl.dot(q_h, k_h, trans_b=True) + mask_add                  # (BT, BT)
            m = jnp.max(s, axis=-1, keepdims=True)
            p = jnp.exp(s - m)
            p = p * pl.reciprocal(jnp.sum(p, axis=-1, keepdims=True), approx=True)
            ctx = ctx + jnp.dot(p, v_full * hmasks[hh],
                                preferred_element_type=jnp.float32)        # (BT, H)

        # single full-width out-projection
        attn = jnp.dot(ctx, wo, preferred_element_type=jnp.float32) + out_b

        # post-norm residual 1
        h = _layernorm(h + attn, n1_w, n1_b)

        # ---- feed forward ----------------------------------------------------
        ff = jnp.dot(h, w1, preferred_element_type=jnp.float32) + ff1_b
        ff = jnp.maximum(ff, 0.0)
        ff = jnp.dot(ff, w2, preferred_element_type=jnp.float32) + ff2_b

        # post-norm residual 2
        h = _layernorm(h + ff, n2_w, n2_b)

    # mean over the sequence dim: one pooling matmul + one full-block store
    o_ref[...] = jnp.dot(pool, h, preferred_element_type=jnp.float32)


# ----------------------- one-time parameter packing --------------------------
def prepare_params(p, *, batch, seq_len, num_heads):
    """Pack all weights / biases / constants into ONE lane-dense (ROWS,128) slab."""
    num_layers, h3, hidden = p["qkv_w"].shape
    dff = p["ff1_w"].shape[1]
    hd = hidden // num_heads
    bt = batch * seq_len
    assert h3 == 3 * hidden
    # toy-config packing: every column range must fit in one 128-lane tile
    assert 3 * hidden <= LANES and dff <= LANES and bt <= LANES

    lay = _slab_layout(hidden, dff, num_layers, num_heads, batch, seq_len)
    slab = np.zeros((lay["rows"], LANES), np.float32)
    scale = 1.0 / math.sqrt(hd)

    for l in range(num_layers):
        base = l * lay["per_layer"]
        wqkv = np.asarray(p["qkv_w"][l], np.float32).T.copy()     # (H, 3H)
        bqkv = np.asarray(p["qkv_b"][l], np.float32).copy()       # (3H,)
        wqkv[:, :hidden] *= scale                                 # fold 1/sqrt(hd) into q
        bqkv[:hidden] *= scale
        slab[base:base + hidden, :3 * hidden] = wqkv
        slab[base + lay["wo"]:base + lay["wo"] + hidden, :hidden] = \
            np.asarray(p["out_w"][l], np.float32).T
        slab[base + lay["w1"]:base + lay["w1"] + hidden, :dff] = \
            np.asarray(p["ff1_w"][l], np.float32).T
        slab[base + lay["w2"]:base + lay["w2"] + dff, :hidden] = \
            np.asarray(p["ff2_w"][l], np.float32).T
        vb = base + lay["vec"]
        slab[vb + 0, :3 * hidden] = bqkv
        slab[vb + 1, :hidden] = np.asarray(p["out_b"][l])
        slab[vb + 2, :dff] = np.asarray(p["ff1_b"][l])
        slab[vb + 3, :hidden] = np.asarray(p["ff2_b"][l])
        slab[vb + 4, :hidden] = np.asarray(p["n1_w"][l])
        slab[vb + 5, :hidden] = np.asarray(p["n1_b"][l])
        slab[vb + 6, :hidden] = np.asarray(p["n2_w"][l])
        slab[vb + 7, :hidden] = np.asarray(p["n2_b"][l])

    # pos + tok_b, tiled over batch (packed (B*T, H) row order)
    posb = np.asarray(p["pos"], np.float32) + np.asarray(p["tok_b"], np.float32)[None, :]
    slab[lay["posb"]:lay["posb"] + bt, :hidden] = np.tile(posb, (batch, 1))
    slab[lay["tokw"], :hidden] = np.asarray(p["tok_w"], np.float32)[:, 0]

    # block-diagonal additive mask (packed examples don't attend across batch)
    rb = np.arange(bt)[:, None] // seq_len
    cb = np.arange(bt)[None, :] // seq_len
    slab[lay["mask"]:lay["mask"] + bt, :bt] = np.where(rb == cb, 0.0, -1e30)

    # mean-pooling matrix
    pool = np.zeros((batch, bt), np.float32)
    for b in range(batch):
        pool[b, b * seq_len:(b + 1) * seq_len] = 1.0 / seq_len
    slab[lay["pool"]:lay["pool"] + batch, :bt] = pool

    # per-head lane masks
    for hh in range(num_heads):
        slab[lay["hmask"] + hh, hh * hd:(hh + 1) * hd] = 1.0

    return jnp.asarray(slab)


# --------------------------------- wrapper ------------------------------------
def behrt_lab_forward(lab, slab, *, hidden, dff, num_layers, num_heads):
    """lab: (B, T) float32, slab: packed params -> (B, H) float32."""
    b, t = lab.shape
    bt = b * t
    rows = slab.shape[0]
    lab2 = lab.reshape(bt, 1)

    kernel = functools.partial(
        behrt_lab_kernel, hidden=hidden, dff=dff, num_layers=num_layers,
        num_heads=num_heads, batch=b, seq_len=t)

    # rough advisory cost hint (matmul flops + softmax exps + param traffic)
    flops = num_layers * (2 * bt * hidden * 3 * hidden          # qkv
                          + num_heads * 2 * bt * (hidden // num_heads) * bt   # scores
                          + num_heads * 2 * bt * bt * hidden    # ctx
                          + 2 * bt * hidden * hidden            # out proj
                          + 4 * bt * hidden * dff)              # ffn
    cost = pl.CostEstimate(flops=flops,
                           transcendentals=num_layers * num_heads * bt * bt,
                           bytes_accessed=int(slab.size * 4 + lab.size * 4 + b * hidden * 4))

    return pl.pallas_call(
        kernel,
        out_shape=jax.ShapeDtypeStruct((b, hidden), jnp.float32),
        grid=(1,),   # single invocation: whole batch, overhead-bound regime
        in_specs=[
            pl.BlockSpec((bt, 1), lambda i: (0, 0)),
            pl.BlockSpec((rows, LANES), lambda i: (0, 0)),
        ],
        out_specs=pl.BlockSpec((b, hidden), lambda i: (0, 0)),
        compiler_params=pltpu.CompilerParams(dimension_semantics=("arbitrary",)),
        cost_estimate=cost,
    )(lab2, slab)


# --------------------------- pure-JAX reference ------------------------------
def behrt_lab_ref(lab, p):
    b, t = lab.shape
    h_dim = p["pos"].shape[1]
    hd = h_dim // NH
    scale = 1.0 / math.sqrt(hd)

    x = lab[..., None] * p["tok_w"][:, 0] + p["tok_b"]        # (B, T, H)
    x = x + p["pos"][None]

    for l in range(p["qkv_w"].shape[0]):
        wqkv, bqkv = p["qkv_w"][l], p["qkv_b"][l]
        q = x @ wqkv[0:h_dim].T + bqkv[0:h_dim]
        k = x @ wqkv[h_dim:2 * h_dim].T + bqkv[h_dim:2 * h_dim]
        v = x @ wqkv[2 * h_dim:].T + bqkv[2 * h_dim:]
        q = q.reshape(b, t, NH, hd) * scale
        k = k.reshape(b, t, NH, hd)
        v = v.reshape(b, t, NH, hd)
        sc = jnp.einsum("bqhd,bkhd->bhqk", q, k)
        prob = jax.nn.softmax(sc, axis=-1)
        attn = jnp.einsum("bhqk,bkhd->bqhd", prob, v).reshape(b, t, h_dim)
        attn = attn @ p["out_w"][l].T + p["out_b"][l]

        def ln(z, w, bb):
            mu = jnp.mean(z, axis=-1, keepdims=True)
            var = jnp.mean((z - mu) ** 2, axis=-1, keepdims=True)
            return (z - mu) * jax.lax.rsqrt(var + LN_EPS) * w + bb

        x = ln(x + attn, p["n1_w"][l], p["n1_b"][l])
        ff = jnp.maximum(x @ p["ff1_w"][l].T + p["ff1_b"][l], 0.0)
        ff = ff @ p["ff2_w"][l].T + p["ff2_b"][l]
        x = ln(x + ff, p["n2_w"][l], p["n2_b"][l])

    return x.mean(axis=1)


def make_params(key):
    ks = jax.random.split(key, 12)
    s = 0.05
    return {
        "tok_w": s * jax.random.normal(ks[0], (H, 1), jnp.float32),
        "tok_b": s * jax.random.normal(ks[1], (H,), jnp.float32),
        "pos":   s * jax.random.normal(ks[2], (T, H), jnp.float32),
        "qkv_w": s * jax.random.normal(ks[3], (L, 3 * H, H), jnp.float32),
        "qkv_b": s * jax.random.normal(ks[4], (L, 3 * H), jnp.float32),
        "out_w": s * jax.random.normal(ks[5], (L, H, H), jnp.float32),
        "out_b": s * jax.random.normal(ks[6], (L, H), jnp.float32),
        "ff1_w": s * jax.random.normal(ks[7], (L, DFF, H), jnp.float32),
        "ff1_b": s * jax.random.normal(ks[8], (L, DFF), jnp.float32),
        "ff2_w": s * jax.random.normal(ks[9], (L, H, DFF), jnp.float32),
        "ff2_b": s * jax.random.normal(ks[10], (L, H), jnp.float32),
        "n1_w": jnp.ones((L, H), jnp.float32),
        "n1_b": jnp.zeros((L, H), jnp.float32),
        "n2_w": jnp.ones((L, H), jnp.float32),
        "n2_b": jnp.zeros((L, H), jnp.float32),
    }


if __name__ == "__main__":
    key = jax.random.PRNGKey(0)
    pkey, xkey = jax.random.split(key)
    params = make_params(pkey)
    lab_features = jax.random.normal(xkey, (B, T), jnp.float32)

    # one-time packing into a single lane-dense parameter slab
    slab = prepare_params(params, batch=B, seq_len=T, num_heads=NH)

    fwd = jax.jit(functools.partial(behrt_lab_forward, hidden=H, dff=DFF,
                                    num_layers=L, num_heads=NH))
    out = jax.block_until_ready(fwd(lab_features, slab))

    ref = behrt_lab_ref(lab_features, params)
    assert out.shape == (B, H), out.shape
    assert jnp.allclose(out, ref, rtol=1e-2, atol=1e-2), (
        float(jnp.max(jnp.abs(out - ref))))

    # TODO(synk): nn.Dropout layers are identity here (eval mode); training-mode
    # dropout is not implemented.
    print("KERNEL_OK")
</pallas_src>

<mosaic_0001>
module attributes {stable_mosaic.version = 11 : i64} {
  func.func @behrt_lab_kernel(%arg0: i32, %arg1: memref<16x1xf32, #tpu.memory_space<vmem>>, %arg2: memref<392x128xf32, #tpu.memory_space<vmem>>, %arg3: memref<2x32xf32, #tpu.memory_space<vmem>>) attributes {dimension_semantics = [#tpu.dimension_semantics<arbitrary>], iteration_bounds = array<i64: 1>, scalar_prefetch = 0 : i64, scratch_operands = 0 : i64, tpu.core_type = #tpu.core_type<tc>, window_params = [{pipeline_mode = #tpu.pipeline_mode<synchronous>, transform_indices = @transform_0, window_bounds = array<i64: 16, 1>}, {pipeline_mode = #tpu.pipeline_mode<synchronous>, transform_indices = @transform_1, window_bounds = array<i64: 392, 128>}, {pipeline_mode = #tpu.pipeline_mode<synchronous>, transform_indices = @transform_2, window_bounds = array<i64: 2, 32>}]} {
    %c336 = arith.constant 336 : index
    %c0 = arith.constant 0 : index
    %0 = vector.load %arg2[%c336, %c0] : memref<392x128xf32, #tpu.memory_space<vmem>>, vector<16x32xf32>
    %c352 = arith.constant 352 : index
    %c0_0 = arith.constant 0 : index
    %1 = vector.load %arg2[%c352, %c0_0] : memref<392x128xf32, #tpu.memory_space<vmem>>, vector<1x32xf32>
    %c360 = arith.constant 360 : index
    %c0_1 = arith.constant 0 : index
    %2 = vector.load %arg2[%c360, %c0_1] : memref<392x128xf32, #tpu.memory_space<vmem>>, vector<16x16xf32>
    %c376 = arith.constant 376 : index
    %c0_2 = arith.constant 0 : index
    %3 = vector.load %arg2[%c376, %c0_2] : memref<392x128xf32, #tpu.memory_space<vmem>>, vector<2x16xf32>
    %c384 = arith.constant 384 : index
    %c0_3 = arith.constant 0 : index
    %4 = vector.load %arg2[%c384, %c0_3] : memref<392x128xf32, #tpu.memory_space<vmem>>, vector<1x32xf32>
    %c385 = arith.constant 385 : index
    %c0_4 = arith.constant 0 : index
    %5 = vector.load %arg2[%c385, %c0_4] : memref<392x128xf32, #tpu.memory_space<vmem>>, vector<1x32xf32>
    %c386 = arith.constant 386 : index
    %c0_5 = arith.constant 0 : index
    %6 = vector.load %arg2[%c386, %c0_5] : memref<392x128xf32, #tpu.memory_space<vmem>>, vector<1x32xf32>
    %c387 = arith.constant 387 : index
    %c0_6 = arith.constant 0 : index
    %7 = vector.load %arg2[%c387, %c0_6] : memref<392x128xf32, #tpu.memory_space<vmem>>, vector<1x32xf32>
    %c0_7 = arith.constant 0 : index
    %c0_8 = arith.constant 0 : index
    %8 = vector.load %arg1[%c0_7, %c0_8] : memref<16x1xf32, #tpu.memory_space<vmem>>, vector<16x1xf32>
    %9 = vector.broadcast %8 : vector<16x1xf32> to vector<16x32xf32>
    %10 = vector.broadcast %1 : vector<1x32xf32> to vector<16x32xf32>
    %11 = arith.mulf %9, %10 : vector<16x32xf32>
    %12 = arith.addf %11, %0 : vector<16x32xf32>
    %c0_9 = arith.constant 0 : index
    %c0_10 = arith.constant 0 : index
    %13 = vector.load %arg2[%c0_9, %c0_10] : memref<392x128xf32, #tpu.memory_space<vmem>>, vector<32x96xf32>
    %c32 = arith.constant 32 : index
    %c0_11 = arith.constant 0 : index
    %14 = vector.load %arg2[%c32, %c0_11] : memref<392x128xf32, #tpu.memory_space<vmem>>, vector<32x32xf32>
    %c64 = arith.constant 64 : index
    %c0_12 = arith.constant 0 : index
    %15 = vector.load %arg2[%c64, %c0_12] : memref<392x128xf32, #tpu.memory_space<vmem>>, vector<32x64xf32>
    %c96 = arith.constant 96 : index
    %c0_13 = arith.constant 0 : index
    %16 = vector.load %arg2[%c96, %c0_13] : memref<392x128xf32, #tpu.memory_space<vmem>>, vector<64x32xf32>
    %c160 = arith.constant 160 : index
    %c0_14 = arith.constant 0 : index
    %17 = vector.load %arg2[%c160, %c0_14] : memref<392x128xf32, #tpu.memory_space<vmem>>, vector<1x96xf32>
    %c161 = arith.constant 161 : index
    %c0_15 = arith.constant 0 : index
    %18 = vector.load %arg2[%c161, %c0_15] : memref<392x128xf32, #tpu.memory_space<vmem>>, vector<1x32xf32>
    %c162 = arith.constant 162 : index
    %c0_16 = arith.constant 0 : index
    %19 = vector.load %arg2[%c162, %c0_16] : memref<392x128xf32, #tpu.memory_space<vmem>>, vector<1x64xf32>
    %c163 = arith.constant 163 : index
    %c0_17 = arith.constant 0 : index
    %20 = vector.load %arg2[%c163, %c0_17] : memref<392x128xf32, #tpu.memory_space<vmem>>, vector<1x32xf32>
    %c164 = arith.constant 164 : index
    %c0_18 = arith.constant 0 : index
    %21 = vector.load %arg2[%c164, %c0_18] : memref<392x128xf32, #tpu.memory_space<vmem>>, vector<1x32xf32>
    %c165 = arith.constant 165 : index
    %c0_19 = arith.constant 0 : index
    %22 = vector.load %arg2[%c165, %c0_19] : memref<392x128xf32, #tpu.memory_space<vmem>>, vector<1x32xf32>
    %c166 = arith.constant 166 : index
    %c0_20 = arith.constant 0 : index
    %23 = vector.load %arg2[%c166, %c0_20] : memref<392x128xf32, #tpu.memory_space<vmem>>, vector<1x32xf32>
    %c167 = arith.constant 167 : index
    %c0_21 = arith.constant 0 : index
    %24 = vector.load %arg2[%c167, %c0_21] : memref<392x128xf32, #tpu.memory_space<vmem>>, vector<1x32xf32>
    %cst = arith.constant dense<0.000000e+00> : vector<16x96xf32>
    %25 = tpu.matmul %12, %13, %cst {dimension_numbers = #tpu.dot_dimension_numbers<[1], [0], [0], [1], [0, 0, 1, 1], [], []>} : vector<16x32xf32>, vector<32x96xf32>, vector<16x96xf32> -> vector<16x96xf32>
    %26 = vector.broadcast %17 : vector<1x96xf32> to vector<16x96xf32>
    %27 = arith.addf %25, %26 : vector<16x96xf32>
    %28 = vector.extract_strided_slice %27 {offsets = [0, 64], sizes = [16, 32], strides = [1, 1]} : vector<16x96xf32> to vector<16x32xf32>
    %cst_22 = arith.constant 0.000000e+00 : f32
    %29 = vector.broadcast %cst_22 : f32 to vector<16x32xf32>
    %30 = vector.extract_strided_slice %27 {offsets = [0, 0], sizes = [16, 8], strides = [1, 1]} : vector<16x96xf32> to vector<16x8xf32>
    %31 = vector.extract_strided_slice %27 {offsets = [0, 32], sizes = [16, 8], strides = [1, 1]} : vector<16x96xf32> to vector<16x8xf32>
    %cst_23 = arith.constant dense<0.000000e+00> : vector<16x16xf32>
    %32 = tpu.matmul %30, %31, %cst_23 {dimension_numbers = #tpu.dot_dimension_numbers<[1], [1], [0], [0], [0, 0, 1, 0], [], []>} : vector<16x8xf32>, vector<16x8xf32>, vector<16x16xf32> -> vector<16x16xf32>
    %33 = arith.addf %32, %2 : vector<16x16xf32>
    %cst_24 = arith.constant dense<0xFF800000> : vector<16xf32>
    %34 = vector.multi_reduction <maximumf>, %33, %cst_24 [1] : vector<16x16xf32> to vector<16xf32>
    %35 = vector.shape_cast %34 : vector<16xf32> to vector<16x1xf32>
    %36 = vector.broadcast %35 : vector<16x1xf32> to vector<16x16xf32>
    %37 = arith.subf %33, %36 : vector<16x16xf32>
    %38 = math.exp %37 : vector<16x16xf32>
    %cst_25 = arith.constant dense<0.000000e+00> : vector<16xf32>
    %39 = vector.multi_reduction <add>, %38, %cst_25 [1] : vector<16x16xf32> to vector<16xf32>
    %40 = vector.shape_cast %39 : vector<16xf32> to vector<16x1xf32>
    %41 = tpu.reciprocal %40 {approx = true} : vector<16x1xf32> -> vector<16x1xf32>
    %42 = vector.broadcast %41 : vector<16x1xf32> to vector<16x16xf32>
    %43 = arith.mulf %38, %42 : vector<16x16xf32>
    %44 = vector.broadcast %4 : vector<1x32xf32> to vector<16x32xf32>
    %45 = arith.mulf %28, %44 : vector<16x32xf32>
    %cst_26 = arith.constant dense<0.000000e+00> : vector<16x32xf32>
    %46 = tpu.matmul %43, %45, %cst_26 {dimension_numbers = #tpu.dot_dimension_numbers<[1], [0], [0], [1], [0, 0, 1, 1], [], []>} : vector<16x16xf32>, vector<16x32xf32>, vector<16x32xf32> -> vector<16x32xf32>
    %47 = arith.addf %29, %46 : vector<16x32xf32>
    %48 = vector.extract_strided_slice %27 {offsets = [0, 8], sizes = [16, 8], strides = [1, 1]} : vector<16x96xf32> to vector<16x8xf32>
    %49 = vector.extract_strided_slice %27 {offsets = [0, 40], sizes = [16, 8], strides = [1, 1]} : vector<16x96xf32> to vector<16x8xf32>
    %cst_27 = arith.constant dense<0.000000e+00> : vector<16x16xf32>
    %50 = tpu.matmul %48, %49, %cst_27 {dimension_numbers = #tpu.dot_dimension_numbers<[1], [1], [0], [0], [0, 0, 1, 0], [], []>} : vector<16x8xf32>, vector<16x8xf32>, vector<16x16xf32> -> vector<16x16xf32>
    %51 = arith.addf %50, %2 : vector<16x16xf32>
    %cst_28 = arith.constant dense<0xFF800000> : vector<16xf32>
    %52 = vector.multi_reduction <maximumf>, %51, %cst_28 [1] : vector<16x16xf32> to vector<16xf32>
    %53 = vector.shape_cast %52 : vector<16xf32> to vector<16x1xf32>
    %54 = vector.broadcast %53 : vector<16x1xf32> to vector<16x16xf32>
    %55 = arith.subf %51, %54 : vector<16x16xf32>
    %56 = math.exp %55 : vector<16x16xf32>
    %cst_29 = arith.constant dense<0.000000e+00> : vector<16xf32>
    %57 = vector.multi_reduction <add>, %56, %cst_29 [1] : vector<16x16xf32> to vector<16xf32>
    %58 = vector.shape_cast %57 : vector<16xf32> to vector<16x1xf32>
    %59 = tpu.reciprocal %58 {approx = true} : vector<16x1xf32> -> vector<16x1xf32>
    %60 = vector.broadcast %59 : vector<16x1xf32> to vector<16x16xf32>
    %61 = arith.mulf %56, %60 : vector<16x16xf32>
    %62 = vector.broadcast %5 : vector<1x32xf32> to vector<16x32xf32>
    %63 = arith.mulf %28, %62 : vector<16x32xf32>
    %cst_30 = arith.constant dense<0.000000e+00> : vector<16x32xf32>
    %64 = tpu.matmul %61, %63, %cst_30 {dimension_numbers = #tpu.dot_dimension_numbers<[1], [0], [0], [1], [0, 0, 1, 1], [], []>} : vector<16x16xf32>, vector<16x32xf32>, vector<16x32xf32> -> vector<16x32xf32>
    %65 = arith.addf %47, %64 : vector<16x32xf32>
    %66 = vector.extract_strided_slice %27 {offsets = [0, 16], sizes = [16, 8], strides = [1, 1]} : vector<16x96xf32> to vector<16x8xf32>
    %67 = vector.extract_strided_slice %27 {offsets = [0, 48], sizes = [16, 8], strides = [1, 1]} : vector<16x96xf32> to vector<16x8xf32>
    %cst_31 = arith.constant dense<0.000000e+00> : vector<16x16xf32>
    %68 = tpu.matmul %66, %67, %cst_31 {dimension_numbers = #tpu.dot_dimension_numbers<[1], [1], [0], [0], [0, 0, 1, 0], [], []>} : vector<16x8xf32>, vector<16x8xf32>, vector<16x16xf32> -> vector<16x16xf32>
    %69 = arith.addf %68, %2 : vector<16x16xf32>
    %cst_32 = arith.constant dense<0xFF800000> : vector<16xf32>
    %70 = vector.multi_reduction <maximumf>, %69, %cst_32 [1] : vector<16x16xf32> to vector<16xf32>
    %71 = vector.shape_cast %70 : vector<16xf32> to vector<16x1xf32>
    %72 = vector.broadcast %71 : vector<16x1xf32> to vector<16x16xf32>
    %73 = arith.subf %69, %72 : vector<16x16xf32>
    %74 = math.exp %73 : vector<16x16xf32>
    %cst_33 = arith.constant dense<0.000000e+00> : vector<16xf32>
    %75 = vector.multi_reduction <add>, %74, %cst_33 [1] : vector<16x16xf32> to vector<16xf32>
    %76 = vector.shape_cast %75 : vector<16xf32> to vector<16x1xf32>
    %77 = tpu.reciprocal %76 {approx = true} : vector<16x1xf32> -> vector<16x1xf32>
    %78 = vector.broadcast %77 : vector<16x1xf32> to vector<16x16xf32>
    %79 = arith.mulf %74, %78 : vector<16x16xf32>
    %80 = vector.broadcast %6 : vector<1x32xf32> to vector<16x32xf32>
    %81 = arith.mulf %28, %80 : vector<16x32xf32>
    %cst_34 = arith.constant dense<0.000000e+00> : vector<16x32xf32>
    %82 = tpu.matmul %79, %81, %cst_34 {dimension_numbers = #tpu.dot_dimension_numbers<[1], [0], [0], [1], [0, 0, 1, 1], [], []>} : vector<16x16xf32>, vector<16x32xf32>, vector<16x32xf32> -> vector<16x32xf32>
    %83 = arith.addf %65, %82 : vector<16x32xf32>
    %84 = vector.extract_strided_slice %27 {offsets = [0, 24], sizes = [16, 8], strides = [1, 1]} : vector<16x96xf32> to vector<16x8xf32>
    %85 = vector.extract_strided_slice %27 {offsets = [0, 56], sizes = [16, 8], strides = [1, 1]} : vector<16x96xf32> to vector<16x8xf32>
    %cst_35 = arith.constant dense<0.000000e+00> : vector<16x16xf32>
    %86 = tpu.matmul %84, %85, %cst_35 {dimension_numbers = #tpu.dot_dimension_numbers<[1], [1], [0], [0], [0, 0, 1, 0], [], []>} : vector<16x8xf32>, vector<16x8xf32>, vector<16x16xf32> -> vector<16x16xf32>
    %87 = arith.addf %86, %2 : vector<16x16xf32>
    %cst_36 = arith.constant dense<0xFF800000> : vector<16xf32>
    %88 = vector.multi_reduction <maximumf>, %87, %cst_36 [1] : vector<16x16xf32> to vector<16xf32>
    %89 = vector.shape_cast %88 : vector<16xf32> to vector<16x1xf32>
    %90 = vector.broadcast %89 : vector<16x1xf32> to vector<16x16xf32>
    %91 = arith.subf %87, %90 : vector<16x16xf32>
    %92 = math.exp %91 : vector<16x16xf32>
    %cst_37 = arith.constant dense<0.000000e+00> : vector<16xf32>
    %93 = vector.multi_reduction <add>, %92, %cst_37 [1] : vector<16x16xf32> to vector<16xf32>
    %94 = vector.shape_cast %93 : vector<16xf32> to vector<16x1xf32>
    %95 = tpu.reciprocal %94 {approx = true} : vector<16x1xf32> -> vector<16x1xf32>
    %96 = vector.broadcast %95 : vector<16x1xf32> to vector<16x16xf32>
    %97 = arith.mulf %92, %96 : vector<16x16xf32>
    %98 = vector.broadcast %7 : vector<1x32xf32> to vector<16x32xf32>
    %99 = arith.mulf %28, %98 : vector<16x32xf32>
    %cst_38 = arith.constant dense<0.000000e+00> : vector<16x32xf32>
    %100 = tpu.matmul %97, %99, %cst_38 {dimension_numbers = #tpu.dot_dimension_numbers<[1], [0], [0], [1], [0, 0, 1, 1], [], []>} : vector<16x16xf32>, vector<16x32xf32>, vector<16x32xf32> -> vector<16x32xf32>
    %101 = arith.addf %83, %100 : vector<16x32xf32>
    %cst_39 = arith.constant dense<0.000000e+00> : vector<16x32xf32>
    %102 = tpu.matmul %101, %14, %cst_39 {dimension_numbers = #tpu.dot_dimension_numbers<[1], [0], [0], [1], [0, 0, 1, 1], [], []>} : vector<16x32xf32>, vector<32x32xf32>, vector<16x32xf32> -> vector<16x32xf32>
    %103 = vector.broadcast %18 : vector<1x32xf32> to vector<16x32xf32>
    %104 = arith.addf %102, %103 : vector<16x32xf32>
    %105 = arith.addf %12, %104 : vector<16x32xf32>
    %cst_40 = arith.constant dense<0.000000e+00> : vector<16xf32>
    %106 = vector.multi_reduction <add>, %105, %cst_40 [1] : vector<16x32xf32> to vector<16xf32>
    %107 = vector.shape_cast %106 : vector<16xf32> to vector<16x1xf32>
    %cst_41 = arith.constant 3.200000e+01 : f32
    %108 = vector.broadcast %cst_41 : f32 to vector<16x1xf32>
    %109 = arith.divf %107, %108 : vector<16x1xf32>
    %110 = vector.broadcast %109 : vector<16x1xf32> to vector<16x32xf32>
    %111 = arith.subf %105, %110 : vector<16x32xf32>
    %112 = arith.mulf %111, %111 : vector<16x32xf32>
    %cst_42 = arith.constant dense<0.000000e+00> : vector<16xf32>
    %113 = vector.multi_reduction <add>, %112, %cst_42 [1] : vector<16x32xf32> to vector<16xf32>
    %114 = vector.shape_cast %113 : vector<16xf32> to vector<16x1xf32>
    %cst_43 = arith.constant 3.200000e+01 : f32
    %115 = vector.broadcast %cst_43 : f32 to vector<16x1xf32>
    %116 = arith.divf %114, %115 : vector<16x1xf32>
    %117 = vector.broadcast %109 : vector<16x1xf32> to vector<16x32xf32>
    %118 = arith.subf %105, %117 : vector<16x32xf32>
    %cst_44 = arith.constant 9.99999974E-6 : f32
    %119 = vector.broadcast %cst_44 : f32 to vector<16x1xf32>
    %120 = arith.addf %116, %119 : vector<16x1xf32>
    %121 = math.rsqrt %120 : vector<16x1xf32>
    %122 = vector.broadcast %121 : vector<16x1xf32> to vector<16x32xf32>
    %123 = arith.mulf %118, %122 : vector<16x32xf32>
    %124 = vector.broadcast %21 : vector<1x32xf32> to vector<16x32xf32>
    %125 = arith.mulf %123, %124 : vector<16x32xf32>
    %126 = vector.broadcast %22 : vector<1x32xf32> to vector<16x32xf32>
    %127 = arith.addf %125, %126 : vector<16x32xf32>
    %cst_45 = arith.constant dense<0.000000e+00> : vector<16x64xf32>
    %128 = tpu.matmul %127, %15, %cst_45 {dimension_numbers = #tpu.dot_dimension_numbers<[1], [0], [0], [1], [0, 0, 1, 1], [], []>} : vector<16x32xf32>, vector<32x64xf32>, vector<16x64xf32> -> vector<16x64xf32>
    %129 = vector.broadcast %19 : vector<1x64xf32> to vector<16x64xf32>
    %130 = arith.addf %128, %129 : vector<16x64xf32>
    %cst_46 = arith.constant 0.000000e+00 : f32
    %131 = vector.broadcast %cst_46 : f32 to vector<16x64xf32>
    %132 = arith.maximumf %130, %131 : vector<16x64xf32>
    %cst_47 = arith.constant dense<0.000000e+00> : vector<16x32xf32>
    %133 = tpu.matmul %132, %16, %cst_47 {dimension_numbers = #tpu.dot_dimension_numbers<[1], [0], [0], [1], [0, 0, 1, 1], [], []>} : vector<16x64xf32>, vector<64x32xf32>, vector<16x32xf32> -> vector<16x32xf32>
    %134 = vector.broadcast %20 : vector<1x32xf32> to vector<16x32xf32>
    %135 = arith.addf %133, %134 : vector<16x32xf32>
    %136 = arith.addf %127, %135 : vector<16x32xf32>
    %cst_48 = arith.constant dense<0.000000e+00> : vector<16xf32>
    %137 = vector.multi_reduction <add>, %136, %cst_48 [1] : vector<16x32xf32> to vector<16xf32>
    %138 = vector.shape_cast %137 : vector<16xf32> to vector<16x1xf32>
    %cst_49 = arith.constant 3.200000e+01 : f32
    %139 = vector.broadcast %cst_49 : f32 to vector<16x1xf32>
    %140 = arith.divf %138, %139 : vector<16x1xf32>
    %141 = vector.broadcast %140 : vector<16x1xf32> to vector<16x32xf32>
    %142 = arith.subf %136, %141 : vector<16x32xf32>
    %143 = arith.mulf %142, %142 : vector<16x32xf32>
    %cst_50 = arith.constant dense<0.000000e+00> : vector<16xf32>
    %144 = vector.multi_reduction <add>, %143, %cst_50 [1] : vector<16x32xf32> to vector<16xf32>
    %145 = vector.shape_cast %144 : vector<16xf32> to vector<16x1xf32>
    %cst_51 = arith.constant 3.200000e+01 : f32
    %146 = vector.broadcast %cst_51 : f32 to vector<16x1xf32>
    %147 = arith.divf %145, %146 : vector<16x1xf32>
    %148 = vector.broadcast %140 : vector<16x1xf32> to vector<16x32xf32>
    %149 = arith.subf %136, %148 : vector<16x32xf32>
    %cst_52 = arith.constant 9.99999974E-6 : f32
    %150 = vector.broadcast %cst_52 : f32 to vector<16x1xf32>
    %151 = arith.addf %147, %150 : vector<16x1xf32>
    %152 = math.rsqrt %151 : vector<16x1xf32>
    %153 = vector.broadcast %152 : vector<16x1xf32> to vector<16x32xf32>
    %154 = arith.mulf %149, %153 : vector<16x32xf32>
    %155 = vector.broadcast %23 : vector<1x32xf32> to vector<16x32xf32>
    %156 = arith.mulf %154, %155 : vector<16x32xf32>
    %157 = vector.broadcast %24 : vector<1x32xf32> to vector<16x32xf32>
    %158 = arith.addf %156, %157 : vector<16x32xf32>
    %c168 = arith.constant 168 : index
    %c0_53 = arith.constant 0 : index
    %159 = vector.load %arg2[%c168, %c0_53] : memref<392x128xf32, #tpu.memory_space<vmem>>, vector<32x96xf32>
    %c200 = arith.constant 200 : index
    %c0_54 = arith.constant 0 : index
    %160 = vector.load %arg2[%c200, %c0_54] : memref<392x128xf32, #tpu.memory_space<vmem>>, vector<32x32xf32>
    %c232 = arith.constant 232 : index
    %c0_55 = arith.constant 0 : index
    %161 = vector.load %arg2[%c232, %c0_55] : memref<392x128xf32, #tpu.memory_space<vmem>>, vector<32x64xf32>
    %c264 = arith.constant 264 : index
    %c0_56 = arith.constant 0 : index
    %162 = vector.load %arg2[%c264, %c0_56] : memref<392x128xf32, #tpu.memory_space<vmem>>, vector<64x32xf32>
    %c328 = arith.constant 328 : index
    %c0_57 = arith.constant 0 : index
    %163 = vector.load %arg2[%c328, %c0_57] : memref<392x128xf32, #tpu.memory_space<vmem>>, vector<1x96xf32>
    %c329 = arith.constant 329 : index
    %c0_58 = arith.constant 0 : index
    %164 = vector.load %arg2[%c329, %c0_58] : memref<392x128xf32, #tpu.memory_space<vmem>>, vector<1x32xf32>
    %c330 = arith.constant 330 : index
    %c0_59 = arith.constant 0 : index
    %165 = vector.load %arg2[%c330, %c0_59] : memref<392x128xf32, #tpu.memory_space<vmem>>, vector<1x64xf32>
    %c331 = arith.constant 331 : index
    %c0_60 = arith.constant 0 : index
    %166 = vector.load %arg2[%c331, %c0_60] : memref<392x128xf32, #tpu.memory_space<vmem>>, vector<1x32xf32>
    %c332 = arith.constant 332 : index
    %c0_61 = arith.constant 0 : index
    %167 = vector.load %arg2[%c332, %c0_61] : memref<392x128xf32, #tpu.memory_space<vmem>>, vector<1x32xf32>
    %c333 = arith.constant 333 : index
    %c0_62 = arith.constant 0 : index
    %168 = vector.load %arg2[%c333, %c0_62] : memref<392x128xf32, #tpu.memory_space<vmem>>, vector<1x32xf32>
    %c334 = arith.constant 334 : index
    %c0_63 = arith.constant 0 : index
    %169 = vector.load %arg2[%c334, %c0_63] : memref<392x128xf32, #tpu.memory_space<vmem>>, vector<1x32xf32>
    %c335 = arith.constant 335 : index
    %c0_64 = arith.constant 0 : index
    %170 = vector.load %arg2[%c335, %c0_64] : memref<392x128xf32, #tpu.memory_space<vmem>>, vector<1x32xf32>
    %cst_65 = arith.constant dense<0.000000e+00> : vector<16x96xf32>
    %171 = tpu.matmul %158, %159, %cst_65 {dimension_numbers = #tpu.dot_dimension_numbers<[1], [0], [0], [1], [0, 0, 1, 1], [], []>} : vector<16x32xf32>, vector<32x96xf32>, vector<16x96xf32> -> vector<16x96xf32>
    %172 = vector.broadcast %163 : vector<1x96xf32> to vector<16x96xf32>
    %173 = arith.addf %171, %172 : vector<16x96xf32>
    %174 = vector.extract_strided_slice %173 {offsets = [0, 64], sizes = [16, 32], strides = [1, 1]} : vector<16x96xf32> to vector<16x32xf32>
    %cst_66 = arith.constant 0.000000e+00 : f32
    %175 = vector.broadcast %cst_66 : f32 to vector<16x32xf32>
    %176 = vector.extract_strided_slice %173 {offsets = [0, 0], sizes = [16, 8], strides = [1, 1]} : vector<16x96xf32> to vector<16x8xf32>
    %177 = vector.extract_strided_slice %173 {offsets = [0, 32], sizes = [16, 8], strides = [1, 1]} : vector<16x96xf32> to vector<16x8xf32>
    %cst_67 = arith.constant dense<0.000000e+00> : vector<16x16xf32>
    %178 = tpu.matmul %176, %177, %cst_67 {dimension_numbers = #tpu.dot_dimension_numbers<[1], [1], [0], [0], [0, 0, 1, 0], [], []>} : vector<16x8xf32>, vector<16x8xf32>, vector<16x16xf32> -> vector<16x16xf32>
    %179 = arith.addf %178, %2 : vector<16x16xf32>
    %cst_68 = arith.constant dense<0xFF800000> : vector<16xf32>
    %180 = vector.multi_reduction <maximumf>, %179, %cst_68 [1] : vector<16x16xf32> to vector<16xf32>
    %181 = vector.shape_cast %180 : vector<16xf32> to vector<16x1xf32>
    %182 = vector.broadcast %181 : vector<16x1xf32> to vector<16x16xf32>
    %183 = arith.subf %179, %182 : vector<16x16xf32>
    %184 = math.exp %183 : vector<16x16xf32>
    %cst_69 = arith.constant dense<0.000000e+00> : vector<16xf32>
    %185 = vector.multi_reduction <add>, %184, %cst_69 [1] : vector<16x16xf32> to vector<16xf32>
    %186 = vector.shape_cast %185 : vector<16xf32> to vector<16x1xf32>
    %187 = tpu.reciprocal %186 {approx = true} : vector<16x1xf32> -> vector<16x1xf32>
    %188 = vector.broadcast %187 : vector<16x1xf32> to vector<16x16xf32>
    %189 = arith.mulf %184, %188 : vector<16x16xf32>
    %190 = vector.broadcast %4 : vector<1x32xf32> to vector<16x32xf32>
    %191 = arith.mulf %174, %190 : vector<16x32xf32>
    %cst_70 = arith.constant dense<0.000000e+00> : vector<16x32xf32>
    %192 = tpu.matmul %189, %191, %cst_70 {dimension_numbers = #tpu.dot_dimension_numbers<[1], [0], [0], [1], [0, 0, 1, 1], [], []>} : vector<16x16xf32>, vector<16x32xf32>, vector<16x32xf32> -> vector<16x32xf32>
    %193 = arith.addf %175, %192 : vector<16x32xf32>
    %194 = vector.extract_strided_slice %173 {offsets = [0, 8], sizes = [16, 8], strides = [1, 1]} : vector<16x96xf32> to vector<16x8xf32>
    %195 = vector.extract_strided_slice %173 {offsets = [0, 40], sizes = [16, 8], strides = [1, 1]} : vector<16x96xf32> to vector<16x8xf32>
    %cst_71 = arith.constant dense<0.000000e+00> : vector<16x16xf32>
    %196 = tpu.matmul %194, %195, %cst_71 {dimension_numbers = #tpu.dot_dimension_numbers<[1], [1], [0], [0], [0, 0, 1, 0], [], []>} : vector<16x8xf32>, vector<16x8xf32>, vector<16x16xf32> -> vector<16x16xf32>
    %197 = arith.addf %196, %2 : vector<16x16xf32>
    %cst_72 = arith.constant dense<0xFF800000> : vector<16xf32>
    %198 = vector.multi_reduction <maximumf>, %197, %cst_72 [1] : vector<16x16xf32> to vector<16xf32>
    %199 = vector.shape_cast %198 : vector<16xf32> to vector<16x1xf32>
    %200 = vector.broadcast %199 : vector<16x1xf32> to vector<16x16xf32>
    %201 = arith.subf %197, %200 : vector<16x16xf32>
    %202 = math.exp %201 : vector<16x16xf32>
    %cst_73 = arith.constant dense<0.000000e+00> : vector<16xf32>
    %203 = vector.multi_reduction <add>, %202, %cst_73 [1] : vector<16x16xf32> to vector<16xf32>
    %204 = vector.shape_cast %203 : vector<16xf32> to vector<16x1xf32>
    %205 = tpu.reciprocal %204 {approx = true} : vector<16x1xf32> -> vector<16x1xf32>
    %206 = vector.broadcast %205 : vector<16x1xf32> to vector<16x16xf32>
    %207 = arith.mulf %202, %206 : vector<16x16xf32>
    %208 = vector.broadcast %5 : vector<1x32xf32> to vector<16x32xf32>
    %209 = arith.mulf %174, %208 : vector<16x32xf32>
    %cst_74 = arith.constant dense<0.000000e+00> : vector<16x32xf32>
    %210 = tpu.matmul %207, %209, %cst_74 {dimension_numbers = #tpu.dot_dimension_numbers<[1], [0], [0], [1], [0, 0, 1, 1], [], []>} : vector<16x16xf32>, vector<16x32xf32>, vector<16x32xf32> -> vector<16x32xf32>
    %211 = arith.addf %193, %210 : vector<16x32xf32>
    %212 = vector.extract_strided_slice %173 {offsets = [0, 16], sizes = [16, 8], strides = [1, 1]} : vector<16x96xf32> to vector<16x8xf32>
    %213 = vector.extract_strided_slice %173 {offsets = [0, 48], sizes = [16, 8], strides = [1, 1]} : vector<16x96xf32> to vector<16x8xf32>
    %cst_75 = arith.constant dense<0.000000e+00> : vector<16x16xf32>
    %214 = tpu.matmul %212, %213, %cst_75 {dimension_numbers = #tpu.dot_dimension_numbers<[1], [1], [0], [0], [0, 0, 1, 0], [], []>} : vector<16x8xf32>, vector<16x8xf32>, vector<16x16xf32> -> vector<16x16xf32>
    %215 = arith.addf %214, %2 : vector<16x16xf32>
    %cst_76 = arith.constant dense<0xFF800000> : vector<16xf32>
    %216 = vector.multi_reduction <maximumf>, %215, %cst_76 [1] : vector<16x16xf32> to vector<16xf32>
    %217 = vector.shape_cast %216 : vector<16xf32> to vector<16x1xf32>
    %218 = vector.broadcast %217 : vector<16x1xf32> to vector<16x16xf32>
    %219 = arith.subf %215, %218 : vector<16x16xf32>
    %220 = math.exp %219 : vector<16x16xf32>
    %cst_77 = arith.constant dense<0.000000e+00> : vector<16xf32>
    %221 = vector.multi_reduction <add>, %220, %cst_77 [1] : vector<16x16xf32> to vector<16xf32>
    %222 = vector.shape_cast %221 : vector<16xf32> to vector<16x1xf32>
    %223 = tpu.reciprocal %222 {approx = true} : vector<16x1xf32> -> vector<16x1xf32>
    %224 = vector.broadcast %223 : vector<16x1xf32> to vector<16x16xf32>
    %225 = arith.mulf %220, %224 : vector<16x16xf32>
    %226 = vector.broadcast %6 : vector<1x32xf32> to vector<16x32xf32>
    %227 = arith.mulf %174, %226 : vector<16x32xf32>
    %cst_78 = arith.constant dense<0.000000e+00> : vector<16x32xf32>
    %228 = tpu.matmul %225, %227, %cst_78 {dimension_numbers = #tpu.dot_dimension_numbers<[1], [0], [0], [1], [0, 0, 1, 1], [], []>} : vector<16x16xf32>, vector<16x32xf32>, vector<16x32xf32> -> vector<16x32xf32>
    %229 = arith.addf %211, %228 : vector<16x32xf32>
    %230 = vector.extract_strided_slice %173 {offsets = [0, 24], sizes = [16, 8], strides = [1, 1]} : vector<16x96xf32> to vector<16x8xf32>
    %231 = vector.extract_strided_slice %173 {offsets = [0, 56], sizes = [16, 8], strides = [1, 1]} : vector<16x96xf32> to vector<16x8xf32>
    %cst_79 = arith.constant dense<0.000000e+00> : vector<16x16xf32>
    %232 = tpu.matmul %230, %231, %cst_79 {dimension_numbers = #tpu.dot_dimension_numbers<[1], [1], [0], [0], [0, 0, 1, 0], [], []>} : vector<16x8xf32>, vector<16x8xf32>, vector<16x16xf32> -> vector<16x16xf32>
    %233 = arith.addf %232, %2 : vector<16x16xf32>
    %cst_80 = arith.constant dense<0xFF800000> : vector<16xf32>
    %234 = vector.multi_reduction <maximumf>, %233, %cst_80 [1] : vector<16x16xf32> to vector<16xf32>
    %235 = vector.shape_cast %234 : vector<16xf32> to vector<16x1xf32>
    %236 = vector.broadcast %235 : vector<16x1xf32> to vector<16x16xf32>
    %237 = arith.subf %233, %236 : vector<16x16xf32>
    %238 = math.exp %237 : vector<16x16xf32>
    %cst_81 = arith.constant dense<0.000000e+00> : vector<16xf32>
    %239 = vector.multi_reduction <add>, %238, %cst_81 [1] : vector<16x16xf32> to vector<16xf32>
    %240 = vector.shape_cast %239 : vector<16xf32> to vector<16x1xf32>
    %241 = tpu.reciprocal %240 {approx = true} : vector<16x1xf32> -> vector<16x1xf32>
    %242 = vector.broadcast %241 : vector<16x1xf32> to vector<16x16xf32>
    %243 = arith.mulf %238, %242 : vector<16x16xf32>
    %244 = vector.broadcast %7 : vector<1x32xf32> to vector<16x32xf32>
    %245 = arith.mulf %174, %244 : vector<16x32xf32>
    %cst_82 = arith.constant dense<0.000000e+00> : vector<16x32xf32>
    %246 = tpu.matmul %243, %245, %cst_82 {dimension_numbers = #tpu.dot_dimension_numbers<[1], [0], [0], [1], [0, 0, 1, 1], [], []>} : vector<16x16xf32>, vector<16x32xf32>, vector<16x32xf32> -> vector<16x32xf32>
    %247 = arith.addf %229, %246 : vector<16x32xf32>
    %cst_83 = arith.constant dense<0.000000e+00> : vector<16x32xf32>
    %248 = tpu.matmul %247, %160, %cst_83 {dimension_numbers = #tpu.dot_dimension_numbers<[1], [0], [0], [1], [0, 0, 1, 1], [], []>} : vector<16x32xf32>, vector<32x32xf32>, vector<16x32xf32> -> vector<16x32xf32>
    %249 = vector.broadcast %164 : vector<1x32xf32> to vector<16x32xf32>
    %250 = arith.addf %248, %249 : vector<16x32xf32>
    %251 = arith.addf %158, %250 : vector<16x32xf32>
    %cst_84 = arith.constant dense<0.000000e+00> : vector<16xf32>
    %252 = vector.multi_reduction <add>, %251, %cst_84 [1] : vector<16x32xf32> to vector<16xf32>
    %253 = vector.shape_cast %252 : vector<16xf32> to vector<16x1xf32>
    %cst_85 = arith.constant 3.200000e+01 : f32
    %254 = vector.broadcast %cst_85 : f32 to vector<16x1xf32>
    %255 = arith.divf %253, %254 : vector<16x1xf32>
    %256 = vector.broadcast %255 : vector<16x1xf32> to vector<16x32xf32>
    %257 = arith.subf %251, %256 : vector<16x32xf32>
    %258 = arith.mulf %257, %257 : vector<16x32xf32>
    %cst_86 = arith.constant dense<0.000000e+00> : vector<16xf32>
    %259 = vector.multi_reduction <add>, %258, %cst_86 [1] : vector<16x32xf32> to vector<16xf32>
    %260 = vector.shape_cast %259 : vector<16xf32> to vector<16x1xf32>
    %cst_87 = arith.constant 3.200000e+01 : f32
    %261 = vector.broadcast %cst_87 : f32 to vector<16x1xf32>
    %262 = arith.divf %260, %261 : vector<16x1xf32>
    %263 = vector.broadcast %255 : vector<16x1xf32> to vector<16x32xf32>
    %264 = arith.subf %251, %263 : vector<16x32xf32>
    %cst_88 = arith.constant 9.99999974E-6 : f32
    %265 = vector.broadcast %cst_88 : f32 to vector<16x1xf32>
    %266 = arith.addf %262, %265 : vector<16x1xf32>
    %267 = math.rsqrt %266 : vector<16x1xf32>
    %268 = vector.broadcast %267 : vector<16x1xf32> to vector<16x32xf32>
    %269 = arith.mulf %264, %268 : vector<16x32xf32>
    %270 = vector.broadcast %167 : vector<1x32xf32> to vector<16x32xf32>
    %271 = arith.mulf %269, %270 : vector<16x32xf32>
    %272 = vector.broadcast %168 : vector<1x32xf32> to vector<16x32xf32>
    %273 = arith.addf %271, %272 : vector<16x32xf32>
    %cst_89 = arith.constant dense<0.000000e+00> : vector<16x64xf32>
    %274 = tpu.matmul %273, %161, %cst_89 {dimension_numbers = #tpu.dot_dimension_numbers<[1], [0], [0], [1], [0, 0, 1, 1], [], []>} : vector<16x32xf32>, vector<32x64xf32>, vector<16x64xf32> -> vector<16x64xf32>
    %275 = vector.broadcast %165 : vector<1x64xf32> to vector<16x64xf32>
    %276 = arith.addf %274, %275 : vector<16x64xf32>
    %cst_90 = arith.constant 0.000000e+00 : f32
    %277 = vector.broadcast %cst_90 : f32 to vector<16x64xf32>
    %278 = arith.maximumf %276, %277 : vector<16x64xf32>
    %cst_91 = arith.constant dense<0.000000e+00> : vector<16x32xf32>
    %279 = tpu.matmul %278, %162, %cst_91 {dimension_numbers = #tpu.dot_dimension_numbers<[1], [0], [0], [1], [0, 0, 1, 1], [], []>} : vector<16x64xf32>, vector<64x32xf32>, vector<16x32xf32> -> vector<16x32xf32>
    %280 = vector.broadcast %166 : vector<1x32xf32> to vector<16x32xf32>
    %281 = arith.addf %279, %280 : vector<16x32xf32>
    %282 = arith.addf %273, %281 : vector<16x32xf32>
    %cst_92 = arith.constant dense<0.000000e+00> : vector<16xf32>
    %283 = vector.multi_reduction <add>, %282, %cst_92 [1] : vector<16x32xf32> to vector<16xf32>
    %284 = vector.shape_cast %283 : vector<16xf32> to vector<16x1xf32>
    %cst_93 = arith.constant 3.200000e+01 : f32
    %285 = vector.broadcast %cst_93 : f32 to vector<16x1xf32>
    %286 = arith.divf %284, %285 : vector<16x1xf32>
    %287 = vector.broadcast %286 : vector<16x1xf32> to vector<16x32xf32>
    %288 = arith.subf %282, %287 : vector<16x32xf32>
    %289 = arith.mulf %288, %288 : vector<16x32xf32>
    %cst_94 = arith.constant dense<0.000000e+00> : vector<16xf32>
    %290 = vector.multi_reduction <add>, %289, %cst_94 [1] : vector<16x32xf32> to vector<16xf32>
    %291 = vector.shape_cast %290 : vector<16xf32> to vector<16x1xf32>
    %cst_95 = arith.constant 3.200000e+01 : f32
    %292 = vector.broadcast %cst_95 : f32 to vector<16x1xf32>
    %293 = arith.divf %291, %292 : vector<16x1xf32>
    %294 = vector.broadcast %286 : vector<16x1xf32> to vector<16x32xf32>
    %295 = arith.subf %282, %294 : vector<16x32xf32>
    %cst_96 = arith.constant 9.99999974E-6 : f32
    %296 = vector.broadcast %cst_96 : f32 to vector<16x1xf32>
    %297 = arith.addf %293, %296 : vector<16x1xf32>
    %298 = math.rsqrt %297 : vector<16x1xf32>
    %299 = vector.broadcast %298 : vector<16x1xf32> to vector<16x32xf32>
    %300 = arith.mulf %295, %299 : vector<16x32xf32>
    %301 = vector.broadcast %169 : vector<1x32xf32> to vector<16x32xf32>
    %302 = arith.mulf %300, %301 : vector<16x32xf32>
    %303 = vector.broadcast %170 : vector<1x32xf32> to vector<16x32xf32>
    %304 = arith.addf %302, %303 : vector<16x32xf32>
    %cst_97 = arith.constant dense<0.000000e+00> : vector<2x32xf32>
    %305 = tpu.matmul %3, %304, %cst_97 {dimension_numbers = #tpu.dot_dimension_numbers<[1], [0], [0], [1], [0, 0, 1, 1], [], []>} : vector<2x16xf32>, vector<16x32xf32>, vector<2x32xf32> -> vector<2x32xf32>
    %c0_98 = arith.constant 0 : index
    %c0_99 = arith.constant 0 : index
    %306 = vector.load %arg3[%c0_98, %c0_99] : memref<2x32xf32, #tpu.memory_space<vmem>>, vector<2x32xf32>
    tpu.vector_store %arg3[%c0_98, %c0_99], %305 {strides = array<i32>} : memref<2x32xf32, #tpu.memory_space<vmem>>, vector<2x32xf32>,
    return
  }
  func.func @transform_0(%arg0: i32) -> (i32, i32) {
    %c0_i32 = arith.constant 0 : i32
    %c0_i32_0 = arith.constant 0 : i32
    %c0_i32_1 = arith.constant 0 : i32
    return %c0_i32, %c0_i32_0 : i32, i32
  }
  func.func @transform_1(%arg0: i32) -> (i32, i32) {
    %c0_i32 = arith.constant 0 : i32
    %c0_i32_0 = arith.constant 0 : i32
    %c0_i32_1 = arith.constant 0 : i32
    return %c0_i32, %c0_i32_0 : i32, i32
  }
  func.func @transform_2(%arg0: i32) -> (i32, i32) {
    %c0_i32 = arith.constant 0 : i32
    %c0_i32_0 = arith.constant 0 : i32
    %c0_i32_1 = arith.constant 0 : i32
    return %c0_i32, %c0_i32_0 : i32, i32
  }
}

</mosaic_0001>

<llo_original>
// kernel: behrt_lab_forward.1
$region0: #{behrt_lab_forward.1}
  #allocation0 [shape = 'u32[]', space=smem, size = 0x4, offset = 0x4, fixed_abs, tag = 'smem constant byte address 0x4 - core index']
  #allocation1 [shape = 'u32[144,128]{1,0:T(1,128)}', space=vmem, size = 0x12000, scoped, tag = 'internal scratch']
  %s0 = inlined_call_operand.vmem [shape: f32[16,1], index: 0, kind: input, shape index: {}]
  %s1 = inlined_call_operand.hbm [shape: f32[392,128], index: 1, kind: input, shape index: {}]
  %s2 = inlined_call_operand.hbm [shape: f32[2,32], index: 2, kind: output, shape index: {}]
  %s3 = sld [smem:[#allocation0]]
  $region22: #{behrt_lab_forward.1} parent=0
    _
  %s5 = ssub.s32 1, %s3
  %s6 = scalar_select 0, %s5, %s3
  $region1: #{behrt_lab_forward.1} parent=0
    #allocation2 [shape = 'u8[200704]{0}', space=vmem, size = 0x31000, scoped, tag = 'input window, operand 1, single buffered']
    #allocation3 [shape = 's32[1]{0}', space=sflag, size = 0x4, scoped, tag = 'scoped memory for behrt_lab_forward.1']
    #allocation4 [shape = 's32[1]{0}', space=sflag, size = 0x4, scoped, tag = 'scoped memory for behrt_lab_forward.1']
    #allocation5 [shape = 'u8[1024]{0}', space=vmem, size = 0x400, scoped, tag = 'output window, operand 0, single buffered']
    %7 = vsyncpa [#allocation3], 0
    %8 = vsyncpa [#allocation4], 0
    // Predicated region
    $region2: #{behrt_lab_forward.1} parent=1 // pred_check
      _
    $region3: #{behrt_lab_forward.1} parent=1 // pred_check_branch
      %10 = sbr.rel (0) target = $region5
    $region4: #{behrt_lab_forward.1} parent=1 // pred_region
      _
    $region5: #{behrt_lab_forward.1} parent=1 // pred_fallthru
      _
    // Predicated region
    $region6: #{behrt_lab_forward.1} parent=1 // pred_check
      _
    $region7: #{behrt_lab_forward.1} parent=1 // pred_check_branch
      %12 = sbr.rel (0) target = $region9
    $region8: #{behrt_lab_forward.1} parent=1 // pred_region
      %s14 = ssub.s32 6272, 6272
      %15 = vsyncadd [#allocation3], %s14
      %s16 = sshll.u32 [#allocation2], 4
      %s17 = int_to_ptr.vmem [resolvable:$true] %s16
      %22 = dma.hbm_to_vmem [thread:$0]  %s1, 6272, %s17, [#allocation3], 128, 128, 8
    $region9: #{behrt_lab_forward.1} parent=1 // pred_fallthru
      _
    // Predicated region
    $region10: #{behrt_lab_forward.1} parent=1 // pred_check
      _
    $region11: #{behrt_lab_forward.1} parent=1 // pred_check_branch
      %24 = sbr.rel (0) target = $region13
    $region12: #{behrt_lab_forward.1} parent=1 // pred_region
      %25 = dma.done [#allocation3], 6272
    $region13: #{behrt_lab_forward.1} parent=1 // pred_fallthru
      _
    %v26 = vld [vmem:[#allocation2 + $0x150] sm:$0xff]
    %v27 = vld [vmem:[#allocation2 + $0x158] sm:$0xff]
    %v28 = vld [vmem:[#allocation2 + $0x160] sm:$0x1]
    %v29 = vld [vmem:[#allocation2 + $0x168] sm:$0xff]
    %v30 = vld [vmem:[#allocation2 + $0x170] sm:$0xff]
    %v31 = vld [vmem:[#allocation2 + $0x178] sm:$0x3]
    %v32 = vld [vmem:[#allocation2 + $0x180] sm:$0x1]
    %v33 = vld [vmem:[#allocation2 + $0x181] sm:$0x1]
    %v34 = vld [vmem:[#allocation2 + $0x182] sm:$0x1]
    %v35 = vld [vmem:[#allocation2 + $0x183] sm:$0x1]
    %v36 = vld [vmem:[%s0] sm:$0xff]
    %v37 = vld [vmem:[%s0 + $0x8] sm:$0xff]
    %39 = vset.pattern.permute.xlu0 0
    %40 = vperm.xlu0 %39, %v36
    %v41 = vpop.permute.xlu0 %40
    %44 = vset.pattern.permute.xlu0 0
    %45 = vperm.xlu0 %44, %v37
    %v46 = vpop.permute.xlu0 %45
    %v48 = vlaneseq
    %v49 = vshrl.u32 %v48, 7
    %v50 = vsub.s32 0, %v49
    %v51 = vrot.slane %v28, %v50
    %v52 = vmul.f32 %v41, %v51
    %v53 = vmul.f32 %v46, %v51
    %v54 = vadd.f32 %v52, %v26
    %v55 = vadd.f32 %v53, %v27
    %v56 = vld [vmem:[#allocation2] sm:$0xff]
    %v57 = vld [vmem:[#allocation2 + $0x8] sm:$0xff]
    %v58 = vld [vmem:[#allocation2 + $0x10] sm:$0xff]
    %v59 = vld [vmem:[#allocation2 + $0x18] sm:$0xff]
    %v60 = vld [vmem:[#allocation2 + $0x20] sm:$0xff]
    %v61 = vld [vmem:[#allocation2 + $0x28] sm:$0xff]
    %v62 = vld [vmem:[#allocation2 + $0x30] sm:$0xff]
    %v63 = vld [vmem:[#allocation2 + $0x38] sm:$0xff]
    %v64 = vld [vmem:[#allocation2 + $0x40] sm:$0xff]
    %v65 = vld [vmem:[#allocation2 + $0x48] sm:$0xff]
    %v66 = vld [vmem:[#allocation2 + $0x50] sm:$0xff]
    %v67 = vld [vmem:[#allocation2 + $0x58] sm:$0xff]
    %v68 = vld [vmem:[#allocation2 + $0x60] sm:$0xff]
    %v69 = vld [vmem:[#allocation2 + $0x68] sm:$0xff]
    %v70 = vld [vmem:[#allocation2 + $0x70] sm:$0xff]
    %v71 = vld [vmem:[#allocation2 + $0x78] sm:$0xff]
    %v72 = vld [vmem:[#allocation2 + $0x80] sm:$0xff]
    %v73 = vld [vmem:[#allocation2 + $0x88] sm:$0xff]
    %v74 = vld [vmem:[#allocation2 + $0x90] sm:$0xff]
    %v75 = vld [vmem:[#allocation2 + $0x98] sm:$0xff]
    %v76 = vld [vmem:[#allocation2 + $0xa0] sm:$0x1]
    %v77 = vld [vmem:[#allocation2 + $0xa1] sm:$0x1]
    %v78 = vld [vmem:[#allocation2 + $0xa2] sm:$0x1]
    %v79 = vld [vmem:[#allocation2 + $0xa3] sm:$0x1]
    %v80 = vld [vmem:[#allocation2 + $0xa4] sm:$0x1]
    %v81 = vld [vmem:[#allocation2 + $0xa5] sm:$0x1]
    %v82 = vld [vmem:[#allocation2 + $0xa6] sm:$0x1]
    %v83 = vld [vmem:[#allocation2 + $0xa7] sm:$0x1]
    %v84 = vlaneseq
    %v85 = vshrl.u32 %v84, 7
    %v86 = vsub.s32 0, %v85
    %v87 = vrot.slane %v76, %v86
    %vm88 = vcmask 261120
    %v90 = vsel %vm88, %v54, 0
    %v93 = vsel %vm88, %v55, 0
    %95 = vmatprep.subr.mxu0 0.0
    %96 = vmatpush1.msra.mxu0 %v56
    %97 = vmatprep.subr.mxu0 0.0
    %98 = vmatpush1.msra.mxu0 %v57
    %99 = vmatprep.subr.mxu0 0.0
    %100 = vmatpush1.msra.mxu0 %v58
    %101 = vmatprep.subr.mxu0 0.0
    %102 = vmatpush1.msra.mxu0 %v59
    %103 = vmatprep.subr.mxu0 0.0
    %104 = vmatpush1.msra.mxu0 0.0
    %105 = vmatprep.subr.mxu0 0.0
    %106 = vmatpush1.msra.mxu0 0.0
    %107 = vmatprep.subr.mxu0 0.0
    %108 = vmatpush1.msra.mxu0 0.0
    %109 = vmatprep.subr.mxu0 0.0
    %110 = vmatpush1.msra.mxu0 0.0
    %111 = vmatprep.subr.mxu0 0.0
    %112 = vmatpush1.msra.mxu0 0.0
    %113 = vmatprep.subr.mxu0 0.0
    %114 = vmatpush1.msra.mxu0 0.0
    %115 = vmatprep.subr.mxu0 0.0
    %116 = vmatpush1.msra.mxu0 0.0
    %117 = vmatprep.subr.mxu0 0.0
    %118 = vmatpush1.msra.mxu0 0.0
    %119 = vmatprep.subr.mxu0 0.0
    %120 = vmatpush1.msra.mxu0 0.0
    %121 = vmatprep.subr.mxu0 0.0
    %122 = vmatpush1.msra.mxu0 0.0
    %123 = vmatprep.subr.mxu0 0.0
    %124 = vmatpush1.msra.mxu0 0.0
    %125 = vmatprep.subr.mxu0 0.0
    %126 = vmatpush1.msra.mxu0 0.0
    %127 = vmatprep.subr.mxu0 0.0
    %128 = vmatpush1.msra.mxu0 0.0
    %129 = vmatprep.subr.mxu0 0.0
    %130 = vmatpush1.msra.mxu0 0.0
    %131 = vmatprep.subr.mxu0 0.0
    %132 = vmatpush1.msra.mxu0 0.0
    %133 = vmatprep.subr.mxu0 0.0
    %134 = vmatpush1.msra.mxu0 0.0
    %135 = vmatprep.subr.mxu0 0.0
    %136 = vmatpush1.msra.mxu0 0.0
    %137 = vmatprep.subr.mxu0 0.0
    %138 = vmatpush1.msra.mxu0 0.0
    %139 = vmatprep.subr.mxu0 0.0
    %140 = vmatpush1.msra.mxu0 0.0
    %141 = vmatprep.subr.mxu0 0.0
    %142 = vmatpush1.msra.mxu0 0.0
    %143 = vmatprep.subr.mxu0 0.0
    %144 = vmatpush1.msra.mxu0 0.0
    %145 = vmatprep.subr.mxu0 0.0
    %146 = vmatpush1.msra.mxu0 0.0
    %147 = vmatprep.subr.mxu0 0.0
    %148 = vmatpush1.msra.mxu0 0.0
    %149 = vmatprep.subr.mxu0 0.0
    %150 = vmatpush1.msra.mxu0 0.0
    %151 = vmatprep.subr.mxu0 0.0
    %152 = vmatpush1.msra.mxu0 0.0
    %153 = vmatprep.subr.mxu0 0.0
    %154 = vmatpush1.msra.mxu0 0.0
    %155 = vmatprep.subr.mxu0 0.0
    %156 = vmatpush1.msra.mxu0 0.0
    %157 = vmatprep.subr.mxu0 0.0
    %158 = vmatpush1.msra.mxu0 0.0
    %159 = vmatprep.mubr.f32.mxu0 0.0
    %160 = vmatmul.mubr.f32.gmra.mrb[0].mxu0 %v90
    %v161 = vpop.f32.mrb[0].mxu0
    %v162 = vadd.f32 %v87, %v161
    %v163 = vpop.f32.mrb[0].mxu0
    %164 = vmatprep.mubr.f32.mxu0 0.0
    %165 = vmatmul.mubr.f32.gmra.mrb[0].mxu0 %v93
    %v166 = vpop.f32.mrb[0].mxu0
    %v167 = vadd.f32 %v87, %v166
    %v168 = vpop.f32.mrb[0].mxu0
    %169 = vdwg.mxu0
    %172 = vrot.lane.b32.xlu0 %v162, 96
    %v173 = vpop.permute.xlu0 %172
    %174 = vrot.lane.b32.xlu0 %v167, 96
    %v175 = vpop.permute.xlu0 %174
    %vm176 = vcmask 64512
    %v177 = vsel %vm176, %v162, 0
    %v179 = vsel %vm176, %v167, 0
    %v181 = vsel %vm176, %v173, 0
    %v183 = vsel %vm176, %v175, 0
    %185 = vmatprep.subr.mxu0 0.0
    %186 = vmatpush1.xpose.msra.mxu0 %v181
    %187 = vmatprep.subr.mxu0 0.0
    %188 = vmatpush1.xpose.msra.mxu0 %v183
    %189 = vmatprep.subr.mxu0 0.0
    %190 = vmatpush1.xpose.msra.mxu0 0.0
    %191 = vmatprep.subr.mxu0 0.0
    %192 = vmatpush1.xpose.msra.mxu0 0.0
    %193 = vmatprep.subr.mxu0 0.0
    %194 = vmatpush1.xpose.msra.mxu0 0.0
    %195 = vmatprep.subr.mxu0 0.0
    %196 = vmatpush1.xpose.msra.mxu0 0.0
    %197 = vmatprep.subr.mxu0 0.0
    %198 = vmatpush1.xpose.msra.mxu0 0.0
    %199 = vmatprep.subr.mxu0 0.0
    %200 = vmatpush1.xpose.msra.mxu0 0.0
    %201 = vmatprep.subr.mxu0 0.0
    %202 = vmatpush1.xpose.msra.mxu0 0.0
    %203 = vmatprep.subr.mxu0 0.0
    %204 = vmatpush1.xpose.msra.mxu0 0.0
    %205 = vmatprep.subr.mxu0 0.0
    %206 = vmatpush1.xpose.msra.mxu0 0.0
    %207 = vmatprep.subr.mxu0 0.0
    %208 = vmatpush1.xpose.msra.mxu0 0.0
    %209 = vmatprep.subr.mxu0 0.0
    %210 = vmatpush1.xpose.msra.mxu0 0.0
    %211 = vmatprep.subr.mxu0 0.0
    %212 = vmatpush1.xpose.msra.mxu0 0.0
    %213 = vmatprep.subr.mxu0 0.0
    %214 = vmatpush1.xpose.msra.mxu0 0.0
    %215 = vmatprep.subr.mxu0 0.0
    %216 = vmatpush1.xpose.msra.mxu0 0.0
    %217 = vmatprep.subr.mxu0 0.0
    %218 = vmatpush1.xpose.msra.mxu0 0.0
    %219 = vmatprep.subr.mxu0 0.0
    %220 = vmatpush1.xpose.msra.mxu0 0.0
    %221 = vmatprep.subr.mxu0 0.0
    %222 = vmatpush1.xpose.msra.mxu0 0.0
    %223 = vmatprep.subr.mxu0 0.0
    %224 = vmatpush1.xpose.msra.mxu0 0.0
    %225 = vmatprep.subr.mxu0 0.0
    %226 = vmatpush1.xpose.msra.mxu0 0.0
    %227 = vmatprep.subr.mxu0 0.0
    %228 = vmatpush1.xpose.msra.mxu0 0.0
    %229 = vmatprep.subr.mxu0 0.0
    %230 = vmatpush1.xpose.msra.mxu0 0.0
    %231 = vmatprep.subr.mxu0 0.0
    %232 = vmatpush1.xpose.msra.mxu0 0.0
    %233 = vmatprep.subr.mxu0 0.0
    %234 = vmatpush1.xpose.msra.mxu0 0.0
    %235 = vmatprep.subr.mxu0 0.0
    %236 = vmatpush1.xpose.msra.mxu0 0.0
    %237 = vmatprep.subr.mxu0 0.0
    %238 = vmatpush1.xpose.msra.mxu0 0.0
    %239 = vmatprep.subr.mxu0 0.0
    %240 = vmatpush1.xpose.msra.mxu0 0.0
    %241 = vmatprep.subr.mxu0 0.0
    %242 = vmatpush1.xpose.msra.mxu0 0.0
    %243 = vmatprep.subr.mxu0 0.0
    %244 = vmatpush1.xpose.msra.mxu0 0.0
    %245 = vmatprep.subr.mxu0 0.0
    %246 = vmatpush1.xpose.msra.mxu0 0.0
    %247 = vmatprep.subr.mxu0 0.0
    %248 = vmatpush1.xpose.msra.mxu0 0.0
    %249 = vmatprep.mubr.f32.mxu0 0.0
    %250 = vmatmul.mubr.f32.gmra.mrb[0].mxu0 %v177
    %v251 = vpop.f32.mrb[0].mxu0
    %v252 = vadd.f32 %v29, %v251
    %v253 = vpop.f32.mrb[0].mxu0
    %254 = vmatprep.mubr.f32.mxu0 0.0
    %255 = vmatmul.mubr.f32.gmra.mrb[0].mxu0 %v179
    %v256 = vpop.f32.mrb[0].mxu0
    %v257 = vadd.f32 %v30, %v256
    %v258 = vpop.f32.mrb[0].mxu0
    %259 = vdwg.mxu0
    %vm260 = vcmask 130048
    %v261 = vsel %vm260, %v252, -inf
    %262 = vmax.xlane.f32.xlu0 %v261
    %v263 = vpop.xlane.xlu0 %262
    %v264 = vsel %vm260, %v257, -inf
    %265 = vmax.xlane.f32.xlu0 %v264
    %v266 = vpop.xlane.xlu0 %265
    %v267 = vsub.f32 %v252, %v263
    %v268 = vsub.f32 %v257, %v266
    %v269 = vmul.f32 %v267, 1.442695
    %v270 = vpow.pop %v269
    %v271 = vmul.f32 %v268, 1.442695
    %v272 = vpow.pop %v271
    %v273 = vsel %vm260, %v270, 0.0
    %274 = vadd.xlane.f32.xlu0 %v273
    %v275 = vpop.xlane.xlu0 %274
    %v276 = vsel %vm260, %v272, 0.0
    %277 = vadd.xlane.f32.xlu0 %v276
    %v278 = vpop.xlane.xlu0 %277
    %v279 = vrcp.pop %v275
    %v280 = vrcp.pop %v278
    %v281 = vmul.f32 %v270, %v279
    %v282 = vmul.f32 %v272, %v280
    %v283 = vlaneseq
    %v284 = vshrl.u32 %v283, 7
    %v285 = vsub.s32 0, %v284
    %v286 = vrot.slane %v32, %v285
    %288 = vrot.lane.b32.xlu0 %v286, 64
    %v289 = vpop.permute.xlu0 %288
    %v291 = vmul.f32 %v162, %v289
    %v292 = vmul.f32 %v167, %v289
    %293 = vrot.lane.b32.xlu0 %v162, 120
    %v294 = vpop.permute.xlu0 %293
    %295 = vrot.lane.b32.xlu0 %v167, 120
    %v296 = vpop.permute.xlu0 %295
    %297 = vrot.lane.b32.xlu0 %v162, 88
    %v298 = vpop.permute.xlu0 %297
    %299 = vrot.lane.b32.xlu0 %v167, 88
    %v300 = vpop.permute.xlu0 %299
    %v301 = vsel %vm176, %v294, 0
    %v303 = vsel %vm176, %v296, 0
    %v305 = vsel %vm176, %v298, 0
    %v307 = vsel %vm176, %v300, 0
    %309 = vmatprep.subr.mxu0 0.0
    %310 = vmatpush1.xpose.msra.mxu0 %v305
    %311 = vmatprep.subr.mxu0 0.0
    %312 = vmatpush1.xpose.msra.mxu0 %v307
    %313 = vmatprep.subr.mxu0 0.0
    %314 = vmatpush1.xpose.msra.mxu0 0.0
    %315 = vmatprep.subr.mxu0 0.0
    %316 = vmatpush1.xpose.msra.mxu0 0.0
    %317 = vmatprep.subr.mxu0 0.0
    %318 = vmatpush1.xpose.msra.mxu0 0.0
    %319 = vmatprep.subr.mxu0 0.0
    %320 = vmatpush1.xpose.msra.mxu0 0.0
    %321 = vmatprep.subr.mxu0 0.0
    %322 = vmatpush1.xpose.msra.mxu0 0.0
    %323 = vmatprep.subr.mxu0 0.0
    %324 = vmatpush1.xpose.msra.mxu0 0.0
    %325 = vmatprep.subr.mxu0 0.0
    %326 = vmatpush1.xpose.msra.mxu0 0.0
    %327 = vmatprep.subr.mxu0 0.0
    %328 = vmatpush1.xpose.msra.mxu0 0.0
    %329 = vmatprep.subr.mxu0 0.0
    %330 = vmatpush1.xpose.msra.mxu0 0.0
    %331 = vmatprep.subr.mxu0 0.0
    %332 = vmatpush1.xpose.msra.mxu0 0.0
    %333 = vmatprep.subr.mxu0 0.0
    %334 = vmatpush1.xpose.msra.mxu0 0.0
    %335 = vmatprep.subr.mxu0 0.0
    %336 = vmatpush1.xpose.msra.mxu0 0.0
    %337 = vmatprep.subr.mxu0 0.0
    %338 = vmatpush1.xpose.msra.mxu0 0.0
    %339 = vmatprep.subr.mxu0 0.0
    %340 = vmatpush1.xpose.msra.mxu0 0.0
    %341 = vmatprep.subr.mxu0 0.0
    %342 = vmatpush1.xpose.msra.mxu0 0.0
    %343 = vmatprep.subr.mxu0 0.0
    %344 = vmatpush1.xpose.msra.mxu0 0.0
    %345 = vmatprep.subr.mxu0 0.0
    %346 = vmatpush1.xpose.msra.mxu0 0.0
    %347 = vmatprep.subr.mxu0 0.0
    %348 = vmatpush1.xpose.msra.mxu0 0.0
    %349 = vmatprep.subr.mxu0 0.0
    %350 = vmatpush1.xpose.msra.mxu0 0.0
    %351 = vmatprep.subr.mxu0 0.0
    %352 = vmatpush1.xpose.msra.mxu0 0.0
    %353 = vmatprep.subr.mxu0 0.0
    %354 = vmatpush1.xpose.msra.mxu0 0.0
    %355 = vmatprep.subr.mxu0 0.0
    %356 = vmatpush1.xpose.msra.mxu0 0.0
    %357 = vmatprep.subr.mxu0 0.0
    %358 = vmatpush1.xpose.msra.mxu0 0.0
    %359 = vmatprep.subr.mxu0 0.0
    %360 = vmatpush1.xpose.msra.mxu0 0.0
    %361 = vmatprep.subr.mxu0 0.0
    %362 = vmatpush1.xpose.msra.mxu0 0.0
    %363 = vmatprep.subr.mxu0 0.0
    %364 = vmatpush1.xpose.msra.mxu0 0.0
    %365 = vmatprep.subr.mxu0 0.0
    %366 = vmatpush1.xpose.msra.mxu0 0.0
    %367 = vmatprep.subr.mxu0 0.0
    %368 = vmatpush1.xpose.msra.mxu0 0.0
    %369 = vmatprep.subr.mxu0 0.0
    %370 = vmatpush1.xpose.msra.mxu0 0.0
    %371 = vmatprep.subr.mxu0 0.0
    %372 = vmatpush1.xpose.msra.mxu0 0.0
    %373 = vmatprep.mubr.f32.mxu0 0.0
    %374 = vmatmul.mubr.f32.gmra.mrb[0].mxu0 %v301
    %v375 = vpop.f32.mrb[0].mxu0
    %v376 = vadd.f32 %v29, %v375
    %v377 = vpop.f32.mrb[0].mxu0
    %378 = vmatprep.mubr.f32.mxu0 0.0
    %379 = vmatmul.mubr.f32.gmra.mrb[0].mxu0 %v303
    %v380 = vpop.f32.mrb[0].mxu0
    %v381 = vadd.f32 %v30, %v380
    %v382 = vpop.f32.mrb[0].mxu0
    %383 = vdwg.mxu0
    %v384 = vsel %vm260, %v376, -inf
    %385 = vmax.xlane.f32.xlu0 %v384
    %v386 = vpop.xlane.xlu0 %385
    %v387 = vsel %vm260, %v381, -inf
    %388 = vmax.xlane.f32.xlu0 %v387
    %v389 = vpop.xlane.xlu0 %388
    %v390 = vsub.f32 %v376, %v386
    %v391 = vsub.f32 %v381, %v389
    %v392 = vmul.f32 %v390, 1.442695
    %v393 = vpow.pop %v392
    %v394 = vmul.f32 %v391, 1.442695
    %v395 = vpow.pop %v394
    %v396 = vsel %vm260, %v393, 0.0
    %397 = vadd.xlane.f32.xlu0 %v396
    %v398 = vpop.xlane.xlu0 %397
    %v399 = vsel %vm260, %v395, 0.0
    %400 = vadd.xlane.f32.xlu0 %v399
    %v401 = vpop.xlane.xlu0 %400
    %v402 = vrcp.pop %v398
    %v403 = vrcp.pop %v401
    %v404 = vmul.f32 %v393, %v402
    %v405 = vmul.f32 %v395, %v403
    %v406 = vlaneseq
    %v407 = vshrl.u32 %v406, 7
    %v408 = vsub.s32 0, %v407
    %v409 = vrot.slane %v33, %v408
    %411 = vrot.lane.b32.xlu0 %v409, 64
    %v412 = vpop.permute.xlu0 %411
    %v414 = vmul.f32 %v162, %v412
    %v415 = vmul.f32 %v167, %v412
    %418 = vrot.lane.b32.xlu0 %v414, 64
    %v419 = vpop.permute.xlu0 %418
    %420 = vrot.lane.b32.xlu0 %v415, 64
    %v421 = vpop.permute.xlu0 %420
    %v425 = vsel %vm260, %v404, 0
    %v428 = vsel %vm260, %v405, 0
    %430 = vmatprep.subr.mxu0 0.0
    %431 = vmatpush1.msra.mxu0 %v419
    %432 = vmatprep.subr.mxu0 0.0
    %433 = vmatpush1.msra.mxu0 %v421
    %434 = vmatprep.subr.mxu0 0.0
    %435 = vmatpush1.msra.mxu0 0.0
    %436 = vmatprep.subr.mxu0 0.0
    %437 = vmatpush1.msra.mxu0 0.0
    %438 = vmatprep.subr.mxu0 0.0
    %439 = vmatpush1.msra.mxu0 0.0
    %440 = vmatprep.subr.mxu0 0.0
    %441 = vmatpush1.msra.mxu0 0.0
    %442 = vmatprep.subr.mxu0 0.0
    %443 = vmatpush1.msra.mxu0 0.0
    %444 = vmatprep.subr.mxu0 0.0
    %445 = vmatpush1.msra.mxu0 0.0
    %446 = vmatprep.subr.mxu0 0.0
    %447 = vmatpush1.msra.mxu0 0.0
    %448 = vmatprep.subr.mxu0 0.0
    %449 = vmatpush1.msra.mxu0 0.0
    %450 = vmatprep.subr.mxu0 0.0
    %451 = vmatpush1.msra.mxu0 0.0
    %452 = vmatprep.subr.mxu0 0.0
    %453 = vmatpush1.msra.mxu0 0.0
    %454 = vmatprep.subr.mxu0 0.0
    %455 = vmatpush1.msra.mxu0 0.0
    %456 = vmatprep.subr.mxu0 0.0
    %457 = vmatpush1.msra.mxu0 0.0
    %458 = vmatprep.subr.mxu0 0.0
    %459 = vmatpush1.msra.mxu0 0.0
    %460 = vmatprep.subr.mxu0 0.0
    %461 = vmatpush1.msra.mxu0 0.0
    %462 = vmatprep.subr.mxu0 0.0
    %463 = vmatpush1.msra.mxu0 0.0
    %464 = vmatprep.subr.mxu0 0.0
    %465 = vmatpush1.msra.mxu0 0.0
    %466 = vmatprep.subr.mxu0 0.0
    %467 = vmatpush1.msra.mxu0 0.0
    %468 = vmatprep.subr.mxu0 0.0
    %469 = vmatpush1.msra.mxu0 0.0
    %470 = vmatprep.subr.mxu0 0.0
    %471 = vmatpush1.msra.mxu0 0.0
    %472 = vmatprep.subr.mxu0 0.0
    %473 = vmatpush1.msra.mxu0 0.0
    %474 = vmatprep.subr.mxu0 0.0
    %475 = vmatpush1.msra.mxu0 0.0
    %476 = vmatprep.subr.mxu0 0.0
    %477 = vmatpush1.msra.mxu0 0.0
    %478 = vmatprep.subr.mxu0 0.0
    %479 = vmatpush1.msra.mxu0 0.0
    %480 = vmatprep.subr.mxu0 0.0
    %481 = vmatpush1.msra.mxu0 0.0
    %482 = vmatprep.subr.mxu0 0.0
    %483 = vmatpush1.msra.mxu0 0.0
    %484 = vmatprep.subr.mxu0 0.0
    %485 = vmatpush1.msra.mxu0 0.0
    %486 = vmatprep.subr.mxu0 0.0
    %487 = vmatpush1.msra.mxu0 0.0
    %488 = vmatprep.subr.mxu0 0.0
    %489 = vmatpush1.msra.mxu0 0.0
    %490 = vmatprep.subr.mxu0 0.0
    %491 = vmatpush1.msra.mxu0 0.0
    %492 = vmatprep.subr.mxu0 0.0
    %493 = vmatpush1.msra.mxu0 0.0
    %494 = vmatprep.mubr.f32.mxu0 0.0
    %495 = vmatmul.mubr.f32.gmra.mrb[0].mxu0 %v425
    %v496 = vpop.f32.mrb[0].mxu0
    %v497 = vadd.f32 0.0, %v496
    %v498 = vpop.f32.mrb[0].mxu0
    %499 = vmatprep.mubr.f32.mxu0 0.0
    %500 = vmatmul.mubr.f32.gmra.mrb[0].mxu0 %v428
    %v501 = vpop.f32.mrb[0].mxu0
    %v502 = vadd.f32 0.0, %v501
    %v503 = vpop.f32.mrb[0].mxu0
    %504 = vdwg.mxu0
    %507 = vrot.lane.b32.xlu0 %v291, 64
    %v508 = vpop.permute.xlu0 %507
    %509 = vrot.lane.b32.xlu0 %v292, 64
    %v510 = vpop.permute.xlu0 %509
    %v514 = vsel %vm260, %v281, 0
    %v517 = vsel %vm260, %v282, 0
    %519 = vmatprep.subr.mxu0 0.0
    %520 = vmatpush1.msra.mxu0 %v508
    %521 = vmatprep.subr.mxu0 0.0
    %522 = vmatpush1.msra.mxu0 %v510
    %523 = vmatprep.subr.mxu0 0.0
    %524 = vmatpush1.msra.mxu0 0.0
    %525 = vmatprep.subr.mxu0 0.0
    %526 = vmatpush1.msra.mxu0 0.0
    %527 = vmatprep.subr.mxu0 0.0
    %528 = vmatpush1.msra.mxu0 0.0
    %529 = vmatprep.subr.mxu0 0.0
    %530 = vmatpush1.msra.mxu0 0.0
    %531 = vmatprep.subr.mxu0 0.0
    %532 = vmatpush1.msra.mxu0 0.0
    %533 = vmatprep.subr.mxu0 0.0
    %534 = vmatpush1.msra.mxu0 0.0
    %535 = vmatprep.subr.mxu0 0.0
    %536 = vmatpush1.msra.mxu0 0.0
    %537 = vmatprep.subr.mxu0 0.0
    %538 = vmatpush1.msra.mxu0 0.0
    %539 = vmatprep.subr.mxu0 0.0
    %540 = vmatpush1.msra.mxu0 0.0
    %541 = vmatprep.subr.mxu0 0.0
    %542 = vmatpush1.msra.mxu0 0.0
    %543 = vmatprep.subr.mxu0 0.0
    %544 = vmatpush1.msra.mxu0 0.0
    %545 = vmatprep.subr.mxu0 0.0
    %546 = vmatpush1.msra.mxu0 0.0
    %547 = vmatprep.subr.mxu0 0.0
    %548 = vmatpush1.msra.mxu0 0.0
    %549 = vmatprep.subr.mxu0 0.0
    %550 = vmatpush1.msra.mxu0 0.0
    %551 = vmatprep.subr.mxu0 0.0
    %552 = vmatpush1.msra.mxu0 0.0
    %553 = vmatprep.subr.mxu0 0.0
    %554 = vmatpush1.msra.mxu0 0.0
    %555 = vmatprep.subr.mxu0 0.0
    %556 = vmatpush1.msra.mxu0 0.0
    %557 = vmatprep.subr.mxu0 0.0
    %558 = vmatpush1.msra.mxu0 0.0
    %559 = vmatprep.subr.mxu0 0.0
    %560 = vmatpush1.msra.mxu0 0.0
    %561 = vmatprep.subr.mxu0 0.0
    %562 = vmatpush1.msra.mxu0 0.0
    %563 = vmatprep.subr.mxu0 0.0
    %564 = vmatpush1.msra.mxu0 0.0
    %565 = vmatprep.subr.mxu0 0.0
    %566 = vmatpush1.msra.mxu0 0.0
    %567 = vmatprep.subr.mxu0 0.0
    %568 = vmatpush1.msra.mxu0 0.0
    %569 = vmatprep.subr.mxu0 0.0
    %570 = vmatpush1.msra.mxu0 0.0
    %571 = vmatprep.subr.mxu0 0.0
    %572 = vmatpush1.msra.mxu0 0.0
    %573 = vmatprep.subr.mxu0 0.0
    %574 = vmatpush1.msra.mxu0 0.0
    %575 = vmatprep.subr.mxu0 0.0
    %576 = vmatpush1.msra.mxu0 0.0
    %577 = vmatprep.subr.mxu0 0.0
    %578 = vmatpush1.msra.mxu0 0.0
    %579 = vmatprep.subr.mxu0 0.0
    %580 = vmatpush1.msra.mxu0 0.0
    %581 = vmatprep.subr.mxu0 0.0
    %582 = vmatpush1.msra.mxu0 0.0
    %583 = vmatprep.mubr.f32.mxu0 0.0
    %584 = vmatmul.mubr.f32.gmra.mrb[0].mxu0 %v514
    %v585 = vpop.f32.mrb[0].mxu0
    %v586 = vadd.f32 %v497, %v585
    %v587 = vpop.f32.mrb[0].mxu0
    %588 = vmatprep.mubr.f32.mxu0 0.0
    %589 = vmatmul.mubr.f32.gmra.mrb[0].mxu0 %v517
    %v590 = vpop.f32.mrb[0].mxu0
    %v591 = vadd.f32 %v502, %v590
    %v592 = vpop.f32.mrb[0].mxu0
    %593 = vdwg.mxu0
    %594 = vrot.lane.b32.xlu0 %v162, 112
    %v595 = vpop.permute.xlu0 %594
    %596 = vrot.lane.b32.xlu0 %v167, 112
    %v597 = vpop.permute.xlu0 %596
    %598 = vrot.lane.b32.xlu0 %v162, 80
    %v599 = vpop.permute.xlu0 %598
    %600 = vrot.lane.b32.xlu0 %v167, 80
    %v601 = vpop.permute.xlu0 %600
    %v602 = vsel %vm176, %v595, 0
    %v604 = vsel %vm176, %v597, 0
    %v606 = vsel %vm176, %v599, 0
    %v608 = vsel %vm176, %v601, 0
    %610 = vmatprep.subr.mxu0 0.0
    %611 = vmatpush1.xpose.msra.mxu0 %v606
    %612 = vmatprep.subr.mxu0 0.0
    %613 = vmatpush1.xpose.msra.mxu0 %v608
    %614 = vmatprep.subr.mxu0 0.0
    %615 = vmatpush1.xpose.msra.mxu0 0.0
    %616 = vmatprep.subr.mxu0 0.0
    %617 = vmatpush1.xpose.msra.mxu0 0.0
    %618 = vmatprep.subr.mxu0 0.0
    %619 = vmatpush1.xpose.msra.mxu0 0.0
    %620 = vmatprep.subr.mxu0 0.0
    %621 = vmatpush1.xpose.msra.mxu0 0.0
    %622 = vmatprep.subr.mxu0 0.0
    %623 = vmatpush1.xpose.msra.mxu0 0.0
    %624 = vmatprep.subr.mxu0 0.0
    %625 = vmatpush1.xpose.msra.mxu0 0.0
    %626 = vmatprep.subr.mxu0 0.0
    %627 = vmatpush1.xpose.msra.mxu0 0.0
    %628 = vmatprep.subr.mxu0 0.0
    %629 = vmatpush1.xpose.msra.mxu0 0.0
    %630 = vmatprep.subr.mxu0 0.0
    %631 = vmatpush1.xpose.msra.mxu0 0.0
    %632 = vmatprep.subr.mxu0 0.0
    %633 = vmatpush1.xpose.msra.mxu0 0.0
    %634 = vmatprep.subr.mxu0 0.0
    %635 = vmatpush1.xpose.msra.mxu0 0.0
    %636 = vmatprep.subr.mxu0 0.0
    %637 = vmatpush1.xpose.msra.mxu0 0.0
    %638 = vmatprep.subr.mxu0 0.0
    %639 = vmatpush1.xpose.msra.mxu0 0.0
    %640 = vmatprep.subr.mxu0 0.0
    %641 = vmatpush1.xpose.msra.mxu0 0.0
    %642 = vmatprep.subr.mxu0 0.0
    %643 = vmatpush1.xpose.msra.mxu0 0.0
    %644 = vmatprep.subr.mxu0 0.0
    %645 = vmatpush1.xpose.msra.mxu0 0.0
    %646 = vmatprep.subr.mxu0 0.0
    %647 = vmatpush1.xpose.msra.mxu0 0.0
    %648 = vmatprep.subr.mxu0 0.0
    %649 = vmatpush1.xpose.msra.mxu0 0.0
    %650 = vmatprep.subr.mxu0 0.0
    %651 = vmatpush1.xpose.msra.mxu0 0.0
    %652 = vmatprep.subr.mxu0 0.0
    %653 = vmatpush1.xpose.msra.mxu0 0.0
    %654 = vmatprep.subr.mxu0 0.0
    %655 = vmatpush1.xpose.msra.mxu0 0.0
    %656 = vmatprep.subr.mxu0 0.0
    %657 = vmatpush1.xpose.msra.mxu0 0.0
    %658 = vmatprep.subr.mxu0 0.0
    %659 = vmatpush1.xpose.msra.mxu0 0.0
    %660 = vmatprep.subr.mxu0 0.0
    %661 = vmatpush1.xpose.msra.mxu0 0.0
    %662 = vmatprep.subr.mxu0 0.0
    %663 = vmatpush1.xpose.msra.mxu0 0.0
    %664 = vmatprep.subr.mxu0 0.0
    %665 = vmatpush1.xpose.msra.mxu0 0.0
    %666 = vmatprep.subr.mxu0 0.0
    %667 = vmatpush1.xpose.msra.mxu0 0.0
    %668 = vmatprep.subr.mxu0 0.0
    %669 = vmatpush1.xpose.msra.mxu0 0.0
    %670 = vmatprep.subr.mxu0 0.0
    %671 = vmatpush1.xpose.msra.mxu0 0.0
    %672 = vmatprep.subr.mxu0 0.0
    %673 = vmatpush1.xpose.msra.mxu0 0.0
    %674 = vmatprep.mubr.f32.mxu0 0.0
    %675 = vmatmul.mubr.f32.gmra.mrb[0].mxu0 %v602
    %v676 = vpop.f32.mrb[0].mxu0
    %v677 = vadd.f32 %v29, %v676
    %v678 = vpop.f32.mrb[0].mxu0
    %679 = vmatprep.mubr.f32.mxu0 0.0
    %680 = vmatmul.mubr.f32.gmra.mrb[0].mxu0 %v604
    %v681 = vpop.f32.mrb[0].mxu0
    %v682 = vadd.f32 %v30, %v681
    %v683 = vpop.f32.mrb[0].mxu0
    %684 = vdwg.mxu0
    %v685 = vsel %vm260, %v677, -inf
    %686 = vmax.xlane.f32.xlu0 %v685
    %v687 = vpop.xlane.xlu0 %686
    %v688 = vsel %vm260, %v682, -inf
    %689 = vmax.xlane.f32.xlu0 %v688
    %v690 = vpop.xlane.xlu0 %689
    %v691 = vsub.f32 %v677, %v687
    %v692 = vsub.f32 %v682, %v690
    %v693 = vmul.f32 %v691, 1.442695
    %v694 = vpow.pop %v693
    %v695 = vmul.f32 %v692, 1.442695
    %v696 = vpow.pop %v695
    %v697 = vsel %vm260, %v694, 0.0
    %698 = vadd.xlane.f32.xlu0 %v697
    %v699 = vpop.xlane.xlu0 %698
    %v700 = vsel %vm260, %v696, 0.0
    %701 = vadd.xlane.f32.xlu0 %v700
    %v702 = vpop.xlane.xlu0 %701
    %v703 = vrcp.pop %v699
    %v704 = vrcp.pop %v702
    %v705 = vmul.f32 %v694, %v703
    %v706 = vmul.f32 %v696, %v704
    %v707 = vlaneseq
    %v708 = vshrl.u32 %v707, 7
    %v709 = vsub.s32 0, %v708
    %v710 = vrot.slane %v34, %v709
    %712 = vrot.lane.b32.xlu0 %v710, 64
    %v713 = vpop.permute.xlu0 %712
    %v715 = vmul.f32 %v162, %v713
    %v716 = vmul.f32 %v167, %v713
    %719 = vrot.lane.b32.xlu0 %v715, 64
    %v720 = vpop.permute.xlu0 %719
    %721 = vrot.lane.b32.xlu0 %v716, 64
    %v722 = vpop.permute.xlu0 %721
    %v726 = vsel %vm260, %v705, 0
    %v729 = vsel %vm260, %v706, 0
    %731 = vmatprep.subr.mxu0 0.0
    %732 = vmatpush1.msra.mxu0 %v720
    %733 = vmatprep.subr.mxu0 0.0
    %734 = vmatpush1.msra.mxu0 %v722
    %735 = vmatprep.subr.mxu0 0.0
    %736 = vmatpush1.msra.mxu0 0.0
    %737 = vmatprep.subr.mxu0 0.0
    %738 = vmatpush1.msra.mxu0 0.0
    %739 = vmatprep.subr.mxu0 0.0
    %740 = vmatpush1.msra.mxu0 0.0
    %741 = vmatprep.subr.mxu0 0.0
    %742 = vmatpush1.msra.mxu0 0.0
    %743 = vmatprep.subr.mxu0 0.0
    %744 = vmatpush1.msra.mxu0 0.0
    %745 = vmatprep.subr.mxu0 0.0
    %746 = vmatpush1.msra.mxu0 0.0
    %747 = vmatprep.subr.mxu0 0.0
    %748 = vmatpush1.msra.mxu0 0.0
    %749 = vmatprep.subr.mxu0 0.0
    %750 = vmatpush1.msra.mxu0 0.0
    %751 = vmatprep.subr.mxu0 0.0
    %752 = vmatpush1.msra.mxu0 0.0
    %753 = vmatprep.subr.mxu0 0.0
    %754 = vmatpush1.msra.mxu0 0.0
    %755 = vmatprep.subr.mxu0 0.0
    %756 = vmatpush1.msra.mxu0 0.0
    %757 = vmatprep.subr.mxu0 0.0
    %758 = vmatpush1.msra.mxu0 0.0
    %759 = vmatprep.subr.mxu0 0.0
    %760 = vmatpush1.msra.mxu0 0.0
    %761 = vmatprep.subr.mxu0 0.0
    %762 = vmatpush1.msra.mxu0 0.0
    %763 = vmatprep.subr.mxu0 0.0
    %764 = vmatpush1.msra.mxu0 0.0
    %765 = vmatprep.subr.mxu0 0.0
    %766 = vmatpush1.msra.mxu0 0.0
    %767 = vmatprep.subr.mxu0 0.0
    %768 = vmatpush1.msra.mxu0 0.0
    %769 = vmatprep.subr.mxu0 0.0
    %770 = vmatpush1.msra.mxu0 0.0
    %771 = vmatprep.subr.mxu0 0.0
    %772 = vmatpush1.msra.mxu0 0.0
    %773 = vmatprep.subr.mxu0 0.0
    %774 = vmatpush1.msra.mxu0 0.0
    %775 = vmatprep.subr.mxu0 0.0
    %776 = vmatpush1.msra.mxu0 0.0
    %777 = vmatprep.subr.mxu0 0.0
    %778 = vmatpush1.msra.mxu0 0.0
    %779 = vmatprep.subr.mxu0 0.0
    %780 = vmatpush1.msra.mxu0 0.0
    %781 = vmatprep.subr.mxu0 0.0
    %782 = vmatpush1.msra.mxu0 0.0
    %783 = vmatprep.subr.mxu0 0.0
    %784 = vmatpush1.msra.mxu0 0.0
    %785 = vmatprep.subr.mxu0 0.0
    %786 = vmatpush1.msra.mxu0 0.0
    %787 = vmatprep.subr.mxu0 0.0
    %788 = vmatpush1.msra.mxu0 0.0
    %789 = vmatprep.subr.mxu0 0.0
    %790 = vmatpush1.msra.mxu0 0.0
    %791 = vmatprep.subr.mxu0 0.0
    %792 = vmatpush1.msra.mxu0 0.0
    %793 = vmatprep.subr.mxu0 0.0
    %794 = vmatpush1.msra.mxu0 0.0
    %795 = vmatprep.mubr.f32.mxu0 0.0
    %796 = vmatmul.mubr.f32.gmra.mrb[0].mxu0 %v726
    %v797 = vpop.f32.mrb[0].mxu0
    %v798 = vadd.f32 0.0, %v797
    %v799 = vpop.f32.mrb[0].mxu0
    %800 = vmatprep.mubr.f32.mxu0 0.0
    %801 = vmatmul.mubr.f32.gmra.mrb[0].mxu0 %v729
    %v802 = vpop.f32.mrb[0].mxu0
    %v803 = vadd.f32 0.0, %v802
    %v804 = vpop.f32.mrb[0].mxu0
    %805 = vdwg.mxu0
    %v806 = vadd.f32 %v586, %v798
    %v807 = vadd.f32 %v591, %v803
    %808 = vrot.lane.b32.xlu0 %v162, 104
    %v809 = vpop.permute.xlu0 %808
    %810 = vrot.lane.b32.xlu0 %v167, 104
    %v811 = vpop.permute.xlu0 %810
    %812 = vrot.lane.b32.xlu0 %v162, 72
    %v813 = vpop.permute.xlu0 %812
    %814 = vrot.lane.b32.xlu0 %v167, 72
    %v815 = vpop.permute.xlu0 %814
    %v816 = vsel %vm176, %v809, 0
    %v818 = vsel %vm176, %v811, 0
    %v820 = vsel %vm176, %v813, 0
    %v822 = vsel %vm176, %v815, 0
    %824 = vmatprep.subr.mxu0 0.0
    %825 = vmatpush1.xpose.msra.mxu0 %v820
    %826 = vmatprep.subr.mxu0 0.0
    %827 = vmatpush1.xpose.msra.mxu0 %v822
    %828 = vmatprep.subr.mxu0 0.0
    %829 = vmatpush1.xpose.msra.mxu0 0.0
    %830 = vmatprep.subr.mxu0 0.0
    %831 = vmatpush1.xpose.msra.mxu0 0.0
    %832 = vmatprep.subr.mxu0 0.0
    %833 = vmatpush1.xpose.msra.mxu0 0.0
    %834 = vmatprep.subr.mxu0 0.0
    %835 = vmatpush1.xpose.msra.mxu0 0.0
    %836 = vmatprep.subr.mxu0 0.0
    %837 = vmatpush1.xpose.msra.mxu0 0.0
    %838 = vmatprep.subr.mxu0 0.0
    %839 = vmatpush1.xpose.msra.mxu0 0.0
    %840 = vmatprep.subr.mxu0 0.0
    %841 = vmatpush1.xpose.msra.mxu0 0.0
    %842 = vmatprep.subr.mxu0 0.0
    %843 = vmatpush1.xpose.msra.mxu0 0.0
    %844 = vmatprep.subr.mxu0 0.0
    %845 = vmatpush1.xpose.msra.mxu0 0.0
    %846 = vmatprep.subr.mxu0 0.0
    %847 = vmatpush1.xpose.msra.mxu0 0.0
    %848 = vmatprep.subr.mxu0 0.0
    %849 = vmatpush1.xpose.msra.mxu0 0.0
    %850 = vmatprep.subr.mxu0 0.0
    %851 = vmatpush1.xpose.msra.mxu0 0.0
    %852 = vmatprep.subr.mxu0 0.0
    %853 = vmatpush1.xpose.msra.mxu0 0.0
    %854 = vmatprep.subr.mxu0 0.0
    %855 = vmatpush1.xpose.msra.mxu0 0.0
    %856 = vmatprep.subr.mxu0 0.0
    %857 = vmatpush1.xpose.msra.mxu0 0.0
    %858 = vmatprep.subr.mxu0 0.0
    %859 = vmatpush1.xpose.msra.mxu0 0.0
    %860 = vmatprep.subr.mxu0 0.0
    %861 = vmatpush1.xpose.msra.mxu0 0.0
    %862 = vmatprep.subr.mxu0 0.0
    %863 = vmatpush1.xpose.msra.mxu0 0.0
    %864 = vmatprep.subr.mxu0 0.0
    %865 = vmatpush1.xpose.msra.mxu0 0.0
    %866 = vmatprep.subr.mxu0 0.0
    %867 = vmatpush1.xpose.msra.mxu0 0.0
    %868 = vmatprep.subr.mxu0 0.0
    %869 = vmatpush1.xpose.msra.mxu0 0.0
    %870 = vmatprep.subr.mxu0 0.0
    %871 = vmatpush1.xpose.msra.mxu0 0.0
    %872 = vmatprep.subr.mxu0 0.0
    %873 = vmatpush1.xpose.msra.mxu0 0.0
    %874 = vmatprep.subr.mxu0 0.0
    %875 = vmatpush1.xpose.msra.mxu0 0.0
    %876 = vmatprep.subr.mxu0 0.0
    %877 = vmatpush1.xpose.msra.mxu0 0.0
    %878 = vmatprep.subr.mxu0 0.0
    %879 = vmatpush1.xpose.msra.mxu0 0.0
    %880 = vmatprep.subr.mxu0 0.0
    %881 = vmatpush1.xpose.msra.mxu0 0.0
    %882 = vmatprep.subr.mxu0 0.0
    %883 = vmatpush1.xpose.msra.mxu0 0.0
    %884 = vmatprep.subr.mxu0 0.0
    %885 = vmatpush1.xpose.msra.mxu0 0.0
    %886 = vmatprep.subr.mxu0 0.0
    %887 = vmatpush1.xpose.msra.mxu0 0.0
    %888 = vmatprep.mubr.f32.mxu0 0.0
    %889 = vmatmul.mubr.f32.gmra.mrb[0].mxu0 %v816
    %v890 = vpop.f32.mrb[0].mxu0
    %v891 = vadd.f32 %v29, %v890
    %v892 = vpop.f32.mrb[0].mxu0
    %893 = vmatprep.mubr.f32.mxu0 0.0
    %894 = vmatmul.mubr.f32.gmra.mrb[0].mxu0 %v818
    %v895 = vpop.f32.mrb[0].mxu0
    %v896 = vadd.f32 %v30, %v895
    %v897 = vpop.f32.mrb[0].mxu0
    %898 = vdwg.mxu0
    %v899 = vsel %vm260, %v891, -inf
    %900 = vmax.xlane.f32.xlu0 %v899
    %v901 = vpop.xlane.xlu0 %900
    %v902 = vsel %vm260, %v896, -inf
    %903 = vmax.xlane.f32.xlu0 %v902
    %v904 = vpop.xlane.xlu0 %903
    %v905 = vsub.f32 %v891, %v901
    %v906 = vsub.f32 %v896, %v904
    %v907 = vmul.f32 %v905, 1.442695
    %v908 = vpow.pop %v907
    %v909 = vmul.f32 %v906, 1.442695
    %v910 = vpow.pop %v909
    %v911 = vsel %vm260, %v908, 0.0
    %912 = vadd.xlane.f32.xlu0 %v911
    %v913 = vpop.xlane.xlu0 %912
    %v914 = vsel %vm260, %v910, 0.0
    %915 = vadd.xlane.f32.xlu0 %v914
    %v916 = vpop.xlane.xlu0 %915
    %v917 = vrcp.pop %v913
    %v918 = vrcp.pop %v916
    %v919 = vmul.f32 %v908, %v917
    %v920 = vmul.f32 %v910, %v918
    %v921 = vlaneseq
    %v922 = vshrl.u32 %v921, 7
    %v923 = vsub.s32 0, %v922
    %v924 = vrot.slane %v35, %v923
    %926 = vrot.lane.b32.xlu0 %v924, 64
    %v927 = vpop.permute.xlu0 %926
    %v929 = vmul.f32 %v162, %v927
    %v930 = vmul.f32 %v167, %v927
    %933 = vrot.lane.b32.xlu0 %v929, 64
    %v934 = vpop.permute.xlu0 %933
    %935 = vrot.lane.b32.xlu0 %v930, 64
    %v936 = vpop.permute.xlu0 %935
    %v940 = vsel %vm260, %v919, 0
    %v943 = vsel %vm260, %v920, 0
    %945 = vmatprep.subr.mxu0 0.0
    %946 = vmatpush1.msra.mxu0 %v934
    %947 = vmatprep.subr.mxu0 0.0
    %948 = vmatpush1.msra.mxu0 %v936
    %949 = vmatprep.subr.mxu0 0.0
    %950 = vmatpush1.msra.mxu0 0.0
    %951 = vmatprep.subr.mxu0 0.0
    %952 = vmatpush1.msra.mxu0 0.0
    %953 = vmatprep.subr.mxu0 0.0
    %954 = vmatpush1.msra.mxu0 0.0
    %955 = vmatprep.subr.mxu0 0.0
    %956 = vmatpush1.msra.mxu0 0.0
    %957 = vmatprep.subr.mxu0 0.0
    %958 = vmatpush1.msra.mxu0 0.0
    %959 = vmatprep.subr.mxu0 0.0
    %960 = vmatpush1.msra.mxu0 0.0
    %961 = vmatprep.subr.mxu0 0.0
    %962 = vmatpush1.msra.mxu0 0.0
    %963 = vmatprep.subr.mxu0 0.0
    %964 = vmatpush1.msra.mxu0 0.0
    %965 = vmatprep.subr.mxu0 0.0
    %966 = vmatpush1.msra.mxu0 0.0
    %967 = vmatprep.subr.mxu0 0.0
    %968 = vmatpush1.msra.mxu0 0.0
    %969 = vmatprep.subr.mxu0 0.0
    %970 = vmatpush1.msra.mxu0 0.0
    %971 = vmatprep.subr.mxu0 0.0
    %972 = vmatpush1.msra.mxu0 0.0
    %973 = vmatprep.subr.mxu0 0.0
    %974 = vmatpush1.msra.mxu0 0.0
    %975 = vmatprep.subr.mxu0 0.0
    %976 = vmatpush1.msra.mxu0 0.0
    %977 = vmatprep.subr.mxu0 0.0
    %978 = vmatpush1.msra.mxu0 0.0
    %979 = vmatprep.subr.mxu0 0.0
    %980 = vmatpush1.msra.mxu0 0.0
    %981 = vmatprep.subr.mxu0 0.0
    %982 = vmatpush1.msra.mxu0 0.0
    %983 = vmatprep.subr.mxu0 0.0
    %984 = vmatpush1.msra.mxu0 0.0
    %985 = vmatprep.subr.mxu0 0.0
    %986 = vmatpush1.msra.mxu0 0.0
    %987 = vmatprep.subr.mxu0 0.0
    %988 = vmatpush1.msra.mxu0 0.0
    %989 = vmatprep.subr.mxu0 0.0
    %990 = vmatpush1.msra.mxu0 0.0
    %991 = vmatprep.subr.mxu0 0.0
    %992 = vmatpush1.msra.mxu0 0.0
    %993 = vmatprep.subr.mxu0 0.0
    %994 = vmatpush1.msra.mxu0 0.0
    %995 = vmatprep.subr.mxu0 0.0
    %996 = vmatpush1.msra.mxu0 0.0
    %997 = vmatprep.subr.mxu0 0.0
    %998 = vmatpush1.msra.mxu0 0.0
    %999 = vmatprep.subr.mxu0 0.0
    %1000 = vmatpush1.msra.mxu0 0.0
    %1001 = vmatprep.subr.mxu0 0.0
    %1002 = vmatpush1.msra.mxu0 0.0
    %1003 = vmatprep.subr.mxu0 0.0
    %1004 = vmatpush1.msra.mxu0 0.0
    %1005 = vmatprep.subr.mxu0 0.0
    %1006 = vmatpush1.msra.mxu0 0.0
    %1007 = vmatprep.subr.mxu0 0.0
    %1008 = vmatpush1.msra.mxu0 0.0
    %1009 = vmatprep.mubr.f32.mxu0 0.0
    %1010 = vmatmul.mubr.f32.gmra.mrb[0].mxu0 %v940
    %v1011 = vpop.f32.mrb[0].mxu0
    %v1012 = vadd.f32 0.0, %v1011
    %v1013 = vpop.f32.mrb[0].mxu0
    %1014 = vmatprep.mubr.f32.mxu0 0.0
    %1015 = vmatmul.mubr.f32.gmra.mrb[0].mxu0 %v943
    %v1016 = vpop.f32.mrb[0].mxu0
    %v1017 = vadd.f32 0.0, %v1016
    %v1018 = vpop.f32.mrb[0].mxu0
    %1019 = vdwg.mxu0
    %v1020 = vadd.f32 %v806, %v1012
    %v1021 = vadd.f32 %v807, %v1017
    %v1022 = vlaneseq
    %v1023 = vshrl.u32 %v1022, 7
    %v1024 = vsub.s32 0, %v1023
    %v1025 = vrot.slane %v77, %v1024
    %v1027 = vsel %vm88, %v1020, 0
    %v1030 = vsel %vm88, %v1021, 0
    %1032 = vmatprep.subr.mxu0 0.0
    %1033 = vmatpush1.msra.mxu0 %v60
    %1034 = vmatprep.subr.mxu0 0.0
    %1035 = vmatpush1.msra.mxu0 %v61
    %1036 = vmatprep.subr.mxu0 0.0
    %1037 = vmatpush1.msra.mxu0 %v62
    %1038 = vmatprep.subr.mxu0 0.0
    %1039 = vmatpush1.msra.mxu0 %v63
    %1040 = vmatprep.subr.mxu0 0.0
    %1041 = vmatpush1.msra.mxu0 0.0
    %1042 = vmatprep.subr.mxu0 0.0
    %1043 = vmatpush1.msra.mxu0 0.0
    %1044 = vmatprep.subr.mxu0 0.0
    %1045 = vmatpush1.msra.mxu0 0.0
    %1046 = vmatprep.subr.mxu0 0.0
    %1047 = vmatpush1.msra.mxu0 0.0
    %1048 = vmatprep.subr.mxu0 0.0
    %1049 = vmatpush1.msra.mxu0 0.0
    %1050 = vmatprep.subr.mxu0 0.0
    %1051 = vmatpush1.msra.mxu0 0.0
    %1052 = vmatprep.subr.mxu0 0.0
    %1053 = vmatpush1.msra.mxu0 0.0
    %1054 = vmatprep.subr.mxu0 0.0
    %1055 = vmatpush1.msra.mxu0 0.0
    %1056 = vmatprep.subr.mxu0 0.0
    %1057 = vmatpush1.msra.mxu0 0.0
    %1058 = vmatprep.subr.mxu0 0.0
    %1059 = vmatpush1.msra.mxu0 0.0
    %1060 = vmatprep.subr.mxu0 0.0
    %1061 = vmatpush1.msra.mxu0 0.0
    %1062 = vmatprep.subr.mxu0 0.0
    %1063 = vmatpush1.msra.mxu0 0.0
    %1064 = vmatprep.subr.mxu0 0.0
    %1065 = vmatpush1.msra.mxu0 0.0
    %1066 = vmatprep.subr.mxu0 0.0
    %1067 = vmatpush1.msra.mxu0 0.0
    %1068 = vmatprep.subr.mxu0 0.0
    %1069 = vmatpush1.msra.mxu0 0.0
    %1070 = vmatprep.subr.mxu0 0.0
    %1071 = vmatpush1.msra.mxu0 0.0
    %1072 = vmatprep.subr.mxu0 0.0
    %1073 = vmatpush1.msra.mxu0 0.0
    %1074 = vmatprep.subr.mxu0 0.0
    %1075 = vmatpush1.msra.mxu0 0.0
    %1076 = vmatprep.subr.mxu0 0.0
    %1077 = vmatpush1.msra.mxu0 0.0
    %1078 = vmatprep.subr.mxu0 0.0
    %1079 = vmatpush1.msra.mxu0 0.0
    %1080 = vmatprep.subr.mxu0 0.0
    %1081 = vmatpush1.msra.mxu0 0.0
    %1082 = vmatprep.subr.mxu0 0.0
    %1083 = vmatpush1.msra.mxu0 0.0
    %1084 = vmatprep.subr.mxu0 0.0
    %1085 = vmatpush1.msra.mxu0 0.0
    %1086 = vmatprep.subr.mxu0 0.0
    %1087 = vmatpush1.msra.mxu0 0.0
    %1088 = vmatprep.subr.mxu0 0.0
    %1089 = vmatpush1.msra.mxu0 0.0
    %1090 = vmatprep.subr.mxu0 0.0
    %1091 = vmatpush1.msra.mxu0 0.0
    %1092 = vmatprep.subr.mxu0 0.0
    %1093 = vmatpush1.msra.mxu0 0.0
    %1094 = vmatprep.subr.mxu0 0.0
    %1095 = vmatpush1.msra.mxu0 0.0
    %1096 = vmatprep.mubr.f32.mxu0 0.0
    %1097 = vmatmul.mubr.f32.gmra.mrb[0].mxu0 %v1027
    %v1098 = vpop.f32.mrb[0].mxu0
    %v1099 = vadd.f32 %v1025, %v1098
    %v1100 = vpop.f32.mrb[0].mxu0
    %1101 = vmatprep.mubr.f32.mxu0 0.0
    %1102 = vmatmul.mubr.f32.gmra.mrb[0].mxu0 %v1030
    %v1103 = vpop.f32.mrb[0].mxu0
    %v1104 = vadd.f32 %v1025, %v1103
    %v1105 = vpop.f32.mrb[0].mxu0
    %1106 = vdwg.mxu0
    %v1107 = vadd.f32 %v54, %v1099
    %v1108 = vadd.f32 %v55, %v1104
    %v1109 = vsel %vm88, %v1107, 0.0
    %1110 = vadd.xlane.f32.xlu0 %v1109
    %v1111 = vpop.xlane.xlu0 %1110
    %v1112 = vsel %vm88, %v1108, 0.0
    %1113 = vadd.xlane.f32.xlu0 %v1112
    %v1114 = vpop.xlane.xlu0 %1113
    %v1115 = vrcp.pop 32.0
    %v1116 = vmul.f32 %v1111, %v1115
    %v1117 = vmul.f32 %v1114, %v1115
    %v1118 = vsub.f32 %v1107, %v1116
    %v1119 = vsub.f32 %v1108, %v1117
    %v1120 = vmul.f32 %v1118, %v1118
    %v1121 = vmul.f32 %v1119, %v1119
    %v1122 = vsel %vm88, %v1120, 0.0
    %1123 = vadd.xlane.f32.xlu0 %v1122
    %v1124 = vpop.xlane.xlu0 %1123
    %v1125 = vsel %vm88, %v1121, 0.0
    %1126 = vadd.xlane.f32.xlu0 %v1125
    %v1127 = vpop.xlane.xlu0 %1126
    %v1128 = vmul.f32 %v1124, %v1115
    %v1129 = vmul.f32 %v1127, %v1115
    %v1130 = vadd.f32 %v1128, 1e-05
    %v1131 = vadd.f32 %v1129, 1e-05
    %v1132 = vrsqrt.pop %v1130
    %v1133 = vrsqrt.pop %v1131
    %v1134 = vmul.f32 %v1118, %v1132
    %v1135 = vmul.f32 %v1119, %v1133
    %v1136 = vlaneseq
    %v1137 = vshrl.u32 %v1136, 7
    %v1138 = vsub.s32 0, %v1137
    %v1139 = vrot.slane %v80, %v1138
    %v1140 = vmul.f32 %v1134, %v1139
    %v1141 = vmul.f32 %v1135, %v1139
    %v1142 = vlaneseq
    %v1143 = vshrl.u32 %v1142, 7
    %v1144 = vsub.s32 0, %v1143
    %v1145 = vrot.slane %v81, %v1144
    %v1146 = vadd.f32 %v1140, %v1145
    %v1147 = vadd.f32 %v1141, %v1145
    %v1148 = vlaneseq
    %v1149 = vshrl.u32 %v1148, 7
    %v1150 = vsub.s32 0, %v1149
    %v1151 = vrot.slane %v78, %v1150
    %v1153 = vsel %vm88, %v1146, 0
    %v1156 = vsel %vm88, %v1147, 0
    %1158 = vmatprep.subr.mxu0 0.0
    %1159 = vmatpush1.msra.mxu0 %v64
    %1160 = vmatprep.subr.mxu0 0.0
    %1161 = vmatpush1.msra.mxu0 %v65
    %1162 = vmatprep.subr.mxu0 0.0
    %1163 = vmatpush1.msra.mxu0 %v66
    %1164 = vmatprep.subr.mxu0 0.0
    %1165 = vmatpush1.msra.mxu0 %v67
    %1166 = vmatprep.subr.mxu0 0.0
    %1167 = vmatpush1.msra.mxu0 0.0
    %1168 = vmatprep.subr.mxu0 0.0
    %1169 = vmatpush1.msra.mxu0 0.0
    %1170 = vmatprep.subr.mxu0 0.0
    %1171 = vmatpush1.msra.mxu0 0.0
    %1172 = vmatprep.subr.mxu0 0.0
    %1173 = vmatpush1.msra.mxu0 0.0
    %1174 = vmatprep.subr.mxu0 0.0
    %1175 = vmatpush1.msra.mxu0 0.0
    %1176 = vmatprep.subr.mxu0 0.0
    %1177 = vmatpush1.msra.mxu0 0.0
    %1178 = vmatprep.subr.mxu0 0.0
    %1179 = vmatpush1.msra.mxu0 0.0
    %1180 = vmatprep.subr.mxu0 0.0
    %1181 = vmatpush1.msra.mxu0 0.0
    %1182 = vmatprep.subr.mxu0 0.0
    %1183 = vmatpush1.msra.mxu0 0.0
    %1184 = vmatprep.subr.mxu0 0.0
    %1185 = vmatpush1.msra.mxu0 0.0
    %1186 = vmatprep.subr.mxu0 0.0
    %1187 = vmatpush1.msra.mxu0 0.0
    %1188 = vmatprep.subr.mxu0 0.0
    %1189 = vmatpush1.msra.mxu0 0.0
    %1190 = vmatprep.subr.mxu0 0.0
    %1191 = vmatpush1.msra.mxu0 0.0
    %1192 = vmatprep.subr.mxu0 0.0
    %1193 = vmatpush1.msra.mxu0 0.0
    %1194 = vmatprep.subr.mxu0 0.0
    %1195 = vmatpush1.msra.mxu0 0.0
    %1196 = vmatprep.subr.mxu0 0.0
    %1197 = vmatpush1.msra.mxu0 0.0
    %1198 = vmatprep.subr.mxu0 0.0
    %1199 = vmatpush1.msra.mxu0 0.0
    %1200 = vmatprep.subr.mxu0 0.0
    %1201 = vmatpush1.msra.mxu0 0.0
    %1202 = vmatprep.subr.mxu0 0.0
    %1203 = vmatpush1.msra.mxu0 0.0
    %1204 = vmatprep.subr.mxu0 0.0
    %1205 = vmatpush1.msra.mxu0 0.0
    %1206 = vmatprep.subr.mxu0 0.0
    %1207 = vmatpush1.msra.mxu0 0.0
    %1208 = vmatprep.subr.mxu0 0.0
    %1209 = vmatpush1.msra.mxu0 0.0
    %1210 = vmatprep.subr.mxu0 0.0
    %1211 = vmatpush1.msra.mxu0 0.0
    %1212 = vmatprep.subr.mxu0 0.0
    %1213 = vmatpush1.msra.mxu0 0.0
    %1214 = vmatprep.subr.mxu0 0.0
    %1215 = vmatpush1.msra.mxu0 0.0
    %1216 = vmatprep.subr.mxu0 0.0
    %1217 = vmatpush1.msra.mxu0 0.0
    %1218 = vmatprep.subr.mxu0 0.0
    %1219 = vmatpush1.msra.mxu0 0.0
    %1220 = vmatprep.subr.mxu0 0.0
    %1221 = vmatpush1.msra.mxu0 0.0
    %1222 = vmatprep.mubr.f32.mxu0 0.0
    %1223 = vmatmul.mubr.f32.gmra.mrb[0].mxu0 %v1153
    %v1224 = vpop.f32.mrb[0].mxu0
    %v1225 = vadd.f32 %v1151, %v1224
    %v1226 = vpop.f32.mrb[0].mxu0
    %1227 = vmatprep.mubr.f32.mxu0 0.0
    %1228 = vmatmul.mubr.f32.gmra.mrb[0].mxu0 %v1156
    %v1229 = vpop.f32.mrb[0].mxu0
    %v1230 = vadd.f32 %v1151, %v1229
    %v1231 = vpop.f32.mrb[0].mxu0
    %1232 = vdwg.mxu0
    %v1233 = vmax.f32 %v1225, 0.0
    %v1234 = vmax.f32 %v1230, 0.0
    %v1235 = vlaneseq
    %v1236 = vshrl.u32 %v1235, 7
    %v1237 = vsub.s32 0, %v1236
    %v1238 = vrot.slane %v79, %v1237
    %vm1239 = vcmask 523264
    %v1241 = vsel %vm1239, %v1233, 0
    %v1244 = vsel %vm1239, %v1234, 0
    %1246 = vmatprep.subr.mxu0 0.0
    %1247 = vmatpush1.msra.mxu0 %v68
    %1248 = vmatprep.subr.mxu0 0.0
    %1249 = vmatpush1.msra.mxu0 %v69
    %1250 = vmatprep.subr.mxu0 0.0
    %1251 = vmatpush1.msra.mxu0 %v70
    %1252 = vmatprep.subr.mxu0 0.0
    %1253 = vmatpush1.msra.mxu0 %v71
    %1254 = vmatprep.subr.mxu0 0.0
    %1255 = vmatpush1.msra.mxu0 %v72
    %1256 = vmatprep.subr.mxu0 0.0
    %1257 = vmatpush1.msra.mxu0 %v73
    %1258 = vmatprep.subr.mxu0 0.0
    %1259 = vmatpush1.msra.mxu0 %v74
    %1260 = vmatprep.subr.mxu0 0.0
    %1261 = vmatpush1.msra.mxu0 %v75
    %1262 = vmatprep.subr.mxu0 0.0
    %1263 = vmatpush1.msra.mxu0 0.0
    %1264 = vmatprep.subr.mxu0 0.0
    %1265 = vmatpush1.msra.mxu0 0.0
    %1266 = vmatprep.subr.mxu0 0.0
    %1267 = vmatpush1.msra.mxu0 0.0
    %1268 = vmatprep.subr.mxu0 0.0
    %1269 = vmatpush1.msra.mxu0 0.0
    %1270 = vmatprep.subr.mxu0 0.0
    %1271 = vmatpush1.msra.mxu0 0.0
    %1272 = vmatprep.subr.mxu0 0.0
    %1273 = vmatpush1.msra.mxu0 0.0
    %1274 = vmatprep.subr.mxu0 0.0
    %1275 = vmatpush1.msra.mxu0 0.0
    %1276 = vmatprep.subr.mxu0 0.0
    %1277 = vmatpush1.msra.mxu0 0.0
    %1278 = vmatprep.subr.mxu0 0.0
    %1279 = vmatpush1.msra.mxu0 0.0
    %1280 = vmatprep.subr.mxu0 0.0
    %1281 = vmatpush1.msra.mxu0 0.0
    %1282 = vmatprep.subr.mxu0 0.0
    %1283 = vmatpush1.msra.mxu0 0.0
    %1284 = vmatprep.subr.mxu0 0.0
    %1285 = vmatpush1.msra.mxu0 0.0
    %1286 = vmatprep.subr.mxu0 0.0
    %1287 = vmatpush1.msra.mxu0 0.0
    %1288 = vmatprep.subr.mxu0 0.0
    %1289 = vmatpush1.msra.mxu0 0.0
    %1290 = vmatprep.subr.mxu0 0.0
    %1291 = vmatpush1.msra.mxu0 0.0
    %1292 = vmatprep.subr.mxu0 0.0
    %1293 = vmatpush1.msra.mxu0 0.0
    %1294 = vmatprep.subr.mxu0 0.0
    %1295 = vmatpush1.msra.mxu0 0.0
    %1296 = vmatprep.subr.mxu0 0.0
    %1297 = vmatpush1.msra.mxu0 0.0
    %1298 = vmatprep.subr.mxu0 0.0
    %1299 = vmatpush1.msra.mxu0 0.0
    %1300 = vmatprep.subr.mxu0 0.0
    %1301 = vmatpush1.msra.mxu0 0.0
    %1302 = vmatprep.subr.mxu0 0.0
    %1303 = vmatpush1.msra.mxu0 0.0
    %1304 = vmatprep.subr.mxu0 0.0
    %1305 = vmatpush1.msra.mxu0 0.0
    %1306 = vmatprep.subr.mxu0 0.0
    %1307 = vmatpush1.msra.mxu0 0.0
    %1308 = vmatprep.subr.mxu0 0.0
    %1309 = vmatpush1.msra.mxu0 0.0
    %1310 = vmatprep.mubr.f32.mxu0 0.0
    %1311 = vmatmul.mubr.f32.gmra.mrb[0].mxu0 %v1241
    %v1312 = vpop.f32.mrb[0].mxu0
    %v1313 = vadd.f32 %v1238, %v1312
    %v1314 = vpop.f32.mrb[0].mxu0
    %1315 = vmatprep.mubr.f32.mxu0 0.0
    %1316 = vmatmul.mubr.f32.gmra.mrb[0].mxu0 %v1244
    %v1317 = vpop.f32.mrb[0].mxu0
    %v1318 = vadd.f32 %v1238, %v1317
    %v1319 = vpop.f32.mrb[0].mxu0
    %1320 = vdwg.mxu0
    %v1321 = vadd.f32 %v1146, %v1313
    %v1322 = vadd.f32 %v1147, %v1318
    %v1323 = vsel %vm88, %v1321, 0.0
    %1324 = vadd.xlane.f32.xlu0 %v1323
    %v1325 = vpop.xlane.xlu0 %1324
    %v1326 = vsel %vm88, %v1322, 0.0
    %1327 = vadd.xlane.f32.xlu0 %v1326
    %v1328 = vpop.xlane.xlu0 %1327
    %v1329 = vmul.f32 %v1325, %v1115
    %v1330 = vmul.f32 %v1328, %v1115
    %v1331 = vsub.f32 %v1321, %v1329
    %v1332 = vsub.f32 %v1322, %v1330
    %v1333 = vmul.f32 %v1331, %v1331
    %v1334 = vmul.f32 %v1332, %v1332
    %v1335 = vsel %vm88, %v1333, 0.0
    %1336 = vadd.xlane.f32.xlu0 %v1335
    %v1337 = vpop.xlane.xlu0 %1336
    %v1338 = vsel %vm88, %v1334, 0.0
    %1339 = vadd.xlane.f32.xlu0 %v1338
    %v1340 = vpop.xlane.xlu0 %1339
    %v1341 = vmul.f32 %v1337, %v1115
    %v1342 = vmul.f32 %v1340, %v1115
    %v1343 = vadd.f32 %v1341, 1e-05
    %v1344 = vadd.f32 %v1342, 1e-05
    %v1345 = vrsqrt.pop %v1343
    %v1346 = vrsqrt.pop %v1344
    %v1347 = vmul.f32 %v1331, %v1345
    %v1348 = vmul.f32 %v1332, %v1346
    %v1349 = vlaneseq
    %v1350 = vshrl.u32 %v1349, 7
    %v1351 = vsub.s32 0, %v1350
    %v1352 = vrot.slane %v82, %v1351
    %v1353 = vmul.f32 %v1347, %v1352
    %v1354 = vmul.f32 %v1348, %v1352
    %v1355 = vlaneseq
    %v1356 = vshrl.u32 %v1355, 7
    %v1357 = vsub.s32 0, %v1356
    %v1358 = vrot.slane %v83, %v1357
    %v1359 = vadd.f32 %v1353, %v1358
    %v1360 = vadd.f32 %v1354, %v1358
    %v1361 = vld [vmem:[#allocation2 + $0xa8] sm:$0xff]
    %v1362 = vld [vmem:[#allocation2 + $0xb0] sm:$0xff]
    %v1363 = vld [vmem:[#allocation2 + $0xb8] sm:$0xff]
    %v1364 = vld [vmem:[#allocation2 + $0xc0] sm:$0xff]
    %v1365 = vld [vmem:[#allocation2 + $0xc8] sm:$0xff]
    %v1366 = vld [vmem:[#allocation2 + $0xd0] sm:$0xff]
    %v1367 = vld [vmem:[#allocation2 + $0xd8] sm:$0xff]
    %v1368 = vld [vmem:[#allocation2 + $0xe0] sm:$0xff]
    %v1369 = vld [vmem:[#allocation2 + $0xe8] sm:$0xff]
    %v1370 = vld [vmem:[#allocation2 + $0xf0] sm:$0xff]
    %v1371 = vld [vmem:[#allocation2 + $0xf8] sm:$0xff]
    %v1372 = vld [vmem:[#allocation2 + $0x100] sm:$0xff]
    %v1373 = vld [vmem:[#allocation2 + $0x108] sm:$0xff]
    %v1374 = vld [vmem:[#allocation2 + $0x110] sm:$0xff]
    %v1375 = vld [vmem:[#allocation2 + $0x118] sm:$0xff]
    %v1376 = vld [vmem:[#allocation2 + $0x120] sm:$0xff]
    %v1377 = vld [vmem:[#allocation2 + $0x128] sm:$0xff]
    %v1378 = vld [vmem:[#allocation2 + $0x130] sm:$0xff]
    %v1379 = vld [vmem:[#allocation2 + $0x138] sm:$0xff]
    %v1380 = vld [vmem:[#allocation2 + $0x140] sm:$0xff]
    %v1381 = vld [vmem:[#allocation2 + $0x148] sm:$0x1]
    %v1382 = vld [vmem:[#allocation2 + $0x149] sm:$0x1]
    %v1383 = vld [vmem:[#allocation2 + $0x14a] sm:$0x1]
    %v1384 = vld [vmem:[#allocation2 + $0x14b] sm:$0x1]
    %v1385 = vld [vmem:[#allocation2 + $0x14c] sm:$0x1]
    %v1386 = vld [vmem:[#allocation2 + $0x14d] sm:$0x1]
    %v1387 = vld [vmem:[#allocation2 + $0x14e] sm:$0x1]
    %v1388 = vld [vmem:[#allocation2 + $0x14f] sm:$0x1]
    %v1389 = vlaneseq
    %v1390 = vshrl.u32 %v1389, 7
    %v1391 = vsub.s32 0, %v1390
    %v1392 = vrot.slane %v1381, %v1391
    %v1394 = vsel %vm88, %v1359, 0
    %v1397 = vsel %vm88, %v1360, 0
    %1399 = vmatprep.subr.mxu0 0.0
    %1400 = vmatpush1.msra.mxu0 %v1361
    %1401 = vmatprep.subr.mxu0 0.0
    %1402 = vmatpush1.msra.mxu0 %v1362
    %1403 = vmatprep.subr.mxu0 0.0
    %1404 = vmatpush1.msra.mxu0 %v1363
    %1405 = vmatprep.subr.mxu0 0.0
    %1406 = vmatpush1.msra.mxu0 %v1364
    %1407 = vmatprep.subr.mxu0 0.0
    %1408 = vmatpush1.msra.mxu0 0.0
    %1409 = vmatprep.subr.mxu0 0.0
    %1410 = vmatpush1.msra.mxu0 0.0
    %1411 = vmatprep.subr.mxu0 0.0
    %1412 = vmatpush1.msra.mxu0 0.0
    %1413 = vmatprep.subr.mxu0 0.0
    %1414 = vmatpush1.msra.mxu0 0.0
    %1415 = vmatprep.subr.mxu0 0.0
    %1416 = vmatpush1.msra.mxu0 0.0
    %1417 = vmatprep.subr.mxu0 0.0
    %1418 = vmatpush1.msra.mxu0 0.0
    %1419 = vmatprep.subr.mxu0 0.0
    %1420 = vmatpush1.msra.mxu0 0.0
    %1421 = vmatprep.subr.mxu0 0.0
    %1422 = vmatpush1.msra.mxu0 0.0
    %1423 = vmatprep.subr.mxu0 0.0
    %1424 = vmatpush1.msra.mxu0 0.0
    %1425 = vmatprep.subr.mxu0 0.0
    %1426 = vmatpush1.msra.mxu0 0.0
    %1427 = vmatprep.subr.mxu0 0.0
    %1428 = vmatpush1.msra.mxu0 0.0
    %1429 = vmatprep.subr.mxu0 0.0
    %1430 = vmatpush1.msra.mxu0 0.0
    %1431 = vmatprep.subr.mxu0 0.0
    %1432 = vmatpush1.msra.mxu0 0.0
    %1433 = vmatprep.subr.mxu0 0.0
    %1434 = vmatpush1.msra.mxu0 0.0
    %1435 = vmatprep.subr.mxu0 0.0
    %1436 = vmatpush1.msra.mxu0 0.0
    %1437 = vmatprep.subr.mxu0 0.0
    %1438 = vmatpush1.msra.mxu0 0.0
    %1439 = vmatprep.subr.mxu0 0.0
    %1440 = vmatpush1.msra.mxu0 0.0
    %1441 = vmatprep.subr.mxu0 0.0
    %1442 = vmatpush1.msra.mxu0 0.0
    %1443 = vmatprep.subr.mxu0 0.0
    %1444 = vmatpush1.msra.mxu0 0.0
    %1445 = vmatprep.subr.mxu0 0.0
    %1446 = vmatpush1.msra.mxu0 0.0
    %1447 = vmatprep.subr.mxu0 0.0
    %1448 = vmatpush1.msra.mxu0 0.0
    %1449 = vmatprep.subr.mxu0 0.0
    %1450 = vmatpush1.msra.mxu0 0.0
    %1451 = vmatprep.subr.mxu0 0.0
    %1452 = vmatpush1.msra.mxu0 0.0
    %1453 = vmatprep.subr.mxu0 0.0
    %1454 = vmatpush1.msra.mxu0 0.0
    %1455 = vmatprep.subr.mxu0 0.0
    %1456 = vmatpush1.msra.mxu0 0.0
    %1457 = vmatprep.subr.mxu0 0.0
    %1458 = vmatpush1.msra.mxu0 0.0
    %1459 = vmatprep.subr.mxu0 0.0
    %1460 = vmatpush1.msra.mxu0 0.0
    %1461 = vmatprep.subr.mxu0 0.0
    %1462 = vmatpush1.msra.mxu0 0.0
    %1463 = vmatprep.mubr.f32.mxu0 0.0
    %1464 = vmatmul.mubr.f32.gmra.mrb[0].mxu0 %v1394
    %v1465 = vpop.f32.mrb[0].mxu0
    %v1466 = vadd.f32 %v1392, %v1465
    %v1467 = vpop.f32.mrb[0].mxu0
    %1468 = vmatprep.mubr.f32.mxu0 0.0
    %1469 = vmatmul.mubr.f32.gmra.mrb[0].mxu0 %v1397
    %v1470 = vpop.f32.mrb[0].mxu0
    %v1471 = vadd.f32 %v1392, %v1470
    %v1472 = vpop.f32.mrb[0].mxu0
    %1473 = vdwg.mxu0
    %1476 = vrot.lane.b32.xlu0 %v1466, 96
    %v1477 = vpop.permute.xlu0 %1476
    %1478 = vrot.lane.b32.xlu0 %v1471, 96
    %v1479 = vpop.permute.xlu0 %1478
    %v1480 = vsel %vm176, %v1466, 0
    %v1482 = vsel %vm176, %v1471, 0
    %v1484 = vsel %vm176, %v1477, 0
    %v1486 = vsel %vm176, %v1479, 0
    %1488 = vmatprep.subr.mxu0 0.0
    %1489 = vmatpush1.xpose.msra.mxu0 %v1484
    %1490 = vmatprep.subr.mxu0 0.0
    %1491 = vmatpush1.xpose.msra.mxu0 %v1486
    %1492 = vmatprep.subr.mxu0 0.0
    %1493 = vmatpush1.xpose.msra.mxu0 0.0
    %1494 = vmatprep.subr.mxu0 0.0
    %1495 = vmatpush1.xpose.msra.mxu0 0.0
    %1496 = vmatprep.subr.mxu0 0.0
    %1497 = vmatpush1.xpose.msra.mxu0 0.0
    %1498 = vmatprep.subr.mxu0 0.0
    %1499 = vmatpush1.xpose.msra.mxu0 0.0
    %1500 = vmatprep.subr.mxu0 0.0
    %1501 = vmatpush1.xpose.msra.mxu0 0.0
    %1502 = vmatprep.subr.mxu0 0.0
    %1503 = vmatpush1.xpose.msra.mxu0 0.0
    %1504 = vmatprep.subr.mxu0 0.0
    %1505 = vmatpush1.xpose.msra.mxu0 0.0
    %1506 = vmatprep.subr.mxu0 0.0
    %1507 = vmatpush1.xpose.msra.mxu0 0.0
    %1508 = vmatprep.subr.mxu0 0.0
    %1509 = vmatpush1.xpose.msra.mxu0 0.0
    %1510 = vmatprep.subr.mxu0 0.0
    %1511 = vmatpush1.xpose.msra.mxu0 0.0
    %1512 = vmatprep.subr.mxu0 0.0
    %1513 = vmatpush1.xpose.msra.mxu0 0.0
    %1514 = vmatprep.subr.mxu0 0.0
    %1515 = vmatpush1.xpose.msra.mxu0 0.0
    %1516 = vmatprep.subr.mxu0 0.0
    %1517 = vmatpush1.xpose.msra.mxu0 0.0
    %1518 = vmatprep.subr.mxu0 0.0
    %1519 = vmatpush1.xpose.msra.mxu0 0.0
    %1520 = vmatprep.subr.mxu0 0.0
    %1521 = vmatpush1.xpose.msra.mxu0 0.0
    %1522 = vmatprep.subr.mxu0 0.0
    %1523 = vmatpush1.xpose.msra.mxu0 0.0
    %1524 = vmatprep.subr.mxu0 0.0
    %1525 = vmatpush1.xpose.msra.mxu0 0.0
    %1526 = vmatprep.subr.mxu0 0.0
    %1527 = vmatpush1.xpose.msra.mxu0 0.0
    %1528 = vmatprep.subr.mxu0 0.0
    %1529 = vmatpush1.xpose.msra.mxu0 0.0
    %1530 = vmatprep.subr.mxu0 0.0
    %1531 = vmatpush1.xpose.msra.mxu0 0.0
    %1532 = vmatprep.subr.mxu0 0.0
    %1533 = vmatpush1.xpose.msra.mxu0 0.0
    %1534 = vmatprep.subr.mxu0 0.0
    %1535 = vmatpush1.xpose.msra.mxu0 0.0
    %1536 = vmatprep.subr.mxu0 0.0
    %1537 = vmatpush1.xpose.msra.mxu0 0.0
    %1538 = vmatprep.subr.mxu0 0.0
    %1539 = vmatpush1.xpose.msra.mxu0 0.0
    %1540 = vmatprep.subr.mxu0 0.0
    %1541 = vmatpush1.xpose.msra.mxu0 0.0
    %1542 = vmatprep.subr.mxu0 0.0
    %1543 = vmatpush1.xpose.msra.mxu0 0.0
    %1544 = vmatprep.subr.mxu0 0.0
    %1545 = vmatpush1.xpose.msra.mxu0 0.0
    %1546 = vmatprep.subr.mxu0 0.0
    %1547 = vmatpush1.xpose.msra.mxu0 0.0
    %1548 = vmatprep.subr.mxu0 0.0
    %1549 = vmatpush1.xpose.msra.mxu0 0.0
    %1550 = vmatprep.subr.mxu0 0.0
    %1551 = vmatpush1.xpose.msra.mxu0 0.0
    %1552 = vmatprep.mubr.f32.mxu0 0.0
    %1553 = vmatmul.mubr.f32.gmra.mrb[0].mxu0 %v1480
    %v1554 = vpop.f32.mrb[0].mxu0
    %v1555 = vadd.f32 %v29, %v1554
    %v1556 = vpop.f32.mrb[0].mxu0
    %1557 = vmatprep.mubr.f32.mxu0 0.0
    %1558 = vmatmul.mubr.f32.gmra.mrb[0].mxu0 %v1482
    %v1559 = vpop.f32.mrb[0].mxu0
    %v1560 = vadd.f32 %v30, %v1559
    %v1561 = vpop.f32.mrb[0].mxu0
    %1562 = vdwg.mxu0
    %v1563 = vsel %vm260, %v1555, -inf
    %1564 = vmax.xlane.f32.xlu0 %v1563
    %v1565 = vpop.xlane.xlu0 %1564
    %v1566 = vsel %vm260, %v1560, -inf
    %1567 = vmax.xlane.f32.xlu0 %v1566
    %v1568 = vpop.xlane.xlu0 %1567
    %v1569 = vsub.f32 %v1555, %v1565
    %v1570 = vsub.f32 %v1560, %v1568
    %v1571 = vmul.f32 %v1569, 1.442695
    %v1572 = vpow.pop %v1571
    %v1573 = vmul.f32 %v1570, 1.442695
    %v1574 = vpow.pop %v1573
    %v1575 = vsel %vm260, %v1572, 0.0
    %1576 = vadd.xlane.f32.xlu0 %v1575
    %v1577 = vpop.xlane.xlu0 %1576
    %v1578 = vsel %vm260, %v1574, 0.0
    %1579 = vadd.xlane.f32.xlu0 %v1578
    %v1580 = vpop.xlane.xlu0 %1579
    %v1581 = vrcp.pop %v1577
    %v1582 = vrcp.pop %v1580
    %v1583 = vmul.f32 %v1572, %v1581
    %v1584 = vmul.f32 %v1574, %v1582
    %v1585 = vmul.f32 %v1466, %v289
    %v1586 = vmul.f32 %v1471, %v289
    %1587 = vrot.lane.b32.xlu0 %v1466, 120
    %v1588 = vpop.permute.xlu0 %1587
    %1589 = vrot.lane.b32.xlu0 %v1471, 120
    %v1590 = vpop.permute.xlu0 %1589
    %1591 = vrot.lane.b32.xlu0 %v1466, 88
    %v1592 = vpop.permute.xlu0 %1591
    %1593 = vrot.lane.b32.xlu0 %v1471, 88
    %v1594 = vpop.permute.xlu0 %1593
    %v1595 = vsel %vm176, %v1588, 0
    %v1597 = vsel %vm176, %v1590, 0
    %v1599 = vsel %vm176, %v1592, 0
    %v1601 = vsel %vm176, %v1594, 0
    %1603 = vmatprep.subr.mxu0 0.0
    %1604 = vmatpush1.xpose.msra.mxu0 %v1599
    %1605 = vmatprep.subr.mxu0 0.0
    %1606 = vmatpush1.xpose.msra.mxu0 %v1601
    %1607 = vmatprep.subr.mxu0 0.0
    %1608 = vmatpush1.xpose.msra.mxu0 0.0
    %1609 = vmatprep.subr.mxu0 0.0
    %1610 = vmatpush1.xpose.msra.mxu0 0.0
    %1611 = vmatprep.subr.mxu0 0.0
    %1612 = vmatpush1.xpose.msra.mxu0 0.0
    %1613 = vmatprep.subr.mxu0 0.0
    %1614 = vmatpush1.xpose.msra.mxu0 0.0
    %1615 = vmatprep.subr.mxu0 0.0
    %1616 = vmatpush1.xpose.msra.mxu0 0.0
    %1617 = vmatprep.subr.mxu0 0.0
    %1618 = vmatpush1.xpose.msra.mxu0 0.0
    %1619 = vmatprep.subr.mxu0 0.0
    %1620 = vmatpush1.xpose.msra.mxu0 0.0
    %1621 = vmatprep.subr.mxu0 0.0
    %1622 = vmatpush1.xpose.msra.mxu0 0.0
    %1623 = vmatprep.subr.mxu0 0.0
    %1624 = vmatpush1.xpose.msra.mxu0 0.0
    %1625 = vmatprep.subr.mxu0 0.0
    %1626 = vmatpush1.xpose.msra.mxu0 0.0
    %1627 = vmatprep.subr.mxu0 0.0
    %1628 = vmatpush1.xpose.msra.mxu0 0.0
    %1629 = vmatprep.subr.mxu0 0.0
    %1630 = vmatpush1.xpose.msra.mxu0 0.0
    %1631 = vmatprep.subr.mxu0 0.0
    %1632 = vmatpush1.xpose.msra.mxu0 0.0
    %1633 = vmatprep.subr.mxu0 0.0
    %1634 = vmatpush1.xpose.msra.mxu0 0.0
    %1635 = vmatprep.subr.mxu0 0.0
    %1636 = vmatpush1.xpose.msra.mxu0 0.0
    %1637 = vmatprep.subr.mxu0 0.0
    %1638 = vmatpush1.xpose.msra.mxu0 0.0
    %1639 = vmatprep.subr.mxu0 0.0
    %1640 = vmatpush1.xpose.msra.mxu0 0.0
    %1641 = vmatprep.subr.mxu0 0.0
    %1642 = vmatpush1.xpose.msra.mxu0 0.0
    %1643 = vmatprep.subr.mxu0 0.0
    %1644 = vmatpush1.xpose.msra.mxu0 0.0
    %1645 = vmatprep.subr.mxu0 0.0
    %1646 = vmatpush1.xpose.msra.mxu0 0.0
    %1647 = vmatprep.subr.mxu0 0.0
    %1648 = vmatpush1.xpose.msra.mxu0 0.0
    %1649 = vmatprep.subr.mxu0 0.0
    %1650 = vmatpush1.xpose.msra.mxu0 0.0
    %1651 = vmatprep.subr.mxu0 0.0
    %1652 = vmatpush1.xpose.msra.mxu0 0.0
    %1653 = vmatprep.subr.mxu0 0.0
    %1654 = vmatpush1.xpose.msra.mxu0 0.0
    %1655 = vmatprep.subr.mxu0 0.0
    %1656 = vmatpush1.xpose.msra.mxu0 0.0
    %1657 = vmatprep.subr.mxu0 0.0
    %1658 = vmatpush1.xpose.msra.mxu0 0.0
    %1659 = vmatprep.subr.mxu0 0.0
    %1660 = vmatpush1.xpose.msra.mxu0 0.0
    %1661 = vmatprep.subr.mxu0 0.0
    %1662 = vmatpush1.xpose.msra.mxu0 0.0
    %1663 = vmatprep.subr.mxu0 0.0
    %1664 = vmatpush1.xpose.msra.mxu0 0.0
    %1665 = vmatprep.subr.mxu0 0.0
    %1666 = vmatpush1.xpose.msra.mxu0 0.0
    %1667 = vmatprep.mubr.f32.mxu0 0.0
    %1668 = vmatmul.mubr.f32.gmra.mrb[0].mxu0 %v1595
    %v1669 = vpop.f32.mrb[0].mxu0
    %v1670 = vadd.f32 %v29, %v1669
    %v1671 = vpop.f32.mrb[0].mxu0
    %1672 = vmatprep.mubr.f32.mxu0 0.0
    %1673 = vmatmul.mubr.f32.gmra.mrb[0].mxu0 %v1597
    %v1674 = vpop.f32.mrb[0].mxu0
    %v1675 = vadd.f32 %v30, %v1674
    %v1676 = vpop.f32.mrb[0].mxu0
    %1677 = vdwg.mxu0
    %v1678 = vsel %vm260, %v1670, -inf
    %1679 = vmax.xlane.f32.xlu0 %v1678
    %v1680 = vpop.xlane.xlu0 %1679
    %v1681 = vsel %vm260, %v1675, -inf
    %1682 = vmax.xlane.f32.xlu0 %v1681
    %v1683 = vpop.xlane.xlu0 %1682
    %v1684 = vsub.f32 %v1670, %v1680
    %v1685 = vsub.f32 %v1675, %v1683
    %v1686 = vmul.f32 %v1684, 1.442695
    %v1687 = vpow.pop %v1686
    %v1688 = vmul.f32 %v1685, 1.442695
    %v1689 = vpow.pop %v1688
    %v1690 = vsel %vm260, %v1687, 0.0
    %1691 = vadd.xlane.f32.xlu0 %v1690
    %v1692 = vpop.xlane.xlu0 %1691
    %v1693 = vsel %vm260, %v1689, 0.0
    %1694 = vadd.xlane.f32.xlu0 %v1693
    %v1695 = vpop.xlane.xlu0 %1694
    %v1696 = vrcp.pop %v1692
    %v1697 = vrcp.pop %v1695
    %v1698 = vmul.f32 %v1687, %v1696
    %v1699 = vmul.f32 %v1689, %v1697
    %v1700 = vmul.f32 %v1466, %v412
    %v1701 = vmul.f32 %v1471, %v412
    %1704 = vrot.lane.b32.xlu0 %v1700, 64
    %v1705 = vpop.permute.xlu0 %1704
    %1706 = vrot.lane.b32.xlu0 %v1701, 64
    %v1707 = vpop.permute.xlu0 %1706
    %v1711 = vsel %vm260, %v1698, 0
    %v1714 = vsel %vm260, %v1699, 0
    %1716 = vmatprep.subr.mxu0 0.0
    %1717 = vmatpush1.msra.mxu0 %v1705
    %1718 = vmatprep.subr.mxu0 0.0
    %1719 = vmatpush1.msra.mxu0 %v1707
    %1720 = vmatprep.subr.mxu0 0.0
    %1721 = vmatpush1.msra.mxu0 0.0
    %1722 = vmatprep.subr.mxu0 0.0
    %1723 = vmatpush1.msra.mxu0 0.0
    %1724 = vmatprep.subr.mxu0 0.0
    %1725 = vmatpush1.msra.mxu0 0.0
    %1726 = vmatprep.subr.mxu0 0.0
    %1727 = vmatpush1.msra.mxu0 0.0
    %1728 = vmatprep.subr.mxu0 0.0
    %1729 = vmatpush1.msra.mxu0 0.0
    %1730 = vmatprep.subr.mxu0 0.0
    %1731 = vmatpush1.msra.mxu0 0.0
    %1732 = vmatprep.subr.mxu0 0.0
    %1733 = vmatpush1.msra.mxu0 0.0
    %1734 = vmatprep.subr.mxu0 0.0
    %1735 = vmatpush1.msra.mxu0 0.0
    %1736 = vmatprep.subr.mxu0 0.0
    %1737 = vmatpush1.msra.mxu0 0.0
    %1738 = vmatprep.subr.mxu0 0.0
    %1739 = vmatpush1.msra.mxu0 0.0
    %1740 = vmatprep.subr.mxu0 0.0
    %1741 = vmatpush1.msra.mxu0 0.0
    %1742 = vmatprep.subr.mxu0 0.0
    %1743 = vmatpush1.msra.mxu0 0.0
    %1744 = vmatprep.subr.mxu0 0.0
    %1745 = vmatpush1.msra.mxu0 0.0
    %1746 = vmatprep.subr.mxu0 0.0
    %1747 = vmatpush1.msra.mxu0 0.0
    %1748 = vmatprep.subr.mxu0 0.0
    %1749 = vmatpush1.msra.mxu0 0.0
    %1750 = vmatprep.subr.mxu0 0.0
    %1751 = vmatpush1.msra.mxu0 0.0
    %1752 = vmatprep.subr.mxu0 0.0
    %1753 = vmatpush1.msra.mxu0 0.0
    %1754 = vmatprep.subr.mxu0 0.0
    %1755 = vmatpush1.msra.mxu0 0.0
    %1756 = vmatprep.subr.mxu0 0.0
    %1757 = vmatpush1.msra.mxu0 0.0
    %1758 = vmatprep.subr.mxu0 0.0
    %1759 = vmatpush1.msra.mxu0 0.0
    %1760 = vmatprep.subr.mxu0 0.0
    %1761 = vmatpush1.msra.mxu0 0.0
    %1762 = vmatprep.subr.mxu0 0.0
    %1763 = vmatpush1.msra.mxu0 0.0
    %1764 = vmatprep.subr.mxu0 0.0
    %1765 = vmatpush1.msra.mxu0 0.0
    %1766 = vmatprep.subr.mxu0 0.0
    %1767 = vmatpush1.msra.mxu0 0.0
    %1768 = vmatprep.subr.mxu0 0.0
    %1769 = vmatpush1.msra.mxu0 0.0
    %1770 = vmatprep.subr.mxu0 0.0
    %1771 = vmatpush1.msra.mxu0 0.0
    %1772 = vmatprep.subr.mxu0 0.0
    %1773 = vmatpush1.msra.mxu0 0.0
    %1774 = vmatprep.subr.mxu0 0.0
    %1775 = vmatpush1.msra.mxu0 0.0
    %1776 = vmatprep.subr.mxu0 0.0
    %1777 = vmatpush1.msra.mxu0 0.0
    %1778 = vmatprep.subr.mxu0 0.0
    %1779 = vmatpush1.msra.mxu0 0.0
    %1780 = vmatprep.mubr.f32.mxu0 0.0
    %1781 = vmatmul.mubr.f32.gmra.mrb[0].mxu0 %v1711
    %v1782 = vpop.f32.mrb[0].mxu0
    %v1783 = vadd.f32 0.0, %v1782
    %v1784 = vpop.f32.mrb[0].mxu0
    %1785 = vmatprep.mubr.f32.mxu0 0.0
    %1786 = vmatmul.mubr.f32.gmra.mrb[0].mxu0 %v1714
    %v1787 = vpop.f32.mrb[0].mxu0
    %v1788 = vadd.f32 0.0, %v1787
    %v1789 = vpop.f32.mrb[0].mxu0
    %1790 = vdwg.mxu0
    %1793 = vrot.lane.b32.xlu0 %v1585, 64
    %v1794 = vpop.permute.xlu0 %1793
    %1795 = vrot.lane.b32.xlu0 %v1586, 64
    %v1796 = vpop.permute.xlu0 %1795
    %v1800 = vsel %vm260, %v1583, 0
    %v1803 = vsel %vm260, %v1584, 0
    %1805 = vmatprep.subr.mxu0 0.0
    %1806 = vmatpush1.msra.mxu0 %v1794
    %1807 = vmatprep.subr.mxu0 0.0
    %1808 = vmatpush1.msra.mxu0 %v1796
    %1809 = vmatprep.subr.mxu0 0.0
    %1810 = vmatpush1.msra.mxu0 0.0
    %1811 = vmatprep.subr.mxu0 0.0
    %1812 = vmatpush1.msra.mxu0 0.0
    %1813 = vmatprep.subr.mxu0 0.0
    %1814 = vmatpush1.msra.mxu0 0.0
    %1815 = vmatprep.subr.mxu0 0.0
    %1816 = vmatpush1.msra.mxu0 0.0
    %1817 = vmatprep.subr.mxu0 0.0
    %1818 = vmatpush1.msra.mxu0 0.0
    %1819 = vmatprep.subr.mxu0 0.0
    %1820 = vmatpush1.msra.mxu0 0.0
    %1821 = vmatprep.subr.mxu0 0.0
    %1822 = vmatpush1.msra.mxu0 0.0
    %1823 = vmatprep.subr.mxu0 0.0
    %1824 = vmatpush1.msra.mxu0 0.0
    %1825 = vmatprep.subr.mxu0 0.0
    %1826 = vmatpush1.msra.mxu0 0.0
    %1827 = vmatprep.subr.mxu0 0.0
    %1828 = vmatpush1.msra.mxu0 0.0
    %1829 = vmatprep.subr.mxu0 0.0
    %1830 = vmatpush1.msra.mxu0 0.0
    %1831 = vmatprep.subr.mxu0 0.0
    %1832 = vmatpush1.msra.mxu0 0.0
    %1833 = vmatprep.subr.mxu0 0.0
    %1834 = vmatpush1.msra.mxu0 0.0
    %1835 = vmatprep.subr.mxu0 0.0
    %1836 = vmatpush1.msra.mxu0 0.0
    %1837 = vmatprep.subr.mxu0 0.0
    %1838 = vmatpush1.msra.mxu0 0.0
    %1839 = vmatprep.subr.mxu0 0.0
    %1840 = vmatpush1.msra.mxu0 0.0
    %1841 = vmatprep.subr.mxu0 0.0
    %1842 = vmatpush1.msra.mxu0 0.0
    %1843 = vmatprep.subr.mxu0 0.0
    %1844 = vmatpush1.msra.mxu0 0.0
    %1845 = vmatprep.subr.mxu0 0.0
    %1846 = vmatpush1.msra.mxu0 0.0
    %1847 = vmatprep.subr.mxu0 0.0
    %1848 = vmatpush1.msra.mxu0 0.0
    %1849 = vmatprep.subr.mxu0 0.0
    %1850 = vmatpush1.msra.mxu0 0.0
    %1851 = vmatprep.subr.mxu0 0.0
    %1852 = vmatpush1.msra.mxu0 0.0
    %1853 = vmatprep.subr.mxu0 0.0
    %1854 = vmatpush1.msra.mxu0 0.0
    %1855 = vmatprep.subr.mxu0 0.0
    %1856 = vmatpush1.msra.mxu0 0.0
    %1857 = vmatprep.subr.mxu0 0.0
    %1858 = vmatpush1.msra.mxu0 0.0
    %1859 = vmatprep.subr.mxu0 0.0
    %1860 = vmatpush1.msra.mxu0 0.0
    %1861 = vmatprep.subr.mxu0 0.0
    %1862 = vmatpush1.msra.mxu0 0.0
    %1863 = vmatprep.subr.mxu0 0.0
    %1864 = vmatpush1.msra.mxu0 0.0
    %1865 = vmatprep.subr.mxu0 0.0
    %1866 = vmatpush1.msra.mxu0 0.0
    %1867 = vmatprep.subr.mxu0 0.0
    %1868 = vmatpush1.msra.mxu0 0.0
    %1869 = vmatprep.mubr.f32.mxu0 0.0
    %1870 = vmatmul.mubr.f32.gmra.mrb[0].mxu0 %v1800
    %v1871 = vpop.f32.mrb[0].mxu0
    %v1872 = vadd.f32 %v1783, %v1871
    %v1873 = vpop.f32.mrb[0].mxu0
    %1874 = vmatprep.mubr.f32.mxu0 0.0
    %1875 = vmatmul.mubr.f32.gmra.mrb[0].mxu0 %v1803
    %v1876 = vpop.f32.mrb[0].mxu0
    %v1877 = vadd.f32 %v1788, %v1876
    %v1878 = vpop.f32.mrb[0].mxu0
    %1879 = vdwg.mxu0
    %1880 = vrot.lane.b32.xlu0 %v1466, 112
    %v1881 = vpop.permute.xlu0 %1880
    %1882 = vrot.lane.b32.xlu0 %v1471, 112
    %v1883 = vpop.permute.xlu0 %1882
    %1884 = vrot.lane.b32.xlu0 %v1466, 80
    %v1885 = vpop.permute.xlu0 %1884
    %1886 = vrot.lane.b32.xlu0 %v1471, 80
    %v1887 = vpop.permute.xlu0 %1886
    %v1888 = vsel %vm176, %v1881, 0
    %v1890 = vsel %vm176, %v1883, 0
    %v1892 = vsel %vm176, %v1885, 0
    %v1894 = vsel %vm176, %v1887, 0
    %1896 = vmatprep.subr.mxu0 0.0
    %1897 = vmatpush1.xpose.msra.mxu0 %v1892
    %1898 = vmatprep.subr.mxu0 0.0
    %1899 = vmatpush1.xpose.msra.mxu0 %v1894
    %1900 = vmatprep.subr.mxu0 0.0
    %1901 = vmatpush1.xpose.msra.mxu0 0.0
    %1902 = vmatprep.subr.mxu0 0.0
    %1903 = vmatpush1.xpose.msra.mxu0 0.0
    %1904 = vmatprep.subr.mxu0 0.0
    %1905 = vmatpush1.xpose.msra.mxu0 0.0
    %1906 = vmatprep.subr.mxu0 0.0
    %1907 = vmatpush1.xpose.msra.mxu0 0.0
    %1908 = vmatprep.subr.mxu0 0.0
    %1909 = vmatpush1.xpose.msra.mxu0 0.0
    %1910 = vmatprep.subr.mxu0 0.0
    %1911 = vmatpush1.xpose.msra.mxu0 0.0
    %1912 = vmatprep.subr.mxu0 0.0
    %1913 = vmatpush1.xpose.msra.mxu0 0.0
    %1914 = vmatprep.subr.mxu0 0.0
    %1915 = vmatpush1.xpose.msra.mxu0 0.0
    %1916 = vmatprep.subr.mxu0 0.0
    %1917 = vmatpush1.xpose.msra.mxu0 0.0
    %1918 = vmatprep.subr.mxu0 0.0
    %1919 = vmatpush1.xpose.msra.mxu0 0.0
    %1920 = vmatprep.subr.mxu0 0.0
    %1921 = vmatpush1.xpose.msra.mxu0 0.0
    %1922 = vmatprep.subr.mxu0 0.0
    %1923 = vmatpush1.xpose.msra.mxu0 0.0
    %1924 = vmatprep.subr.mxu0 0.0
    %1925 = vmatpush1.xpose.msra.mxu0 0.0
    %1926 = vmatprep.subr.mxu0 0.0
    %1927 = vmatpush1.xpose.msra.mxu0 0.0
    %1928 = vmatprep.subr.mxu0 0.0
    %1929 = vmatpush1.xpose.msra.mxu0 0.0
    %1930 = vmatprep.subr.mxu0 0.0
    %1931 = vmatpush1.xpose.msra.mxu0 0.0
    %1932 = vmatprep.subr.mxu0 0.0
    %1933 = vmatpush1.xpose.msra.mxu0 0.0
    %1934 = vmatprep.subr.mxu0 0.0
    %1935 = vmatpush1.xpose.msra.mxu0 0.0
    %1936 = vmatprep.subr.mxu0 0.0
    %1937 = vmatpush1.xpose.msra.mxu0 0.0
    %1938 = vmatprep.subr.mxu0 0.0
    %1939 = vmatpush1.xpose.msra.mxu0 0.0
    %1940 = vmatprep.subr.mxu0 0.0
    %1941 = vmatpush1.xpose.msra.mxu0 0.0
    %1942 = vmatprep.subr.mxu0 0.0
    %1943 = vmatpush1.xpose.msra.mxu0 0.0
    %1944 = vmatprep.subr.mxu0 0.0
    %1945 = vmatpush1.xpose.msra.mxu0 0.0
    %1946 = vmatprep.subr.mxu0 0.0
    %1947 = vmatpush1.xpose.msra.mxu0 0.0
    %1948 = vmatprep.subr.mxu0 0.0
    %1949 = vmatpush1.xpose.msra.mxu0 0.0
    %1950 = vmatprep.subr.mxu0 0.0
    %1951 = vmatpush1.xpose.msra.mxu0 0.0
    %1952 = vmatprep.subr.mxu0 0.0
    %1953 = vmatpush1.xpose.msra.mxu0 0.0
    %1954 = vmatprep.subr.mxu0 0.0
    %1955 = vmatpush1.xpose.msra.mxu0 0.0
    %1956 = vmatprep.subr.mxu0 0.0
    %1957 = vmatpush1.xpose.msra.mxu0 0.0
    %1958 = vmatprep.subr.mxu0 0.0
    %1959 = vmatpush1.xpose.msra.mxu0 0.0
    %1960 = vmatprep.mubr.f32.mxu0 0.0
    %1961 = vmatmul.mubr.f32.gmra.mrb[0].mxu0 %v1888
    %v1962 = vpop.f32.mrb[0].mxu0
    %v1963 = vadd.f32 %v29, %v1962
    %v1964 = vpop.f32.mrb[0].mxu0
    %1965 = vmatprep.mubr.f32.mxu0 0.0
    %1966 = vmatmul.mubr.f32.gmra.mrb[0].mxu0 %v1890
    %v1967 = vpop.f32.mrb[0].mxu0
    %v1968 = vadd.f32 %v30, %v1967
    %v1969 = vpop.f32.mrb[0].mxu0
    %1970 = vdwg.mxu0
    %v1971 = vsel %vm260, %v1963, -inf
    %1972 = vmax.xlane.f32.xlu0 %v1971
    %v1973 = vpop.xlane.xlu0 %1972
    %v1974 = vsel %vm260, %v1968, -inf
    %1975 = vmax.xlane.f32.xlu0 %v1974
    %v1976 = vpop.xlane.xlu0 %1975
    %v1977 = vsub.f32 %v1963, %v1973
    %v1978 = vsub.f32 %v1968, %v1976
    %v1979 = vmul.f32 %v1977, 1.442695
    %v1980 = vpow.pop %v1979
    %v1981 = vmul.f32 %v1978, 1.442695
    %v1982 = vpow.pop %v1981
    %v1983 = vsel %vm260, %v1980, 0.0
    %1984 = vadd.xlane.f32.xlu0 %v1983
    %v1985 = vpop.xlane.xlu0 %1984
    %v1986 = vsel %vm260, %v1982, 0.0
    %1987 = vadd.xlane.f32.xlu0 %v1986
    %v1988 = vpop.xlane.xlu0 %1987
    %v1989 = vrcp.pop %v1985
    %v1990 = vrcp.pop %v1988
    %v1991 = vmul.f32 %v1980, %v1989
    %v1992 = vmul.f32 %v1982, %v1990
    %v1993 = vmul.f32 %v1466, %v713
    %v1994 = vmul.f32 %v1471, %v713
    %1997 = vrot.lane.b32.xlu0 %v1993, 64
    %v1998 = vpop.permute.xlu0 %1997
    %1999 = vrot.lane.b32.xlu0 %v1994, 64
    %v2000 = vpop.permute.xlu0 %1999
    %v2004 = vsel %vm260, %v1991, 0
    %v2007 = vsel %vm260, %v1992, 0
    %2009 = vmatprep.subr.mxu0 0.0
    %2010 = vmatpush1.msra.mxu0 %v1998
    %2011 = vmatprep.subr.mxu0 0.0
    %2012 = vmatpush1.msra.mxu0 %v2000
    %2013 = vmatprep.subr.mxu0 0.0
    %2014 = vmatpush1.msra.mxu0 0.0
    %2015 = vmatprep.subr.mxu0 0.0
    %2016 = vmatpush1.msra.mxu0 0.0
    %2017 = vmatprep.subr.mxu0 0.0
    %2018 = vmatpush1.msra.mxu0 0.0
    %2019 = vmatprep.subr.mxu0 0.0
    %2020 = vmatpush1.msra.mxu0 0.0
    %2021 = vmatprep.subr.mxu0 0.0
    %2022 = vmatpush1.msra.mxu0 0.0
    %2023 = vmatprep.subr.mxu0 0.0
    %2024 = vmatpush1.msra.mxu0 0.0
    %2025 = vmatprep.subr.mxu0 0.0
    %2026 = vmatpush1.msra.mxu0 0.0
    %2027 = vmatprep.subr.mxu0 0.0
    %2028 = vmatpush1.msra.mxu0 0.0
    %2029 = vmatprep.subr.mxu0 0.0
    %2030 = vmatpush1.msra.mxu0 0.0
    %2031 = vmatprep.subr.mxu0 0.0
    %2032 = vmatpush1.msra.mxu0 0.0
    %2033 = vmatprep.subr.mxu0 0.0
    %2034 = vmatpush1.msra.mxu0 0.0
    %2035 = vmatprep.subr.mxu0 0.0
    %2036 = vmatpush1.msra.mxu0 0.0
    %2037 = vmatprep.subr.mxu0 0.0
    %2038 = vmatpush1.msra.mxu0 0.0
    %2039 = vmatprep.subr.mxu0 0.0
    %2040 = vmatpush1.msra.mxu0 0.0
    %2041 = vmatprep.subr.mxu0 0.0
    %2042 = vmatpush1.msra.mxu0 0.0
    %2043 = vmatprep.subr.mxu0 0.0
    %2044 = vmatpush1.msra.mxu0 0.0
    %2045 = vmatprep.subr.mxu0 0.0
    %2046 = vmatpush1.msra.mxu0 0.0
    %2047 = vmatprep.subr.mxu0 0.0
    %2048 = vmatpush1.msra.mxu0 0.0
    %2049 = vmatprep.subr.mxu0 0.0
    %2050 = vmatpush1.msra.mxu0 0.0
    %2051 = vmatprep.subr.mxu0 0.0
    %2052 = vmatpush1.msra.mxu0 0.0
    %2053 = vmatprep.subr.mxu0 0.0
    %2054 = vmatpush1.msra.mxu0 0.0
    %2055 = vmatprep.subr.mxu0 0.0
    %2056 = vmatpush1.msra.mxu0 0.0
    %2057 = vmatprep.subr.mxu0 0.0
    %2058 = vmatpush1.msra.mxu0 0.0
    %2059 = vmatprep.subr.mxu0 0.0
    %2060 = vmatpush1.msra.mxu0 0.0
    %2061 = vmatprep.subr.mxu0 0.0
    %2062 = vmatpush1.msra.mxu0 0.0
    %2063 = vmatprep.subr.mxu0 0.0
    %2064 = vmatpush1.msra.mxu0 0.0
    %2065 = vmatprep.subr.mxu0 0.0
    %2066 = vmatpush1.msra.mxu0 0.0
    %2067 = vmatprep.subr.mxu0 0.0
    %2068 = vmatpush1.msra.mxu0 0.0
    %2069 = vmatprep.subr.mxu0 0.0
    %2070 = vmatpush1.msra.mxu0 0.0
    %2071 = vmatprep.subr.mxu0 0.0
    %2072 = vmatpush1.msra.mxu0 0.0
    %2073 = vmatprep.mubr.f32.mxu0 0.0
    %2074 = vmatmul.mubr.f32.gmra.mrb[0].mxu0 %v2004
    %v2075 = vpop.f32.mrb[0].mxu0
    %v2076 = vadd.f32 0.0, %v2075
    %v2077 = vpop.f32.mrb[0].mxu0
    %2078 = vmatprep.mubr.f32.mxu0 0.0
    %2079 = vmatmul.mubr.f32.gmra.mrb[0].mxu0 %v2007
    %v2080 = vpop.f32.mrb[0].mxu0
    %v2081 = vadd.f32 0.0, %v2080
    %v2082 = vpop.f32.mrb[0].mxu0
    %2083 = vdwg.mxu0
    %v2084 = vadd.f32 %v1872, %v2076
    %v2085 = vadd.f32 %v1877, %v2081
    %2086 = vrot.lane.b32.xlu0 %v1466, 104
    %v2087 = vpop.permute.xlu0 %2086
    %2088 = vrot.lane.b32.xlu0 %v1471, 104
    %v2089 = vpop.permute.xlu0 %2088
    %2090 = vrot.lane.b32.xlu0 %v1466, 72
    %v2091 = vpop.permute.xlu0 %2090
    %2092 = vrot.lane.b32.xlu0 %v1471, 72
    %v2093 = vpop.permute.xlu0 %2092
    %v2094 = vsel %vm176, %v2087, 0
    %v2096 = vsel %vm176, %v2089, 0
    %v2098 = vsel %vm176, %v2091, 0
    %v2100 = vsel %vm176, %v2093, 0
    %2102 = vmatprep.subr.mxu0 0.0
    %2103 = vmatpush1.xpose.msra.mxu0 %v2098
    %2104 = vmatprep.subr.mxu0 0.0
    %2105 = vmatpush1.xpose.msra.mxu0 %v2100
    %2106 = vmatprep.subr.mxu0 0.0
    %2107 = vmatpush1.xpose.msra.mxu0 0.0
    %2108 = vmatprep.subr.mxu0 0.0
    %2109 = vmatpush1.xpose.msra.mxu0 0.0
    %2110 = vmatprep.subr.mxu0 0.0
    %2111 = vmatpush1.xpose.msra.mxu0 0.0
    %2112 = vmatprep.subr.mxu0 0.0
    %2113 = vmatpush1.xpose.msra.mxu0 0.0
    %2114 = vmatprep.subr.mxu0 0.0
    %2115 = vmatpush1.xpose.msra.mxu0 0.0
    %2116 = vmatprep.subr.mxu0 0.0
    %2117 = vmatpush1.xpose.msra.mxu0 0.0
    %2118 = vmatprep.subr.mxu0 0.0
    %2119 = vmatpush1.xpose.msra.mxu0 0.0
    %2120 = vmatprep.subr.mxu0 0.0
    %2121 = vmatpush1.xpose.msra.mxu0 0.0
    %2122 = vmatprep.subr.mxu0 0.0
    %2123 = vmatpush1.xpose.msra.mxu0 0.0
    %2124 = vmatprep.subr.mxu0 0.0
    %2125 = vmatpush1.xpose.msra.mxu0 0.0
    %2126 = vmatprep.subr.mxu0 0.0
    %2127 = vmatpush1.xpose.msra.mxu0 0.0
    %2128 = vmatprep.subr.mxu0 0.0
    %2129 = vmatpush1.xpose.msra.mxu0 0.0
    %2130 = vmatprep.subr.mxu0 0.0
    %2131 = vmatpush1.xpose.msra.mxu0 0.0
    %2132 = vmatprep.subr.mxu0 0.0
    %2133 = vmatpush1.xpose.msra.mxu0 0.0
    %2134 = vmatprep.subr.mxu0 0.0
    %2135 = vmatpush1.xpose.msra.mxu0 0.0
    %2136 = vmatprep.subr.mxu0 0.0
    %2137 = vmatpush1.xpose.msra.mxu0 0.0
    %2138 = vmatprep.subr.mxu0 0.0
    %2139 = vmatpush1.xpose.msra.mxu0 0.0
    %2140 = vmatprep.subr.mxu0 0.0
    %2141 = vmatpush1.xpose.msra.mxu0 0.0
    %2142 = vmatprep.subr.mxu0 0.0
    %2143 = vmatpush1.xpose.msra.mxu0 0.0
    %2144 = vmatprep.subr.mxu0 0.0
    %2145 = vmatpush1.xpose.msra.mxu0 0.0
    %2146 = vmatprep.subr.mxu0 0.0
    %2147 = vmatpush1.xpose.msra.mxu0 0.0
    %2148 = vmatprep.subr.mxu0 0.0
    %2149 = vmatpush1.xpose.msra.mxu0 0.0
    %2150 = vmatprep.subr.mxu0 0.0
    %2151 = vmatpush1.xpose.msra.mxu0 0.0
    %2152 = vmatprep.subr.mxu0 0.0
    %2153 = vmatpush1.xpose.msra.mxu0 0.0
    %2154 = vmatprep.subr.mxu0 0.0
    %2155 = vmatpush1.xpose.msra.mxu0 0.0
    %2156 = vmatprep.subr.mxu0 0.0
    %2157 = vmatpush1.xpose.msra.mxu0 0.0
    %2158 = vmatprep.subr.mxu0 0.0
    %2159 = vmatpush1.xpose.msra.mxu0 0.0
    %2160 = vmatprep.subr.mxu0 0.0
    %2161 = vmatpush1.xpose.msra.mxu0 0.0
    %2162 = vmatprep.subr.mxu0 0.0
    %2163 = vmatpush1.xpose.msra.mxu0 0.0
    %2164 = vmatprep.subr.mxu0 0.0
    %2165 = vmatpush1.xpose.msra.mxu0 0.0
    %2166 = vmatprep.mubr.f32.mxu0 0.0
    %2167 = vmatmul.mubr.f32.gmra.mrb[0].mxu0 %v2094
    %v2168 = vpop.f32.mrb[0].mxu0
    %v2169 = vadd.f32 %v29, %v2168
    %v2170 = vpop.f32.mrb[0].mxu0
    %2171 = vmatprep.mubr.f32.mxu0 0.0
    %2172 = vmatmul.mubr.f32.gmra.mrb[0].mxu0 %v2096
    %v2173 = vpop.f32.mrb[0].mxu0
    %v2174 = vadd.f32 %v30, %v2173
    %v2175 = vpop.f32.mrb[0].mxu0
    %2176 = vdwg.mxu0
    %v2177 = vsel %vm260, %v2169, -inf
    %2178 = vmax.xlane.f32.xlu0 %v2177
    %v2179 = vpop.xlane.xlu0 %2178
    %v2180 = vsel %vm260, %v2174, -inf
    %2181 = vmax.xlane.f32.xlu0 %v2180
    %v2182 = vpop.xlane.xlu0 %2181
    %v2183 = vsub.f32 %v2169, %v2179
    %v2184 = vsub.f32 %v2174, %v2182
    %v2185 = vmul.f32 %v2183, 1.442695
    %v2186 = vpow.pop %v2185
    %v2187 = vmul.f32 %v2184, 1.442695
    %v2188 = vpow.pop %v2187
    %v2189 = vsel %vm260, %v2186, 0.0
    %2190 = vadd.xlane.f32.xlu0 %v2189
    %v2191 = vpop.xlane.xlu0 %2190
    %v2192 = vsel %vm260, %v2188, 0.0
    %2193 = vadd.xlane.f32.xlu0 %v2192
    %v2194 = vpop.xlane.xlu0 %2193
    %v2195 = vrcp.pop %v2191
    %v2196 = vrcp.pop %v2194
    %v2197 = vmul.f32 %v2186, %v2195
    %v2198 = vmul.f32 %v2188, %v2196
    %v2199 = vmul.f32 %v1466, %v927
    %v2200 = vmul.f32 %v1471, %v927
    %2203 = vrot.lane.b32.xlu0 %v2199, 64
    %v2204 = vpop.permute.xlu0 %2203
    %2205 = vrot.lane.b32.xlu0 %v2200, 64
    %v2206 = vpop.permute.xlu0 %2205
    %v2210 = vsel %vm260, %v2197, 0
    %v2213 = vsel %vm260, %v2198, 0
    %2215 = vmatprep.subr.mxu0 0.0
    %2216 = vmatpush1.msra.mxu0 %v2204
    %2217 = vmatprep.subr.mxu0 0.0
    %2218 = vmatpush1.msra.mxu0 %v2206
    %2219 = vmatprep.subr.mxu0 0.0
    %2220 = vmatpush1.msra.mxu0 0.0
    %2221 = vmatprep.subr.mxu0 0.0
    %2222 = vmatpush1.msra.mxu0 0.0
    %2223 = vmatprep.subr.mxu0 0.0
    %2224 = vmatpush1.msra.mxu0 0.0
    %2225 = vmatprep.subr.mxu0 0.0
    %2226 = vmatpush1.msra.mxu0 0.0
    %2227 = vmatprep.subr.mxu0 0.0
    %2228 = vmatpush1.msra.mxu0 0.0
    %2229 = vmatprep.subr.mxu0 0.0
    %2230 = vmatpush1.msra.mxu0 0.0
    %2231 = vmatprep.subr.mxu0 0.0
    %2232 = vmatpush1.msra.mxu0 0.0
    %2233 = vmatprep.subr.mxu0 0.0
    %2234 = vmatpush1.msra.mxu0 0.0
    %2235 = vmatprep.subr.mxu0 0.0
    %2236 = vmatpush1.msra.mxu0 0.0
    %2237 = vmatprep.subr.mxu0 0.0
    %2238 = vmatpush1.msra.mxu0 0.0
    %2239 = vmatprep.subr.mxu0 0.0
    %2240 = vmatpush1.msra.mxu0 0.0
    %2241 = vmatprep.subr.mxu0 0.0
    %2242 = vmatpush1.msra.mxu0 0.0
    %2243 = vmatprep.subr.mxu0 0.0
    %2244 = vmatpush1.msra.mxu0 0.0
    %2245 = vmatprep.subr.mxu0 0.0
    %2246 = vmatpush1.msra.mxu0 0.0
    %2247 = vmatprep.subr.mxu0 0.0
    %2248 = vmatpush1.msra.mxu0 0.0
    %2249 = vmatprep.subr.mxu0 0.0
    %2250 = vmatpush1.msra.mxu0 0.0
    %2251 = vmatprep.subr.mxu0 0.0
    %2252 = vmatpush1.msra.mxu0 0.0
    %2253 = vmatprep.subr.mxu0 0.0
    %2254 = vmatpush1.msra.mxu0 0.0
    %2255 = vmatprep.subr.mxu0 0.0
    %2256 = vmatpush1.msra.mxu0 0.0
    %2257 = vmatprep.subr.mxu0 0.0
    %2258 = vmatpush1.msra.mxu0 0.0
    %2259 = vmatprep.subr.mxu0 0.0
    %2260 = vmatpush1.msra.mxu0 0.0
    %2261 = vmatprep.subr.mxu0 0.0
    %2262 = vmatpush1.msra.mxu0 0.0
    %2263 = vmatprep.subr.mxu0 0.0
    %2264 = vmatpush1.msra.mxu0 0.0
    %2265 = vmatprep.subr.mxu0 0.0
    %2266 = vmatpush1.msra.mxu0 0.0
    %2267 = vmatprep.subr.mxu0 0.0
    %2268 = vmatpush1.msra.mxu0 0.0
    %2269 = vmatprep.subr.mxu0 0.0
    %2270 = vmatpush1.msra.mxu0 0.0
    %2271 = vmatprep.subr.mxu0 0.0
    %2272 = vmatpush1.msra.mxu0 0.0
    %2273 = vmatprep.subr.mxu0 0.0
    %2274 = vmatpush1.msra.mxu0 0.0
    %2275 = vmatprep.subr.mxu0 0.0
    %2276 = vmatpush1.msra.mxu0 0.0
    %2277 = vmatprep.subr.mxu0 0.0
    %2278 = vmatpush1.msra.mxu0 0.0
    %2279 = vmatprep.mubr.f32.mxu0 0.0
    %2280 = vmatmul.mubr.f32.gmra.mrb[0].mxu0 %v2210
    %v2281 = vpop.f32.mrb[0].mxu0
    %v2282 = vadd.f32 0.0, %v2281
    %v2283 = vpop.f32.mrb[0].mxu0
    %2284 = vmatprep.mubr.f32.mxu0 0.0
    %2285 = vmatmul.mubr.f32.gmra.mrb[0].mxu0 %v2213
    %v2286 = vpop.f32.mrb[0].mxu0
    %v2287 = vadd.f32 0.0, %v2286
    %v2288 = vpop.f32.mrb[0].mxu0
    %2289 = vdwg.mxu0
    %v2290 = vadd.f32 %v2084, %v2282
    %v2291 = vadd.f32 %v2085, %v2287
    %v2292 = vlaneseq
    %v2293 = vshrl.u32 %v2292, 7
    %v2294 = vsub.s32 0, %v2293
    %v2295 = vrot.slane %v1382, %v2294
    %v2297 = vsel %vm88, %v2290, 0
    %v2300 = vsel %vm88, %v2291, 0
    %2302 = vmatprep.subr.mxu0 0.0
    %2303 = vmatpush1.msra.mxu0 %v1365
    %2304 = vmatprep.subr.mxu0 0.0
    %2305 = vmatpush1.msra.mxu0 %v1366
    %2306 = vmatprep.subr.mxu0 0.0
    %2307 = vmatpush1.msra.mxu0 %v1367
    %2308 = vmatprep.subr.mxu0 0.0
    %2309 = vmatpush1.msra.mxu0 %v1368
    %2310 = vmatprep.subr.mxu0 0.0
    %2311 = vmatpush1.msra.mxu0 0.0
    %2312 = vmatprep.subr.mxu0 0.0
    %2313 = vmatpush1.msra.mxu0 0.0
    %2314 = vmatprep.subr.mxu0 0.0
    %2315 = vmatpush1.msra.mxu0 0.0
    %2316 = vmatprep.subr.mxu0 0.0
    %2317 = vmatpush1.msra.mxu0 0.0
    %2318 = vmatprep.subr.mxu0 0.0
    %2319 = vmatpush1.msra.mxu0 0.0
    %2320 = vmatprep.subr.mxu0 0.0
    %2321 = vmatpush1.msra.mxu0 0.0
    %2322 = vmatprep.subr.mxu0 0.0
    %2323 = vmatpush1.msra.mxu0 0.0
    %2324 = vmatprep.subr.mxu0 0.0
    %2325 = vmatpush1.msra.mxu0 0.0
    %2326 = vmatprep.subr.mxu0 0.0
    %2327 = vmatpush1.msra.mxu0 0.0
    %2328 = vmatprep.subr.mxu0 0.0
    %2329 = vmatpush1.msra.mxu0 0.0
    %2330 = vmatprep.subr.mxu0 0.0
    %2331 = vmatpush1.msra.mxu0 0.0
    %2332 = vmatprep.subr.mxu0 0.0
    %2333 = vmatpush1.msra.mxu0 0.0
    %2334 = vmatprep.subr.mxu0 0.0
    %2335 = vmatpush1.msra.mxu0 0.0
    %2336 = vmatprep.subr.mxu0 0.0
    %2337 = vmatpush1.msra.mxu0 0.0
    %2338 = vmatprep.subr.mxu0 0.0
    %2339 = vmatpush1.msra.mxu0 0.0
    %2340 = vmatprep.subr.mxu0 0.0
    %2341 = vmatpush1.msra.mxu0 0.0
    %2342 = vmatprep.subr.mxu0 0.0
    %2343 = vmatpush1.msra.mxu0 0.0
    %2344 = vmatprep.subr.mxu0 0.0
    %2345 = vmatpush1.msra.mxu0 0.0
    %2346 = vmatprep.subr.mxu0 0.0
    %2347 = vmatpush1.msra.mxu0 0.0
    %2348 = vmatprep.subr.mxu0 0.0
    %2349 = vmatpush1.msra.mxu0 0.0
    %2350 = vmatprep.subr.mxu0 0.0
    %2351 = vmatpush1.msra.mxu0 0.0
    %2352 = vmatprep.subr.mxu0 0.0
    %2353 = vmatpush1.msra.mxu0 0.0
    %2354 = vmatprep.subr.mxu0 0.0
    %2355 = vmatpush1.msra.mxu0 0.0
    %2356 = vmatprep.subr.mxu0 0.0
    %2357 = vmatpush1.msra.mxu0 0.0
    %2358 = vmatprep.subr.mxu0 0.0
    %2359 = vmatpush1.msra.mxu0 0.0
    %2360 = vmatprep.subr.mxu0 0.0
    %2361 = vmatpush1.msra.mxu0 0.0
    %2362 = vmatprep.subr.mxu0 0.0
    %2363 = vmatpush1.msra.mxu0 0.0
    %2364 = vmatprep.subr.mxu0 0.0
    %2365 = vmatpush1.msra.mxu0 0.0
    %2366 = vmatprep.mubr.f32.mxu0 0.0
    %2367 = vmatmul.mubr.f32.gmra.mrb[0].mxu0 %v2297
    %v2368 = vpop.f32.mrb[0].mxu0
    %v2369 = vadd.f32 %v2295, %v2368
    %v2370 = vpop.f32.mrb[0].mxu0
    %2371 = vmatprep.mubr.f32.mxu0 0.0
    %2372 = vmatmul.mubr.f32.gmra.mrb[0].mxu0 %v2300
    %v2373 = vpop.f32.mrb[0].mxu0
    %v2374 = vadd.f32 %v2295, %v2373
    %v2375 = vpop.f32.mrb[0].mxu0
    %2376 = vdwg.mxu0
    %v2377 = vadd.f32 %v1359, %v2369
    %v2378 = vadd.f32 %v1360, %v2374
    %v2379 = vsel %vm88, %v2377, 0.0
    %2380 = vadd.xlane.f32.xlu0 %v2379
    %v2381 = vpop.xlane.xlu0 %2380
    %v2382 = vsel %vm88, %v2378, 0.0
    %2383 = vadd.xlane.f32.xlu0 %v2382
    %v2384 = vpop.xlane.xlu0 %2383
    %v2385 = vmul.f32 %v2381, %v1115
    %v2386 = vmul.f32 %v2384, %v1115
    %v2387 = vsub.f32 %v2377, %v2385
    %v2388 = vsub.f32 %v2378, %v2386
    %v2389 = vmul.f32 %v2387, %v2387
    %v2390 = vmul.f32 %v2388, %v2388
    %v2391 = vsel %vm88, %v2389, 0.0
    %2392 = vadd.xlane.f32.xlu0 %v2391
    %v2393 = vpop.xlane.xlu0 %2392
    %v2394 = vsel %vm88, %v2390, 0.0
    %2395 = vadd.xlane.f32.xlu0 %v2394
    %v2396 = vpop.xlane.xlu0 %2395
    %v2397 = vmul.f32 %v2393, %v1115
    %v2398 = vmul.f32 %v2396, %v1115
    %v2399 = vadd.f32 %v2397, 1e-05
    %v2400 = vadd.f32 %v2398, 1e-05
    %v2401 = vrsqrt.pop %v2399
    %v2402 = vrsqrt.pop %v2400
    %v2403 = vmul.f32 %v2387, %v2401
    %v2404 = vmul.f32 %v2388, %v2402
    %v2405 = vlaneseq
    %v2406 = vshrl.u32 %v2405, 7
    %v2407 = vsub.s32 0, %v2406
    %v2408 = vrot.slane %v1385, %v2407
    %v2409 = vmul.f32 %v2403, %v2408
    %v2410 = vmul.f32 %v2404, %v2408
    %v2411 = vlaneseq
    %v2412 = vshrl.u32 %v2411, 7
    %v2413 = vsub.s32 0, %v2412
    %v2414 = vrot.slane %v1386, %v2413
    %v2415 = vadd.f32 %v2409, %v2414
    %v2416 = vadd.f32 %v2410, %v2414
    %v2417 = vlaneseq
    %v2418 = vshrl.u32 %v2417, 7
    %v2419 = vsub.s32 0, %v2418
    %v2420 = vrot.slane %v1383, %v2419
    %v2422 = vsel %vm88, %v2415, 0
    %v2425 = vsel %vm88, %v2416, 0
    %2427 = vmatprep.subr.mxu0 0.0
    %2428 = vmatpush1.msra.mxu0 %v1369
    %2429 = vmatprep.subr.mxu0 0.0
    %2430 = vmatpush1.msra.mxu0 %v1370
    %2431 = vmatprep.subr.mxu0 0.0
    %2432 = vmatpush1.msra.mxu0 %v1371
    %2433 = vmatprep.subr.mxu0 0.0
    %2434 = vmatpush1.msra.mxu0 %v1372
    %2435 = vmatprep.subr.mxu0 0.0
    %2436 = vmatpush1.msra.mxu0 0.0
    %2437 = vmatprep.subr.mxu0 0.0
    %2438 = vmatpush1.msra.mxu0 0.0
    %2439 = vmatprep.subr.mxu0 0.0
    %2440 = vmatpush1.msra.mxu0 0.0
    %2441 = vmatprep.subr.mxu0 0.0
    %2442 = vmatpush1.msra.mxu0 0.0
    %2443 = vmatprep.subr.mxu0 0.0
    %2444 = vmatpush1.msra.mxu0 0.0
    %2445 = vmatprep.subr.mxu0 0.0
    %2446 = vmatpush1.msra.mxu0 0.0
    %2447 = vmatprep.subr.mxu0 0.0
    %2448 = vmatpush1.msra.mxu0 0.0
    %2449 = vmatprep.subr.mxu0 0.0
    %2450 = vmatpush1.msra.mxu0 0.0
    %2451 = vmatprep.subr.mxu0 0.0
    %2452 = vmatpush1.msra.mxu0 0.0
    %2453 = vmatprep.subr.mxu0 0.0
    %2454 = vmatpush1.msra.mxu0 0.0
    %2455 = vmatprep.subr.mxu0 0.0
    %2456 = vmatpush1.msra.mxu0 0.0
    %2457 = vmatprep.subr.mxu0 0.0
    %2458 = vmatpush1.msra.mxu0 0.0
    %2459 = vmatprep.subr.mxu0 0.0
    %2460 = vmatpush1.msra.mxu0 0.0
    %2461 = vmatprep.subr.mxu0 0.0
    %2462 = vmatpush1.msra.mxu0 0.0
    %2463 = vmatprep.subr.mxu0 0.0
    %2464 = vmatpush1.msra.mxu0 0.0
    %2465 = vmatprep.subr.mxu0 0.0
    %2466 = vmatpush1.msra.mxu0 0.0
    %2467 = vmatprep.subr.mxu0 0.0
    %2468 = vmatpush1.msra.mxu0 0.0
    %2469 = vmatprep.subr.mxu0 0.0
    %2470 = vmatpush1.msra.mxu0 0.0
    %2471 = vmatprep.subr.mxu0 0.0
    %2472 = vmatpush1.msra.mxu0 0.0
    %2473 = vmatprep.subr.mxu0 0.0
    %2474 = vmatpush1.msra.mxu0 0.0
    %2475 = vmatprep.subr.mxu0 0.0
    %2476 = vmatpush1.msra.mxu0 0.0
    %2477 = vmatprep.subr.mxu0 0.0
    %2478 = vmatpush1.msra.mxu0 0.0
    %2479 = vmatprep.subr.mxu0 0.0
    %2480 = vmatpush1.msra.mxu0 0.0
    %2481 = vmatprep.subr.mxu0 0.0
    %2482 = vmatpush1.msra.mxu0 0.0
    %2483 = vmatprep.subr.mxu0 0.0
    %2484 = vmatpush1.msra.mxu0 0.0
    %2485 = vmatprep.subr.mxu0 0.0
    %2486 = vmatpush1.msra.mxu0 0.0
    %2487 = vmatprep.subr.mxu0 0.0
    %2488 = vmatpush1.msra.mxu0 0.0
    %2489 = vmatprep.subr.mxu0 0.0
    %2490 = vmatpush1.msra.mxu0 0.0
    %2491 = vmatprep.mubr.f32.mxu0 0.0
    %2492 = vmatmul.mubr.f32.gmra.mrb[0].mxu0 %v2422
    %v2493 = vpop.f32.mrb[0].mxu0
    %v2494 = vadd.f32 %v2420, %v2493
    %v2495 = vpop.f32.mrb[0].mxu0
    %2496 = vmatprep.mubr.f32.mxu0 0.0
    %2497 = vmatmul.mubr.f32.gmra.mrb[0].mxu0 %v2425
    %v2498 = vpop.f32.mrb[0].mxu0
    %v2499 = vadd.f32 %v2420, %v2498
    %v2500 = vpop.f32.mrb[0].mxu0
    %2501 = vdwg.mxu0
    %v2502 = vmax.f32 %v2494, 0.0
    %v2503 = vmax.f32 %v2499, 0.0
    %v2504 = vlaneseq
    %v2505 = vshrl.u32 %v2504, 7
    %v2506 = vsub.s32 0, %v2505
    %v2507 = vrot.slane %v1384, %v2506
    %v2509 = vsel %vm1239, %v2502, 0
    %v2512 = vsel %vm1239, %v2503, 0
    %2514 = vmatprep.subr.mxu0 0.0
    %2515 = vmatpush1.msra.mxu0 %v1373
    %2516 = vmatprep.subr.mxu0 0.0
    %2517 = vmatpush1.msra.mxu0 %v1374
    %2518 = vmatprep.subr.mxu0 0.0
    %2519 = vmatpush1.msra.mxu0 %v1375
    %2520 = vmatprep.subr.mxu0 0.0
    %2521 = vmatpush1.msra.mxu0 %v1376
    %2522 = vmatprep.subr.mxu0 0.0
    %2523 = vmatpush1.msra.mxu0 %v1377
    %2524 = vmatprep.subr.mxu0 0.0
    %2525 = vmatpush1.msra.mxu0 %v1378
    %2526 = vmatprep.subr.mxu0 0.0
    %2527 = vmatpush1.msra.mxu0 %v1379
    %2528 = vmatprep.subr.mxu0 0.0
    %2529 = vmatpush1.msra.mxu0 %v1380
    %2530 = vmatprep.subr.mxu0 0.0
    %2531 = vmatpush1.msra.mxu0 0.0
    %2532 = vmatprep.subr.mxu0 0.0
    %2533 = vmatpush1.msra.mxu0 0.0
    %2534 = vmatprep.subr.mxu0 0.0
    %2535 = vmatpush1.msra.mxu0 0.0
    %2536 = vmatprep.subr.mxu0 0.0
    %2537 = vmatpush1.msra.mxu0 0.0
    %2538 = vmatprep.subr.mxu0 0.0
    %2539 = vmatpush1.msra.mxu0 0.0
    %2540 = vmatprep.subr.mxu0 0.0
    %2541 = vmatpush1.msra.mxu0 0.0
    %2542 = vmatprep.subr.mxu0 0.0
    %2543 = vmatpush1.msra.mxu0 0.0
    %2544 = vmatprep.subr.mxu0 0.0
    %2545 = vmatpush1.msra.mxu0 0.0
    %2546 = vmatprep.subr.mxu0 0.0
    %2547 = vmatpush1.msra.mxu0 0.0
    %2548 = vmatprep.subr.mxu0 0.0
    %2549 = vmatpush1.msra.mxu0 0.0
    %2550 = vmatprep.subr.mxu0 0.0
    %2551 = vmatpush1.msra.mxu0 0.0
    %2552 = vmatprep.subr.mxu0 0.0
    %2553 = vmatpush1.msra.mxu0 0.0
    %2554 = vmatprep.subr.mxu0 0.0
    %2555 = vmatpush1.msra.mxu0 0.0
    %2556 = vmatprep.subr.mxu0 0.0
    %2557 = vmatpush1.msra.mxu0 0.0
    %2558 = vmatprep.subr.mxu0 0.0
    %2559 = vmatpush1.msra.mxu0 0.0
    %2560 = vmatprep.subr.mxu0 0.0
    %2561 = vmatpush1.msra.mxu0 0.0
    %2562 = vmatprep.subr.mxu0 0.0
    %2563 = vmatpush1.msra.mxu0 0.0
    %2564 = vmatprep.subr.mxu0 0.0
    %2565 = vmatpush1.msra.mxu0 0.0
    %2566 = vmatprep.subr.mxu0 0.0
    %2567 = vmatpush1.msra.mxu0 0.0
    %2568 = vmatprep.subr.mxu0 0.0
    %2569 = vmatpush1.msra.mxu0 0.0
    %2570 = vmatprep.subr.mxu0 0.0
    %2571 = vmatpush1.msra.mxu0 0.0
    %2572 = vmatprep.subr.mxu0 0.0
    %2573 = vmatpush1.msra.mxu0 0.0
    %2574 = vmatprep.subr.mxu0 0.0
    %2575 = vmatpush1.msra.mxu0 0.0
    %2576 = vmatprep.subr.mxu0 0.0
    %2577 = vmatpush1.msra.mxu0 0.0
    %2578 = vmatprep.mubr.f32.mxu0 0.0
    %2579 = vmatmul.mubr.f32.gmra.mrb[0].mxu0 %v2509
    %v2580 = vpop.f32.mrb[0].mxu0
    %v2581 = vadd.f32 %v2507, %v2580
    %v2582 = vpop.f32.mrb[0].mxu0
    %2583 = vmatprep.mubr.f32.mxu0 0.0
    %2584 = vmatmul.mubr.f32.gmra.mrb[0].mxu0 %v2512
    %v2585 = vpop.f32.mrb[0].mxu0
    %v2586 = vadd.f32 %v2507, %v2585
    %v2587 = vpop.f32.mrb[0].mxu0
    %2588 = vdwg.mxu0
    %v2589 = vadd.f32 %v2415, %v2581
    %v2590 = vadd.f32 %v2416, %v2586
    %v2591 = vsel %vm88, %v2589, 0.0
    %2592 = vadd.xlane.f32.xlu0 %v2591
    %v2593 = vpop.xlane.xlu0 %2592
    %v2594 = vsel %vm88, %v2590, 0.0
    %2595 = vadd.xlane.f32.xlu0 %v2594
    %v2596 = vpop.xlane.xlu0 %2595
    %v2597 = vmul.f32 %v2593, %v1115
    %v2598 = vmul.f32 %v2596, %v1115
    %v2599 = vsub.f32 %v2589, %v2597
    %v2600 = vsub.f32 %v2590, %v2598
    %v2601 = vmul.f32 %v2599, %v2599
    %v2602 = vmul.f32 %v2600, %v2600
    %v2603 = vsel %vm88, %v2601, 0.0
    %2604 = vadd.xlane.f32.xlu0 %v2603
    %v2605 = vpop.xlane.xlu0 %2604
    %v2606 = vsel %vm88, %v2602, 0.0
    %2607 = vadd.xlane.f32.xlu0 %v2606
    %v2608 = vpop.xlane.xlu0 %2607
    %v2609 = vmul.f32 %v2605, %v1115
    %v2610 = vmul.f32 %v2608, %v1115
    %v2611 = vadd.f32 %v2609, 1e-05
    %v2612 = vadd.f32 %v2610, 1e-05
    %v2613 = vrsqrt.pop %v2611
    %v2614 = vrsqrt.pop %v2612
    %v2615 = vmul.f32 %v2599, %v2613
    %v2616 = vmul.f32 %v2600, %v2614
    %v2617 = vlaneseq
    %v2618 = vshrl.u32 %v2617, 7
    %v2619 = vsub.s32 0, %v2618
    %v2620 = vrot.slane %v1387, %v2619
    %v2621 = vmul.f32 %v2615, %v2620
    %v2622 = vmul.f32 %v2616, %v2620
    %v2623 = vlaneseq
    %v2624 = vshrl.u32 %v2623, 7
    %v2625 = vsub.s32 0, %v2624
    %v2626 = vrot.slane %v1388, %v2625
    %v2627 = vadd.f32 %v2621, %v2626
    %v2628 = vadd.f32 %v2622, %v2626
    %v2630 = vsel %vm260, %v31, 0
    %2632 = vmatprep.subr.mxu0 0.0
    %2633 = vmatpush1.msra.mxu0 %v2627
    %2634 = vmatprep.subr.mxu0 0.0
    %2635 = vmatpush1.msra.mxu0 %v2628
    %2636 = vmatprep.subr.mxu0 0.0
    %2637 = vmatpush1.msra.mxu0 0.0
    %2638 = vmatprep.subr.mxu0 0.0
    %2639 = vmatpush1.msra.mxu0 0.0
    %2640 = vmatprep.subr.mxu0 0.0
    %2641 = vmatpush1.msra.mxu0 0.0
    %2642 = vmatprep.subr.mxu0 0.0
    %2643 = vmatpush1.msra.mxu0 0.0
    %2644 = vmatprep.subr.mxu0 0.0
    %2645 = vmatpush1.msra.mxu0 0.0
    %2646 = vmatprep.subr.mxu0 0.0
    %2647 = vmatpush1.msra.mxu0 0.0
    %2648 = vmatprep.subr.mxu0 0.0
    %2649 = vmatpush1.msra.mxu0 0.0
    %2650 = vmatprep.subr.mxu0 0.0
    %2651 = vmatpush1.msra.mxu0 0.0
    %2652 = vmatprep.subr.mxu0 0.0
    %2653 = vmatpush1.msra.mxu0 0.0
    %2654 = vmatprep.subr.mxu0 0.0
    %2655 = vmatpush1.msra.mxu0 0.0
    %2656 = vmatprep.subr.mxu0 0.0
    %2657 = vmatpush1.msra.mxu0 0.0
    %2658 = vmatprep.subr.mxu0 0.0
    %2659 = vmatpush1.msra.mxu0 0.0
    %2660 = vmatprep.subr.mxu0 0.0
    %2661 = vmatpush1.msra.mxu0 0.0
    %2662 = vmatprep.subr.mxu0 0.0
    %2663 = vmatpush1.msra.mxu0 0.0
    %2664 = vmatprep.subr.mxu0 0.0
    %2665 = vmatpush1.msra.mxu0 0.0
    %2666 = vmatprep.subr.mxu0 0.0
    %2667 = vmatpush1.msra.mxu0 0.0
    %2668 = vmatprep.subr.mxu0 0.0
    %2669 = vmatpush1.msra.mxu0 0.0
    %2670 = vmatprep.subr.mxu0 0.0
    %2671 = vmatpush1.msra.mxu0 0.0
    %2672 = vmatprep.subr.mxu0 0.0
    %2673 = vmatpush1.msra.mxu0 0.0
    %2674 = vmatprep.subr.mxu0 0.0
    %2675 = vmatpush1.msra.mxu0 0.0
    %2676 = vmatprep.subr.mxu0 0.0
    %2677 = vmatpush1.msra.mxu0 0.0
    %2678 = vmatprep.subr.mxu0 0.0
    %2679 = vmatpush1.msra.mxu0 0.0
    %2680 = vmatprep.subr.mxu0 0.0
    %2681 = vmatpush1.msra.mxu0 0.0
    %2682 = vmatprep.subr.mxu0 0.0
    %2683 = vmatpush1.msra.mxu0 0.0
    %2684 = vmatprep.subr.mxu0 0.0
    %2685 = vmatpush1.msra.mxu0 0.0
    %2686 = vmatprep.subr.mxu0 0.0
    %2687 = vmatpush1.msra.mxu0 0.0
    %2688 = vmatprep.subr.mxu0 0.0
    %2689 = vmatpush1.msra.mxu0 0.0
    %2690 = vmatprep.subr.mxu0 0.0
    %2691 = vmatpush1.msra.mxu0 0.0
    %2692 = vmatprep.subr.mxu0 0.0
    %2693 = vmatpush1.msra.mxu0 0.0
    %2694 = vmatprep.subr.mxu0 0.0
    %2695 = vmatpush1.msra.mxu0 0.0
    %2696 = vmatprep.mubr.f32.mxu0 0.0
    %2697 = vmatmul.mubr.f32.gmra.mrb[0].mxu0 %v2630
    %v2698 = vpop.f32.mrb[0].mxu0
    %v2699 = vadd.f32 0.0, %v2698
    %v2700 = vpop.f32.mrb[0].mxu0
    %2701 = vdwg.mxu0
    %vm2702 = vcmask 254976
    %2703 = vst.msk [vmem:[#allocation5] sm:$0x3] %vm2702, %v2699
    // Predicated region
    $region14: #{behrt_lab_forward.1} parent=1 // pred_check
      _
    $region15: #{behrt_lab_forward.1} parent=1 // pred_check_branch
      %2705 = sbr.rel (0) target = $region17
    $region16: #{behrt_lab_forward.1} parent=1 // pred_region
      %s2707 = ssub.s32 32, 32
      %2708 = vsyncadd [#allocation4], %s2707
      %s2710 = sshll.u32 [#allocation5], 4
      %s2711 = int_to_ptr.vmem [resolvable:$true] %s2710
      %2713 = dma.vmem_to_hbm [thread:$0]  %s2711, 32, %s2, [#allocation4]
    $region17: #{behrt_lab_forward.1} parent=1 // pred_fallthru
      _
    // Predicated region
    $region18: #{behrt_lab_forward.1} parent=1 // pred_check
      _
    $region19: #{behrt_lab_forward.1} parent=1 // pred_check_branch
      %2715 = sbr.rel (0) target = $region21
    $region20: #{behrt_lab_forward.1} parent=1 // pred_region
      %2716 = dma.done [#allocation4], 32
    $region21: #{behrt_lab_forward.1} parent=1 // pred_fallthru
      _
    %2717 = vsyncpa [#allocation3], 1
    %2718 = vsyncpa [#allocation4], 1

</llo_original>
